<compile_context>
chip_gen: v5e
topology: v5e:2x2
jax: 0.10.0
libtpu: 0.0.40
codegen_flags: <defaults>
</compile_context>

<pallas_src>
import jax
import jax.numpy as jnp
from jax.experimental import pallas as pl
from jax.experimental.pallas import tpu as pltpu


def _round_up(x, m):
    return ((x + m - 1) // m) * m


# ----------------------------------------------------------------------------
# Generation-aware VMEM budgets (conservative default is safe on v7x).
# ----------------------------------------------------------------------------
def _has_big_vmem():
    """True on 128-MiB-VMEM-per-TensorCore parts (v5e/v6e)."""
    try:
        kind = jax.devices()[0].device_kind.lower()
    except Exception:
        return False
    return ("v5" in kind) or ("v6" in kind)


_BIG_VMEM = _has_big_vmem()
_WEIGHT_BUF_BYTES = (16 if _BIG_VMEM else 8) * 1024 * 1024   # per weight block
_VMEM_LIMIT_BYTES = (64 if _BIG_VMEM else 32) * 1024 * 1024


# ----------------------------------------------------------------------------
# Pallas kernel: tiled matmul with f32 VMEM scratch accumulation and a fused
# (BN-scaled) bias + ReLU + BN-shift epilogue written (bf16) on the last k step.
# ----------------------------------------------------------------------------
def _conv_mm_kernel(a_ref, w_ref, bs_ref, o_ref, acc_ref):
    k = pl.program_id(2)
    part = jnp.dot(a_ref[...], w_ref[...], preferred_element_type=jnp.float32)

    @pl.when(k == 0)
    def _():
        acc_ref[...] = part

    @pl.when(k != 0)
    def _():
        acc_ref[...] += part

    @pl.when(k == pl.num_programs(2) - 1)
    def _():
        # bs_ref[0] = conv bias * BN scale, bs_ref[1] = BN shift.
        y = jnp.maximum(acc_ref[...] + bs_ref[0:1, :], 0.0)        # bias + ReLU
        o_ref[...] = (y + bs_ref[1:2, :]).astype(o_ref.dtype)      # BN shift


# ----------------------------------------------------------------------------
# Per-layer tile planning (done once, in prepare_params)
# ----------------------------------------------------------------------------
def _plan_tiles(K, N, itemsize):
    """Pick (tn, Np, tk, Kp) for a (K, N) weight matrix."""
    # Lane-dense N (pad to multiple of 128); pick tn so wide layers get >= 2
    # j-tiles (feeds both v7x TensorCores with disjoint weight halves).
    Np = _round_up(N, 128)
    tn = next(t for t in (512, 384, 256, 128) if Np % t == 0)
    # K tiling: single full-K block if it fits the per-buffer budget, otherwise
    # split into 128-aligned chunks.
    max_tk = max(128, (_WEIGHT_BUF_BYTES // (tn * itemsize)) // 128 * 128)
    if K <= max_tk:
        Kp, tk = K, K
    else:
        ksteps = -(-K // max_tk)
        tk = _round_up(-(-K // ksteps), 128)
        Kp = _round_up(K, tk)
    return tn, Np, tk, Kp


def _maybe_deep_weight_spec(block_shape, index_map, deep):
    """Weight BlockSpec; triple-buffered on the big layers when supported."""
    if deep and hasattr(pl, "Buffered"):
        try:
            return pl.BlockSpec(block_shape, index_map,
                                pipeline_mode=pl.Buffered(3))
        except TypeError:
            pass
    return pl.BlockSpec(block_shape, index_map)


# ----------------------------------------------------------------------------
# Fused Conv+ReLU+BN layer = im2col + one pallas_call
# ----------------------------------------------------------------------------
def _im2col(x_nhwc, kh, kw, stride, pad):
    N, H, W, C = x_nhwc.shape
    xp = jnp.pad(x_nhwc, ((0, 0), (pad, pad), (pad, pad), (0, 0)))
    OH = (H + 2 * pad - kh) // stride + 1
    OW = (W + 2 * pad - kw) // stride + 1
    cols = []
    for i in range(kh):
        for j in range(kw):
            cols.append(xp[:, i:i + stride * (OH - 1) + 1:stride,
                           j:j + stride * (OW - 1) + 1:stride, :])
    patches = jnp.stack(cols, axis=3)            # (N, OH, OW, kh*kw, C)
    return patches.reshape(N * OH * OW, kh * kw * C), OH, OW


def _fused_conv_layer(x_nhwc, plan):
    n_img = x_nhwc.shape[0]
    # Cast BEFORE im2col so all glue + patch traffic runs at bf16 width.
    x_nhwc = x_nhwc.astype(plan["dtype"])
    patches, OH, OW = _im2col(x_nhwc, 3, 3, plan["stride"], plan["pad"])
    M, K = patches.shape
    Kp, Np, tk, tn = plan["Kp"], plan["Np"], plan["tk"], plan["tn"]

    # M is small for every Pallas layer of this net (<= ~600 rows), so a single
    # M tile is always VMEM-safe.
    tm = min(2048, _round_up(M, 8))
    Mp = _round_up(M, tm)
    a = jnp.pad(patches, ((0, Mp - M), (0, Kp - K)))

    grid = (Mp // tm, Np // tn, Kp // tk)

    out = pl.pallas_call(
        _conv_mm_kernel,
        out_shape=jax.ShapeDtypeStruct((Mp, Np), plan["out_dtype"]),
        grid=grid,
        in_specs=[
            pl.BlockSpec((tm, tk), lambda i, j, k: (i, k)),        # patches
            _maybe_deep_weight_spec((tk, tn), lambda i, j, k: (k, j),
                                    plan["deep_weight_buf"]),      # folded weights
            pl.BlockSpec((2, tn), lambda i, j, k: (0, j)),         # [bias*scale; shift]
        ],
        out_specs=pl.BlockSpec((tm, tn), lambda i, j, k: (i, j)),
        scratch_shapes=[pltpu.VMEM((tm, tn), jnp.float32)],        # f32 accumulator
        compiler_params=pltpu.CompilerParams(
            dimension_semantics=("parallel", "parallel", "arbitrary"),
            vmem_limit_bytes=_VMEM_LIMIT_BYTES),
    )(a, plan["w"], plan["bs"])

    y = out[:M, :plan["cout"]]
    return y.reshape(n_img, OH, OW, plan["cout"])


# ----------------------------------------------------------------------------
# Parameters (deterministic, synthetic) + one-time prep (hoisted out of forward)
# ----------------------------------------------------------------------------
_LAYER_CFG = [
    # (cin, cout, stride, pad, has_bn)
    (3, 12, 2, 1, True),
    (12, 48, 2, 1, True),
    (48, 192, 2, 1, True),
    (192, 768, 2, 1, True),
    (768, 3072, 2, 1, True),
    (3072, 3072, 2, 1, True),
    (3072, 3072, 1, 0, False),
]
_BN_EPS = 1e-5
_N_XLA_LAYERS = 2   # tiny-K/N layers 1-2 go to XLA conv (Pallas would waste the MXU)


def init_params(key):
    params = []
    for (cin, cout, _, _, has_bn) in _LAYER_CFG:
        key, wk, bk = jax.random.split(key, 3)
        fan_in = cin * 9
        w = jax.random.normal(wk, (cout, cin, 3, 3), jnp.float32) * jnp.sqrt(2.0 / fan_in)
        b = jax.random.uniform(bk, (cout,), jnp.float32, -0.05, 0.05)
        if has_bn:
            gamma = jnp.ones((cout,), jnp.float32)
            beta = jnp.zeros((cout,), jnp.float32)
            running_mean = jnp.zeros((cout,), jnp.float32)
            running_var = jnp.ones((cout,), jnp.float32)
            scale = gamma / jnp.sqrt(running_var + _BN_EPS)
            shift = beta - running_mean * scale
        else:
            scale = jnp.ones((cout,), jnp.float32)
            shift = jnp.zeros((cout,), jnp.float32)
        params.append({"w": w, "b": b, "scale": scale, "shift": shift})
    return params


def prepare_params(params):
    """One-time weight transpose + BN fold + pad + dtype cast + tile planning."""
    plans = []
    n_layers = len(_LAYER_CFG)
    for idx, ((cin, cout, stride, pad, _), p) in enumerate(zip(_LAYER_CFG, params)):
        if idx < _N_XLA_LAYERS:
            plans.append(dict(kind="xla", stride=stride, pad=pad,
                              w_hwio=jnp.transpose(p["w"], (2, 3, 1, 0)),
                              b=p["b"], scale=p["scale"], shift=p["shift"]))
            continue

        scale, shift = p["scale"], p["shift"]
        # BN fold is only valid for positive scale: relu(x)*s == relu(x*s).
        assert float(jnp.min(scale)) > 0.0, "BN-scale fold requires scale > 0"
        # PyTorch weight (Cout,Cin,KH,KW) -> (KH,KW,Cin) x Cout, matches im2col order.
        w2d = jnp.transpose(p["w"], (2, 3, 1, 0)).reshape(9 * cin, cout)
        w2d = w2d * scale[None, :]
        bias = p["b"] * scale

        K, N = 9 * cin, cout
        dtype = jnp.bfloat16               # bf16 operands, f32 MXU accumulation
        itemsize = jnp.dtype(dtype).itemsize
        tn, Np, tk, Kp = _plan_tiles(K, N, itemsize)
        w_pad = jnp.pad(w2d, ((0, Kp - K), (0, Np - N))).astype(dtype)
        bs = jnp.stack([jnp.pad(bias, (0, Np - N)),
                        jnp.pad(shift, (0, Np - N))]).astype(jnp.float32)  # (2, Np)
        plans.append(dict(
            kind="pallas", cin=cin, cout=cout, stride=stride, pad=pad,
            dtype=dtype,
            out_dtype=jnp.float32 if idx == n_layers - 1 else jnp.bfloat16,
            tn=tn, Np=Np, tk=tk, Kp=Kp,
            deep_weight_buf=(tk * tn * itemsize >= 4 * 1024 * 1024),
            w=w_pad, bs=bs))
    return plans


# ----------------------------------------------------------------------------
# Forward passes
# ----------------------------------------------------------------------------
def forward(x_nchw, plans):
    x = jnp.transpose(x_nchw, (0, 2, 3, 1))  # NCHW -> NHWC
    for plan in plans:
        if plan["kind"] == "xla":
            y = jax.lax.conv_general_dilated(
                x.astype(jnp.float32), plan["w_hwio"],
                (plan["stride"], plan["stride"]),
                [(plan["pad"], plan["pad"]), (plan["pad"], plan["pad"])],
                dimension_numbers=("NHWC", "HWIO", "NHWC"))
            y = jnp.maximum(y + plan["b"], 0.0)
            x = y * plan["scale"] + plan["shift"]
        else:
            x = _fused_conv_layer(x, plan)
    return jnp.transpose(x, (0, 3, 1, 2)).astype(jnp.float32)   # back to NCHW


def forward_ref(x_nchw, params):
    """Pure-JAX f32 reference (Conv -> +b -> ReLU -> BN affine)."""
    x = jnp.transpose(x_nchw, (0, 2, 3, 1))
    for (cin, cout, stride, pad, _), p in zip(_LAYER_CFG, params):
        w_hwio = jnp.transpose(p["w"], (2, 3, 1, 0))
        y = jax.lax.conv_general_dilated(
            x, w_hwio, (stride, stride), [(pad, pad), (pad, pad)],
            dimension_numbers=("NHWC", "HWIO", "NHWC"))
        y = jnp.maximum(y + p["b"], 0.0)
        x = y * p["scale"] + p["shift"]
    return jnp.transpose(x, (0, 3, 1, 2))


if __name__ == "__main__":
    key = jax.random.PRNGKey(0)
    pkey, xkey = jax.random.split(key)
    params = init_params(pkey)
    plans = prepare_params(params)   # hoisted one-time weight prep

    # Smallest spatial size the module supports: six stride-2 pad-1 convs plus a
    # final valid 3x3 conv need 129 -> 65 -> 33 -> 17 -> 9 -> 5 -> 3 -> 1.
    x = jax.random.normal(xkey, (2, 3, 129, 129), jnp.float32)  # NCHW, like PyTorch

    out = jax.block_until_ready(forward(x, plans))
    ref = jax.block_until_ready(forward_ref(x, params))

    assert out.shape == (2, 3072, 1, 1), out.shape
    # bf16 weights + bf16 inter-layer activations (f32 MXU accumulation) across
    # K up to 27648 and 5 stacked layers -> check max error vs output scale.
    ref_scale = float(jnp.max(jnp.abs(ref))) + 1e-6
    max_err = float(jnp.max(jnp.abs(out - ref)))
    assert max_err < 5e-2 * ref_scale, (max_err, ref_scale)
    print("KERNEL_OK")
</pallas_src>

<mosaic_0001>
module attributes {stable_mosaic.version = 11 : i64} {
  func.func @_conv_mm_kernel(%arg0: i32, %arg1: i32, %arg2: i32, %arg3: memref<584x432xbf16, #tpu.memory_space<vmem>>, %arg4: memref<432x256xbf16, #tpu.memory_space<vmem>>, %arg5: memref<2x256xf32, #tpu.memory_space<vmem>>, %arg6: memref<584x256xbf16, #tpu.memory_space<vmem>>, %arg7: memref<584x256xf32, #tpu.memory_space<vmem>>) attributes {dimension_semantics = [#tpu.dimension_semantics<parallel>, #tpu.dimension_semantics<parallel>, #tpu.dimension_semantics<arbitrary>], iteration_bounds = array<i64: 1, 1, 1>, scalar_prefetch = 0 : i64, scratch_operands = 1 : i64, tpu.core_type = #tpu.core_type<tc>, window_params = [{transform_indices = @transform_0, window_bounds = array<i64: 584, 432>}, {transform_indices = @transform_1, window_bounds = array<i64: 432, 256>}, {transform_indices = @transform_2, window_bounds = array<i64: 2, 256>}, {transform_indices = @transform_3, window_bounds = array<i64: 584, 256>}]} {
    %c0 = arith.constant 0 : index
    %c0_0 = arith.constant 0 : index
    %0 = vector.load %arg3[%c0, %c0_0] : memref<584x432xbf16, #tpu.memory_space<vmem>>, vector<584x432xbf16>
    %c0_1 = arith.constant 0 : index
    %c0_2 = arith.constant 0 : index
    %1 = vector.load %arg4[%c0_1, %c0_2] : memref<432x256xbf16, #tpu.memory_space<vmem>>, vector<432x256xbf16>
    %cst = arith.constant dense<0.000000e+00> : vector<584x256xf32>
    %2 = tpu.matmul %0, %1, %cst {dimension_numbers = #tpu.dot_dimension_numbers<[1], [0], [0], [1], [0, 0, 1, 1], [], []>} : vector<584x432xbf16>, vector<432x256xbf16>, vector<584x256xf32> -> vector<584x256xf32>
    %c0_i32 = arith.constant 0 : i32
    %3 = arith.cmpi eq, %arg2, %c0_i32 : i32
    %4 = arith.extui %3 : i1 to i32
    %c0_i32_3 = arith.constant 0 : i32
    %5 = arith.cmpi ne, %4, %c0_i32_3 : i32
    scf.if %5 {
      %c0_8 = arith.constant 0 : index
      %c0_9 = arith.constant 0 : index
      %12 = vector.load %arg7[%c0_8, %c0_9] : memref<584x256xf32, #tpu.memory_space<vmem>>, vector<584x256xf32>
      tpu.vector_store %arg7[%c0_8, %c0_9], %2 {strides = array<i32>} : memref<584x256xf32, #tpu.memory_space<vmem>>, vector<584x256xf32>,
    } else {
    }
    %c0_i32_4 = arith.constant 0 : i32
    %6 = arith.cmpi ne, %arg2, %c0_i32_4 : i32
    %7 = arith.extui %6 : i1 to i32
    %c0_i32_5 = arith.constant 0 : i32
    %8 = arith.cmpi ne, %7, %c0_i32_5 : i32
    scf.if %8 {
      %c0_8 = arith.constant 0 : index
      %c0_9 = arith.constant 0 : index
      %12 = vector.load %arg7[%c0_8, %c0_9] : memref<584x256xf32, #tpu.memory_space<vmem>>, vector<584x256xf32>
      %13 = arith.addf %12, %2 : vector<584x256xf32>
      %c0_10 = arith.constant 0 : index
      %c0_11 = arith.constant 0 : index
      %14 = vector.load %arg7[%c0_10, %c0_11] : memref<584x256xf32, #tpu.memory_space<vmem>>, vector<584x256xf32>
      tpu.vector_store %arg7[%c0_10, %c0_11], %13 {strides = array<i32>} : memref<584x256xf32, #tpu.memory_space<vmem>>, vector<584x256xf32>,
    } else {
    }
    %c0_i32_6 = arith.constant 0 : i32
    %9 = arith.cmpi eq, %arg2, %c0_i32_6 : i32
    %10 = arith.extui %9 : i1 to i32
    %c0_i32_7 = arith.constant 0 : i32
    %11 = arith.cmpi ne, %10, %c0_i32_7 : i32
    scf.if %11 {
      %c0_8 = arith.constant 0 : index
      %c0_9 = arith.constant 0 : index
      %12 = vector.load %arg7[%c0_8, %c0_9] : memref<584x256xf32, #tpu.memory_space<vmem>>, vector<584x256xf32>
      %c0_10 = arith.constant 0 : index
      %c0_11 = arith.constant 0 : index
      %13 = vector.load %arg5[%c0_10, %c0_11] : memref<2x256xf32, #tpu.memory_space<vmem>>, vector<1x256xf32>
      %14 = vector.broadcast %13 : vector<1x256xf32> to vector<584x256xf32>
      %15 = arith.addf %12, %14 : vector<584x256xf32>
      %cst_12 = arith.constant 0.000000e+00 : f32
      %16 = vector.broadcast %cst_12 : f32 to vector<584x256xf32>
      %17 = arith.maximumf %15, %16 : vector<584x256xf32>
      %c1 = arith.constant 1 : index
      %c0_13 = arith.constant 0 : index
      %18 = vector.load %arg5[%c1, %c0_13] : memref<2x256xf32, #tpu.memory_space<vmem>>, vector<1x256xf32>
      %19 = vector.broadcast %18 : vector<1x256xf32> to vector<584x256xf32>
      %20 = arith.addf %17, %19 : vector<584x256xf32>
      %21 = arith.truncf %20 : vector<584x256xf32> to vector<584x256xbf16>
      %c0_14 = arith.constant 0 : index
      %c0_15 = arith.constant 0 : index
      %22 = vector.load %arg6[%c0_14, %c0_15] : memref<584x256xbf16, #tpu.memory_space<vmem>>, vector<584x256xbf16>
      tpu.vector_store %arg6[%c0_14, %c0_15], %21 {strides = array<i32>} : memref<584x256xbf16, #tpu.memory_space<vmem>>, vector<584x256xbf16>,
    } else {
    }
    return
  }
  func.func @transform_0(%arg0: i32, %arg1: i32, %arg2: i32) -> (i32, i32) {
    %c0_i32 = arith.constant 0 : i32
    return %arg0, %arg2 : i32, i32
  }
  func.func @transform_1(%arg0: i32, %arg1: i32, %arg2: i32) -> (i32, i32) {
    %c0_i32 = arith.constant 0 : i32
    return %arg2, %arg1 : i32, i32
  }
  func.func @transform_2(%arg0: i32, %arg1: i32, %arg2: i32) -> (i32, i32) {
    %c0_i32 = arith.constant 0 : i32
    %c0_i32_0 = arith.constant 0 : i32
    return %c0_i32, %arg1 : i32, i32
  }
  func.func @transform_3(%arg0: i32, %arg1: i32, %arg2: i32) -> (i32, i32) {
    %c0_i32 = arith.constant 0 : i32
    return %arg0, %arg1 : i32, i32
  }
}

</mosaic_0001>

<llo_original>
// kernel: tpu_custom_call.1
$region0: #{tpu_custom_call.1}
  #allocation0 [shape = 'u32[]', space=smem, size = 0x4, offset = 0x4, fixed_abs, tag = 'smem constant byte address 0x4 - core index']
  #allocation1 [shape = 'u32[72,128]{1,0:T(1,128)}', space=vmem, size = 0x9000, scoped, tag = 'internal scratch']
  #allocation2 [shape = 'f32[584,256]{1,0:T(8,128)}', space=vmem, size = 0x92000, scoped, tag = 'scratch operand']
  %s0 = inlined_call_operand.vmem [shape: bf16[584,432], index: 0, kind: input, shape index: {}]
  %s1 = inlined_call_operand.vmem [shape: bf16[432,256], index: 1, kind: input, shape index: {}]
  %s2 = inlined_call_operand.vmem [shape: f32[2,256], index: 2, kind: input, shape index: {}]
  %s3 = inlined_call_operand.hbm [shape: bf16[584,256], index: 3, kind: output, shape index: {}]
  %s4 = sld [smem:[#allocation0]]
  $region34: #{tpu_custom_call.1} parent=0
    _
  %s6 = ssub.s32 1, %s4
  %s7 = scalar_select 0, %s6, %s4
  $region1: #{tpu_custom_call.1} parent=0
    #allocation3 [shape = 'u8[299008]{0}', space=vmem, size = 0x49000, scoped, tag = 'output window, operand 0, single buffered']
    #allocation4 [shape = 's32[1]{0}', space=sflag, size = 0x4, scoped, tag = 'scoped memory for tpu_custom_call.1']
    %8 = vsyncpa [#allocation4], 0
    // Predicated region
    $region2: #{tpu_custom_call.1} parent=1 // pred_check
      _
    $region3: #{tpu_custom_call.1} parent=1 // pred_check_branch
      %10 = sbr.rel (0) target = $region5
    $region4: #{tpu_custom_call.1} parent=1 // pred_region
      _
    $region5: #{tpu_custom_call.1} parent=1 // pred_fallthru
      _
    // Predicated region
    $region6: #{tpu_custom_call.1} parent=1 // pred_check
      _
    $region7: #{tpu_custom_call.1} parent=1 // pred_check_branch
      %12 = sbr.rel (0) target = $region9
    $region8: #{tpu_custom_call.1} parent=1 // pred_region
      _
    $region9: #{tpu_custom_call.1} parent=1 // pred_fallthru
      _
    // Predicated region
    $region10: #{tpu_custom_call.1} parent=1 // pred_check
      _
    $region11: #{tpu_custom_call.1} parent=1 // pred_check_branch
      %14 = sbr.rel (0) target = $region13
    $region12: #{tpu_custom_call.1} parent=1 // pred_region
      _
    $region13: #{tpu_custom_call.1} parent=1 // pred_fallthru
      _
    %v16 = vld [vmem:[%s0] sm:$0xff]
    %v17 = vld [vmem:[%s0 + $0x8] sm:$0xff]
    %v18 = vld [vmem:[%s0 + $0x10] sm:$0xff]
    %v19 = vld [vmem:[%s0 + $0x18] sm:$0xff]
    %v20 = vld [vmem:[%s0 + $0x20] sm:$0xff]
    %v21 = vld [vmem:[%s0 + $0x28] sm:$0xff]
    %v22 = vld [vmem:[%s0 + $0x30] sm:$0xff]
    %v23 = vld [vmem:[%s0 + $0x38] sm:$0xff]
    %v24 = vld [vmem:[%s0 + $0x40] sm:$0xff]
    %v25 = vld [vmem:[%s0 + $0x48] sm:$0xff]
    %v26 = vld [vmem:[%s0 + $0x50] sm:$0xff]
    %v27 = vld [vmem:[%s0 + $0x58] sm:$0xff]
    %v28 = vld [vmem:[%s0 + $0x60] sm:$0xff]
    %v29 = vld [vmem:[%s0 + $0x68] sm:$0xff]
    %v30 = vld [vmem:[%s0 + $0x70] sm:$0xff]
    %v31 = vld [vmem:[%s0 + $0x78] sm:$0xff]
    %v32 = vld [vmem:[%s0 + $0x80] sm:$0xff]
    %v33 = vld [vmem:[%s0 + $0x88] sm:$0xff]
    %v34 = vld [vmem:[%s0 + $0x90] sm:$0xff]
    %v35 = vld [vmem:[%s0 + $0x98] sm:$0xff]
    %v36 = vld [vmem:[%s0 + $0xa0] sm:$0xff]
    %v37 = vld [vmem:[%s0 + $0xa8] sm:$0xff]
    %v38 = vld [vmem:[%s0 + $0xb0] sm:$0xff]
    %v39 = vld [vmem:[%s0 + $0xb8] sm:$0xff]
    %v40 = vld [vmem:[%s0 + $0xc0] sm:$0xff]
    %v41 = vld [vmem:[%s0 + $0xc8] sm:$0xff]
    %v42 = vld [vmem:[%s0 + $0xd0] sm:$0xff]
    %v43 = vld [vmem:[%s0 + $0xd8] sm:$0xff]
    %v44 = vld [vmem:[%s0 + $0xe0] sm:$0xff]
    %v45 = vld [vmem:[%s0 + $0xe8] sm:$0xff]
    %v46 = vld [vmem:[%s0 + $0xf0] sm:$0xff]
    %v47 = vld [vmem:[%s0 + $0xf8] sm:$0xff]
    %v48 = vld [vmem:[%s0 + $0x100] sm:$0xff]
    %v49 = vld [vmem:[%s0 + $0x108] sm:$0xff]
    %v50 = vld [vmem:[%s0 + $0x110] sm:$0xff]
    %v51 = vld [vmem:[%s0 + $0x118] sm:$0xff]
    %v52 = vld [vmem:[%s0 + $0x120] sm:$0xff]
    %v53 = vld [vmem:[%s0 + $0x128] sm:$0xff]
    %v54 = vld [vmem:[%s0 + $0x130] sm:$0xff]
    %v55 = vld [vmem:[%s0 + $0x138] sm:$0xff]
    %v56 = vld [vmem:[%s0 + $0x140] sm:$0xff]
    %v57 = vld [vmem:[%s0 + $0x148] sm:$0xff]
    %v58 = vld [vmem:[%s0 + $0x150] sm:$0xff]
    %v59 = vld [vmem:[%s0 + $0x158] sm:$0xff]
    %v60 = vld [vmem:[%s0 + $0x160] sm:$0xff]
    %v61 = vld [vmem:[%s0 + $0x168] sm:$0xff]
    %v62 = vld [vmem:[%s0 + $0x170] sm:$0xff]
    %v63 = vld [vmem:[%s0 + $0x178] sm:$0xff]
    %v64 = vld [vmem:[%s0 + $0x180] sm:$0xff]
    %v65 = vld [vmem:[%s0 + $0x188] sm:$0xff]
    %v66 = vld [vmem:[%s0 + $0x190] sm:$0xff]
    %v67 = vld [vmem:[%s0 + $0x198] sm:$0xff]
    %v68 = vld [vmem:[%s0 + $0x1a0] sm:$0xff]
    %v69 = vld [vmem:[%s0 + $0x1a8] sm:$0xff]
    %v70 = vld [vmem:[%s0 + $0x1b0] sm:$0xff]
    %v71 = vld [vmem:[%s0 + $0x1b8] sm:$0xff]
    %v72 = vld [vmem:[%s0 + $0x1c0] sm:$0xff]
    %v73 = vld [vmem:[%s0 + $0x1c8] sm:$0xff]
    %v74 = vld [vmem:[%s0 + $0x1d0] sm:$0xff]
    %v75 = vld [vmem:[%s0 + $0x1d8] sm:$0xff]
    %v76 = vld [vmem:[%s0 + $0x1e0] sm:$0xff]
    %v77 = vld [vmem:[%s0 + $0x1e8] sm:$0xff]
    %v78 = vld [vmem:[%s0 + $0x1f0] sm:$0xff]
    %v79 = vld [vmem:[%s0 + $0x1f8] sm:$0xff]
    %v80 = vld [vmem:[%s0 + $0x200] sm:$0xff]
    %v81 = vld [vmem:[%s0 + $0x208] sm:$0xff]
    %v82 = vld [vmem:[%s0 + $0x210] sm:$0xff]
    %v83 = vld [vmem:[%s0 + $0x218] sm:$0xff]
    %v84 = vld [vmem:[%s0 + $0x220] sm:$0xff]
    %v85 = vld [vmem:[%s0 + $0x228] sm:$0xff]
    %v86 = vld [vmem:[%s0 + $0x230] sm:$0xff]
    %v87 = vld [vmem:[%s0 + $0x238] sm:$0xff]
    %v88 = vld [vmem:[%s0 + $0x240] sm:$0xff]
    %v89 = vld [vmem:[%s0 + $0x248] sm:$0xff]
    %v90 = vld [vmem:[%s0 + $0x250] sm:$0xff]
    %v91 = vld [vmem:[%s0 + $0x258] sm:$0xff]
    %v92 = vld [vmem:[%s0 + $0x260] sm:$0xff]
    %v93 = vld [vmem:[%s0 + $0x268] sm:$0xff]
    %v94 = vld [vmem:[%s0 + $0x270] sm:$0xff]
    %v95 = vld [vmem:[%s0 + $0x278] sm:$0xff]
    %v96 = vld [vmem:[%s0 + $0x280] sm:$0xff]
    %v97 = vld [vmem:[%s0 + $0x288] sm:$0xff]
    %v98 = vld [vmem:[%s0 + $0x290] sm:$0xff]
    %v99 = vld [vmem:[%s0 + $0x298] sm:$0xff]
    %v100 = vld [vmem:[%s0 + $0x2a0] sm:$0xff]
    %v101 = vld [vmem:[%s0 + $0x2a8] sm:$0xff]
    %v102 = vld [vmem:[%s0 + $0x2b0] sm:$0xff]
    %v103 = vld [vmem:[%s0 + $0x2b8] sm:$0xff]
    %v104 = vld [vmem:[%s0 + $0x2c0] sm:$0xff]
    %v105 = vld [vmem:[%s0 + $0x2c8] sm:$0xff]
    %v106 = vld [vmem:[%s0 + $0x2d0] sm:$0xff]
    %v107 = vld [vmem:[%s0 + $0x2d8] sm:$0xff]
    %v108 = vld [vmem:[%s0 + $0x2e0] sm:$0xff]
    %v109 = vld [vmem:[%s0 + $0x2e8] sm:$0xff]
    %v110 = vld [vmem:[%s0 + $0x2f0] sm:$0xff]
    %v111 = vld [vmem:[%s0 + $0x2f8] sm:$0xff]
    %v112 = vld [vmem:[%s0 + $0x300] sm:$0xff]
    %v113 = vld [vmem:[%s0 + $0x308] sm:$0xff]
    %v114 = vld [vmem:[%s0 + $0x310] sm:$0xff]
    %v115 = vld [vmem:[%s0 + $0x318] sm:$0xff]
    %v116 = vld [vmem:[%s0 + $0x320] sm:$0xff]
    %v117 = vld [vmem:[%s0 + $0x328] sm:$0xff]
    %v118 = vld [vmem:[%s0 + $0x330] sm:$0xff]
    %v119 = vld [vmem:[%s0 + $0x338] sm:$0xff]
    %v120 = vld [vmem:[%s0 + $0x340] sm:$0xff]
    %v121 = vld [vmem:[%s0 + $0x348] sm:$0xff]
    %v122 = vld [vmem:[%s0 + $0x350] sm:$0xff]
    %v123 = vld [vmem:[%s0 + $0x358] sm:$0xff]
    %v124 = vld [vmem:[%s0 + $0x360] sm:$0xff]
    %v125 = vld [vmem:[%s0 + $0x368] sm:$0xff]
    %v126 = vld [vmem:[%s0 + $0x370] sm:$0xff]
    %v127 = vld [vmem:[%s0 + $0x378] sm:$0xff]
    %v128 = vld [vmem:[%s0 + $0x380] sm:$0xff]
    %v129 = vld [vmem:[%s0 + $0x388] sm:$0xff]
    %v130 = vld [vmem:[%s0 + $0x390] sm:$0xff]
    %v131 = vld [vmem:[%s0 + $0x398] sm:$0xff]
    %v132 = vld [vmem:[%s0 + $0x3a0] sm:$0xff]
    %v133 = vld [vmem:[%s0 + $0x3a8] sm:$0xff]
    %v134 = vld [vmem:[%s0 + $0x3b0] sm:$0xff]
    %v135 = vld [vmem:[%s0 + $0x3b8] sm:$0xff]
    %v136 = vld [vmem:[%s0 + $0x3c0] sm:$0xff]
    %v137 = vld [vmem:[%s0 + $0x3c8] sm:$0xff]
    %v138 = vld [vmem:[%s0 + $0x3d0] sm:$0xff]
    %v139 = vld [vmem:[%s0 + $0x3d8] sm:$0xff]
    %v140 = vld [vmem:[%s0 + $0x3e0] sm:$0xff]
    %v141 = vld [vmem:[%s0 + $0x3e8] sm:$0xff]
    %v142 = vld [vmem:[%s0 + $0x3f0] sm:$0xff]
    %v143 = vld [vmem:[%s0 + $0x3f8] sm:$0xff]
    %v144 = vld [vmem:[%s0 + $0x400] sm:$0xff]
    %v145 = vld [vmem:[%s0 + $0x408] sm:$0xff]
    %v146 = vld [vmem:[%s0 + $0x410] sm:$0xff]
    %v147 = vld [vmem:[%s0 + $0x418] sm:$0xff]
    %v148 = vld [vmem:[%s0 + $0x420] sm:$0xff]
    %v149 = vld [vmem:[%s0 + $0x428] sm:$0xff]
    %v150 = vld [vmem:[%s0 + $0x430] sm:$0xff]
    %v151 = vld [vmem:[%s0 + $0x438] sm:$0xff]
    %v152 = vld [vmem:[%s0 + $0x440] sm:$0xff]
    %v153 = vld [vmem:[%s0 + $0x448] sm:$0xff]
    %v154 = vld [vmem:[%s0 + $0x450] sm:$0xff]
    %v155 = vld [vmem:[%s0 + $0x458] sm:$0xff]
    %v156 = vld [vmem:[%s0 + $0x460] sm:$0xff]
    %v157 = vld [vmem:[%s0 + $0x468] sm:$0xff]
    %v158 = vld [vmem:[%s0 + $0x470] sm:$0xff]
    %v159 = vld [vmem:[%s0 + $0x478] sm:$0xff]
    %v160 = vld [vmem:[%s0 + $0x480] sm:$0xff]
    %v161 = vld [vmem:[%s0 + $0x488] sm:$0xff]
    %v162 = vld [vmem:[%s1] sm:$0xff]
    %v163 = vld [vmem:[%s1 + $0x8] sm:$0xff]
    %v164 = vld [vmem:[%s1 + $0x10] sm:$0xff]
    %v165 = vld [vmem:[%s1 + $0x18] sm:$0xff]
    %v166 = vld [vmem:[%s1 + $0x20] sm:$0xff]
    %v167 = vld [vmem:[%s1 + $0x28] sm:$0xff]
    %v168 = vld [vmem:[%s1 + $0x30] sm:$0xff]
    %v169 = vld [vmem:[%s1 + $0x38] sm:$0xff]
    %v170 = vld [vmem:[%s1 + $0x40] sm:$0xff]
    %v171 = vld [vmem:[%s1 + $0x48] sm:$0xff]
    %v172 = vld [vmem:[%s1 + $0x50] sm:$0xff]
    %v173 = vld [vmem:[%s1 + $0x58] sm:$0xff]
    %v174 = vld [vmem:[%s1 + $0x60] sm:$0xff]
    %v175 = vld [vmem:[%s1 + $0x68] sm:$0xff]
    %v176 = vld [vmem:[%s1 + $0x70] sm:$0xff]
    %v177 = vld [vmem:[%s1 + $0x78] sm:$0xff]
    %v178 = vld [vmem:[%s1 + $0x80] sm:$0xff]
    %v179 = vld [vmem:[%s1 + $0x88] sm:$0xff]
    %v180 = vld [vmem:[%s1 + $0x90] sm:$0xff]
    %v181 = vld [vmem:[%s1 + $0x98] sm:$0xff]
    %v182 = vld [vmem:[%s1 + $0xa0] sm:$0xff]
    %v183 = vld [vmem:[%s1 + $0xa8] sm:$0xff]
    %v184 = vld [vmem:[%s1 + $0xb0] sm:$0xff]
    %v185 = vld [vmem:[%s1 + $0xb8] sm:$0xff]
    %v186 = vld [vmem:[%s1 + $0xc0] sm:$0xff]
    %v187 = vld [vmem:[%s1 + $0xc8] sm:$0xff]
    %v188 = vld [vmem:[%s1 + $0xd0] sm:$0xff]
    %v189 = vld [vmem:[%s1 + $0xd8] sm:$0xff]
    %v190 = vld [vmem:[%s1 + $0xe0] sm:$0xff]
    %v191 = vld [vmem:[%s1 + $0xe8] sm:$0xff]
    %v192 = vld [vmem:[%s1 + $0xf0] sm:$0xff]
    %v193 = vld [vmem:[%s1 + $0xf8] sm:$0xff]
    %v194 = vld [vmem:[%s1 + $0x100] sm:$0xff]
    %v195 = vld [vmem:[%s1 + $0x108] sm:$0xff]
    %v196 = vld [vmem:[%s1 + $0x110] sm:$0xff]
    %v197 = vld [vmem:[%s1 + $0x118] sm:$0xff]
    %v198 = vld [vmem:[%s1 + $0x120] sm:$0xff]
    %v199 = vld [vmem:[%s1 + $0x128] sm:$0xff]
    %v200 = vld [vmem:[%s1 + $0x130] sm:$0xff]
    %v201 = vld [vmem:[%s1 + $0x138] sm:$0xff]
    %v202 = vld [vmem:[%s1 + $0x140] sm:$0xff]
    %v203 = vld [vmem:[%s1 + $0x148] sm:$0xff]
    %v204 = vld [vmem:[%s1 + $0x150] sm:$0xff]
    %v205 = vld [vmem:[%s1 + $0x158] sm:$0xff]
    %v206 = vld [vmem:[%s1 + $0x160] sm:$0xff]
    %v207 = vld [vmem:[%s1 + $0x168] sm:$0xff]
    %v208 = vld [vmem:[%s1 + $0x170] sm:$0xff]
    %v209 = vld [vmem:[%s1 + $0x178] sm:$0xff]
    %v210 = vld [vmem:[%s1 + $0x180] sm:$0xff]
    %v211 = vld [vmem:[%s1 + $0x188] sm:$0xff]
    %v212 = vld [vmem:[%s1 + $0x190] sm:$0xff]
    %v213 = vld [vmem:[%s1 + $0x198] sm:$0xff]
    %v214 = vld [vmem:[%s1 + $0x1a0] sm:$0xff]
    %v215 = vld [vmem:[%s1 + $0x1a8] sm:$0xff]
    %v362 = vunpack.c.l.b16 %v16
    %v363 = vunpack.c.h.b16 %v16
    %v364 = vunpack.c.l.b16 %v17
    %v365 = vunpack.c.h.b16 %v17
    %v366 = vunpack.c.l.b16 %v18
    %v367 = vunpack.c.h.b16 %v18
    %v368 = vunpack.c.l.b16 %v19
    %v369 = vunpack.c.h.b16 %v19
    %v370 = vunpack.c.l.b16 %v20
    %v371 = vunpack.c.h.b16 %v20
    %v372 = vunpack.c.l.b16 %v21
    %v373 = vunpack.c.h.b16 %v21
    %v374 = vunpack.c.l.b16 %v22
    %v375 = vunpack.c.h.b16 %v22
    %v376 = vunpack.c.l.b16 %v23
    %v377 = vunpack.c.h.b16 %v23
    %v378 = vunpack.c.l.b16 %v24
    %v379 = vunpack.c.h.b16 %v24
    %v380 = vunpack.c.l.b16 %v25
    %v381 = vunpack.c.h.b16 %v25
    %v382 = vunpack.c.l.b16 %v26
    %v383 = vunpack.c.h.b16 %v26
    %v384 = vunpack.c.l.b16 %v27
    %v385 = vunpack.c.h.b16 %v27
    %v386 = vunpack.c.l.b16 %v28
    %v387 = vunpack.c.h.b16 %v28
    %v388 = vunpack.c.l.b16 %v29
    %v389 = vunpack.c.h.b16 %v29
    %v390 = vunpack.c.l.b16 %v30
    %v391 = vunpack.c.h.b16 %v30
    %v392 = vunpack.c.l.b16 %v31
    %v393 = vunpack.c.h.b16 %v31
    %v394 = vunpack.c.l.b16 %v32
    %v395 = vunpack.c.h.b16 %v32
    %v396 = vunpack.c.l.b16 %v33
    %v397 = vunpack.c.h.b16 %v33
    %v398 = vunpack.c.l.b16 %v34
    %v399 = vunpack.c.h.b16 %v34
    %v400 = vunpack.c.l.b16 %v35
    %v401 = vunpack.c.h.b16 %v35
    %v402 = vunpack.c.l.b16 %v36
    %v403 = vunpack.c.h.b16 %v36
    %v404 = vunpack.c.l.b16 %v37
    %v405 = vunpack.c.h.b16 %v37
    %v406 = vunpack.c.l.b16 %v38
    %v407 = vunpack.c.h.b16 %v38
    %v408 = vunpack.c.l.b16 %v39
    %v409 = vunpack.c.h.b16 %v39
    %v410 = vunpack.c.l.b16 %v40
    %v411 = vunpack.c.h.b16 %v40
    %v412 = vunpack.c.l.b16 %v41
    %v413 = vunpack.c.h.b16 %v41
    %v414 = vunpack.c.l.b16 %v42
    %v415 = vunpack.c.h.b16 %v42
    %v416 = vunpack.c.l.b16 %v43
    %v417 = vunpack.c.h.b16 %v43
    %v418 = vunpack.c.l.b16 %v44
    %v419 = vunpack.c.h.b16 %v44
    %v420 = vunpack.c.l.b16 %v45
    %v421 = vunpack.c.h.b16 %v45
    %v422 = vunpack.c.l.b16 %v46
    %v423 = vunpack.c.h.b16 %v46
    %v424 = vunpack.c.l.b16 %v47
    %v425 = vunpack.c.h.b16 %v47
    %v426 = vunpack.c.l.b16 %v48
    %v427 = vunpack.c.h.b16 %v48
    %v428 = vunpack.c.l.b16 %v49
    %v429 = vunpack.c.h.b16 %v49
    %v430 = vunpack.c.l.b16 %v50
    %v431 = vunpack.c.h.b16 %v50
    %v432 = vunpack.c.l.b16 %v51
    %v433 = vunpack.c.h.b16 %v51
    %v434 = vunpack.c.l.b16 %v52
    %v435 = vunpack.c.h.b16 %v52
    %v436 = vunpack.c.l.b16 %v53
    %v437 = vunpack.c.h.b16 %v53
    %v438 = vunpack.c.l.b16 %v54
    %v439 = vunpack.c.h.b16 %v54
    %v440 = vunpack.c.l.b16 %v55
    %v441 = vunpack.c.h.b16 %v55
    %v442 = vunpack.c.l.b16 %v56
    %v443 = vunpack.c.h.b16 %v56
    %v444 = vunpack.c.l.b16 %v57
    %v445 = vunpack.c.h.b16 %v57
    %v446 = vunpack.c.l.b16 %v58
    %v447 = vunpack.c.h.b16 %v58
    %v448 = vunpack.c.l.b16 %v59
    %v449 = vunpack.c.h.b16 %v59
    %v450 = vunpack.c.l.b16 %v60
    %v451 = vunpack.c.h.b16 %v60
    %v452 = vunpack.c.l.b16 %v61
    %v453 = vunpack.c.h.b16 %v61
    %v454 = vunpack.c.l.b16 %v62
    %v455 = vunpack.c.h.b16 %v62
    %v456 = vunpack.c.l.b16 %v63
    %v457 = vunpack.c.h.b16 %v63
    %v458 = vunpack.c.l.b16 %v64
    %v459 = vunpack.c.h.b16 %v64
    %v460 = vunpack.c.l.b16 %v65
    %v461 = vunpack.c.h.b16 %v65
    %v462 = vunpack.c.l.b16 %v66
    %v463 = vunpack.c.h.b16 %v66
    %v464 = vunpack.c.l.b16 %v67
    %v465 = vunpack.c.h.b16 %v67
    %v466 = vunpack.c.l.b16 %v68
    %v467 = vunpack.c.h.b16 %v68
    %v468 = vunpack.c.l.b16 %v69
    %v469 = vunpack.c.h.b16 %v69
    %v470 = vunpack.c.l.b16 %v70
    %v471 = vunpack.c.h.b16 %v70
    %v472 = vunpack.c.l.b16 %v71
    %v473 = vunpack.c.h.b16 %v71
    %v474 = vunpack.c.l.b16 %v72
    %v475 = vunpack.c.h.b16 %v72
    %v476 = vunpack.c.l.b16 %v73
    %v477 = vunpack.c.h.b16 %v73
    %v478 = vunpack.c.l.b16 %v74
    %v479 = vunpack.c.h.b16 %v74
    %v480 = vunpack.c.l.b16 %v75
    %v481 = vunpack.c.h.b16 %v75
    %v482 = vunpack.c.l.b16 %v76
    %v483 = vunpack.c.h.b16 %v76
    %v484 = vunpack.c.l.b16 %v77
    %v485 = vunpack.c.h.b16 %v77
    %v486 = vunpack.c.l.b16 %v78
    %v487 = vunpack.c.h.b16 %v78
    %v488 = vunpack.c.l.b16 %v79
    %v489 = vunpack.c.h.b16 %v79
    %v490 = vunpack.c.l.b16 %v80
    %v491 = vunpack.c.h.b16 %v80
    %v492 = vunpack.c.l.b16 %v81
    %v493 = vunpack.c.h.b16 %v81
    %v494 = vunpack.c.l.b16 %v82
    %v495 = vunpack.c.h.b16 %v82
    %v496 = vunpack.c.l.b16 %v83
    %v497 = vunpack.c.h.b16 %v83
    %v498 = vunpack.c.l.b16 %v84
    %v499 = vunpack.c.h.b16 %v84
    %v500 = vunpack.c.l.b16 %v85
    %v501 = vunpack.c.h.b16 %v85
    %v502 = vunpack.c.l.b16 %v86
    %v503 = vunpack.c.h.b16 %v86
    %v504 = vunpack.c.l.b16 %v87
    %v505 = vunpack.c.h.b16 %v87
    %v506 = vunpack.c.l.b16 %v88
    %v507 = vunpack.c.h.b16 %v88
    %v508 = vunpack.c.l.b16 %v89
    %v509 = vunpack.c.h.b16 %v89
    %v510 = vunpack.c.l.b16 %v90
    %v511 = vunpack.c.h.b16 %v90
    %v512 = vunpack.c.l.b16 %v91
    %v513 = vunpack.c.h.b16 %v91
    %v514 = vunpack.c.l.b16 %v92
    %v515 = vunpack.c.h.b16 %v92
    %v516 = vunpack.c.l.b16 %v93
    %v517 = vunpack.c.h.b16 %v93
    %v518 = vunpack.c.l.b16 %v94
    %v519 = vunpack.c.h.b16 %v94
    %v520 = vunpack.c.l.b16 %v95
    %v521 = vunpack.c.h.b16 %v95
    %v522 = vunpack.c.l.b16 %v96
    %v523 = vunpack.c.h.b16 %v96
    %v524 = vunpack.c.l.b16 %v97
    %v525 = vunpack.c.h.b16 %v97
    %v526 = vunpack.c.l.b16 %v98
    %v527 = vunpack.c.h.b16 %v98
    %v528 = vunpack.c.l.b16 %v99
    %v529 = vunpack.c.h.b16 %v99
    %v530 = vunpack.c.l.b16 %v100
    %v531 = vunpack.c.h.b16 %v100
    %v532 = vunpack.c.l.b16 %v101
    %v533 = vunpack.c.h.b16 %v101
    %v534 = vunpack.c.l.b16 %v102
    %v535 = vunpack.c.h.b16 %v102
    %v536 = vunpack.c.l.b16 %v103
    %v537 = vunpack.c.h.b16 %v103
    %v538 = vunpack.c.l.b16 %v104
    %v539 = vunpack.c.h.b16 %v104
    %v540 = vunpack.c.l.b16 %v105
    %v541 = vunpack.c.h.b16 %v105
    %v542 = vunpack.c.l.b16 %v106
    %v543 = vunpack.c.h.b16 %v106
    %v544 = vunpack.c.l.b16 %v107
    %v545 = vunpack.c.h.b16 %v107
    %v546 = vunpack.c.l.b16 %v108
    %v547 = vunpack.c.h.b16 %v108
    %v548 = vunpack.c.l.b16 %v109
    %v549 = vunpack.c.h.b16 %v109
    %v550 = vunpack.c.l.b16 %v110
    %v551 = vunpack.c.h.b16 %v110
    %v552 = vunpack.c.l.b16 %v111
    %v553 = vunpack.c.h.b16 %v111
    %v554 = vunpack.c.l.b16 %v112
    %v555 = vunpack.c.h.b16 %v112
    %v556 = vunpack.c.l.b16 %v113
    %v557 = vunpack.c.h.b16 %v113
    %v558 = vunpack.c.l.b16 %v114
    %v559 = vunpack.c.h.b16 %v114
    %v560 = vunpack.c.l.b16 %v115
    %v561 = vunpack.c.h.b16 %v115
    %v562 = vunpack.c.l.b16 %v116
    %v563 = vunpack.c.h.b16 %v116
    %v564 = vunpack.c.l.b16 %v117
    %v565 = vunpack.c.h.b16 %v117
    %v566 = vunpack.c.l.b16 %v118
    %v567 = vunpack.c.h.b16 %v118
    %v568 = vunpack.c.l.b16 %v119
    %v569 = vunpack.c.h.b16 %v119
    %v570 = vunpack.c.l.b16 %v120
    %v571 = vunpack.c.h.b16 %v120
    %v572 = vunpack.c.l.b16 %v121
    %v573 = vunpack.c.h.b16 %v121
    %v574 = vunpack.c.l.b16 %v122
    %v575 = vunpack.c.h.b16 %v122
    %v576 = vunpack.c.l.b16 %v123
    %v577 = vunpack.c.h.b16 %v123
    %v578 = vunpack.c.l.b16 %v124
    %v579 = vunpack.c.h.b16 %v124
    %v580 = vunpack.c.l.b16 %v125
    %v581 = vunpack.c.h.b16 %v125
    %v582 = vunpack.c.l.b16 %v126
    %v583 = vunpack.c.h.b16 %v126
    %v584 = vunpack.c.l.b16 %v127
    %v585 = vunpack.c.h.b16 %v127
    %v586 = vunpack.c.l.b16 %v128
    %v587 = vunpack.c.h.b16 %v128
    %v588 = vunpack.c.l.b16 %v129
    %v589 = vunpack.c.h.b16 %v129
    %v590 = vunpack.c.l.b16 %v130
    %v591 = vunpack.c.h.b16 %v130
    %v592 = vunpack.c.l.b16 %v131
    %v593 = vunpack.c.h.b16 %v131
    %v594 = vunpack.c.l.b16 %v132
    %v595 = vunpack.c.h.b16 %v132
    %v596 = vunpack.c.l.b16 %v133
    %v597 = vunpack.c.h.b16 %v133
    %v598 = vunpack.c.l.b16 %v134
    %v599 = vunpack.c.h.b16 %v134
    %v600 = vunpack.c.l.b16 %v135
    %v601 = vunpack.c.h.b16 %v135
    %v602 = vunpack.c.l.b16 %v136
    %v603 = vunpack.c.h.b16 %v136
    %v604 = vunpack.c.l.b16 %v137
    %v605 = vunpack.c.h.b16 %v137
    %v606 = vunpack.c.l.b16 %v138
    %v607 = vunpack.c.h.b16 %v138
    %v608 = vunpack.c.l.b16 %v139
    %v609 = vunpack.c.h.b16 %v139
    %v610 = vunpack.c.l.b16 %v140
    %v611 = vunpack.c.h.b16 %v140
    %v612 = vunpack.c.l.b16 %v141
    %v613 = vunpack.c.h.b16 %v141
    %v614 = vunpack.c.l.b16 %v142
    %v615 = vunpack.c.h.b16 %v142
    %v616 = vunpack.c.l.b16 %v143
    %v617 = vunpack.c.h.b16 %v143
    %v618 = vunpack.c.l.b16 %v144
    %v619 = vunpack.c.h.b16 %v144
    %v620 = vunpack.c.l.b16 %v145
    %v621 = vunpack.c.h.b16 %v145
    %v622 = vunpack.c.l.b16 %v146
    %v623 = vunpack.c.h.b16 %v146
    %v624 = vunpack.c.l.b16 %v147
    %v625 = vunpack.c.h.b16 %v147
    %v626 = vunpack.c.l.b16 %v148
    %v627 = vunpack.c.h.b16 %v148
    %v628 = vunpack.c.l.b16 %v149
    %v629 = vunpack.c.h.b16 %v149
    %v630 = vunpack.c.l.b16 %v150
    %v631 = vunpack.c.h.b16 %v150
    %v632 = vunpack.c.l.b16 %v151
    %v633 = vunpack.c.h.b16 %v151
    %v634 = vunpack.c.l.b16 %v152
    %v635 = vunpack.c.h.b16 %v152
    %v636 = vunpack.c.l.b16 %v153
    %v637 = vunpack.c.h.b16 %v153
    %v638 = vunpack.c.l.b16 %v154
    %v639 = vunpack.c.h.b16 %v154
    %v640 = vunpack.c.l.b16 %v155
    %v641 = vunpack.c.h.b16 %v155
    %v642 = vunpack.c.l.b16 %v156
    %v643 = vunpack.c.h.b16 %v156
    %v644 = vunpack.c.l.b16 %v157
    %v645 = vunpack.c.h.b16 %v157
    %v646 = vunpack.c.l.b16 %v158
    %v647 = vunpack.c.h.b16 %v158
    %v648 = vunpack.c.l.b16 %v159
    %v649 = vunpack.c.h.b16 %v159
    %v650 = vunpack.c.l.b16 %v160
    %v651 = vunpack.c.h.b16 %v160
    %v652 = vunpack.c.l.b16 %v161
    %v653 = vunpack.c.h.b16 %v161
    %v654 = vpack.c.b16 %v366, %v362
    %v655 = vpack.c.b16 %v367, %v363
    %v656 = vpack.c.b16 %v368, %v364
    %v657 = vpack.c.b16 %v369, %v365
    %v658 = vpack.c.b16 %v374, %v370
    %v659 = vpack.c.b16 %v375, %v371
    %v660 = vpack.c.b16 %v376, %v372
    %v661 = vpack.c.b16 %v377, %v373
    %v662 = vpack.c.b16 %v382, %v378
    %v663 = vpack.c.b16 %v383, %v379
    %v664 = vpack.c.b16 %v384, %v380
    %v665 = vpack.c.b16 %v385, %v381
    %v666 = vpack.c.b16 %v390, %v386
    %v667 = vpack.c.b16 %v391, %v387
    %v668 = vpack.c.b16 %v392, %v388
    %v669 = vpack.c.b16 %v393, %v389
    %v670 = vpack.c.b16 %v398, %v394
    %v671 = vpack.c.b16 %v399, %v395
    %v672 = vpack.c.b16 %v400, %v396
    %v673 = vpack.c.b16 %v401, %v397
    %v674 = vpack.c.b16 %v406, %v402
    %v675 = vpack.c.b16 %v407, %v403
    %v676 = vpack.c.b16 %v408, %v404
    %v677 = vpack.c.b16 %v409, %v405
    %v678 = vpack.c.b16 %v414, %v410
    %v679 = vpack.c.b16 %v415, %v411
    %v680 = vpack.c.b16 %v416, %v412
    %v681 = vpack.c.b16 %v417, %v413
    %v682 = vpack.c.b16 %v422, %v418
    %v683 = vpack.c.b16 %v423, %v419
    %v684 = vpack.c.b16 %v424, %v420
    %v685 = vpack.c.b16 %v425, %v421
    %v686 = vpack.c.b16 %v430, %v426
    %v687 = vpack.c.b16 %v431, %v427
    %v688 = vpack.c.b16 %v432, %v428
    %v689 = vpack.c.b16 %v433, %v429
    %v690 = vpack.c.b16 %v438, %v434
    %v691 = vpack.c.b16 %v439, %v435
    %v692 = vpack.c.b16 %v440, %v436
    %v693 = vpack.c.b16 %v441, %v437
    %v694 = vpack.c.b16 %v446, %v442
    %v695 = vpack.c.b16 %v447, %v443
    %v696 = vpack.c.b16 %v448, %v444
    %v697 = vpack.c.b16 %v449, %v445
    %v698 = vpack.c.b16 %v454, %v450
    %v699 = vpack.c.b16 %v455, %v451
    %v700 = vpack.c.b16 %v456, %v452
    %v701 = vpack.c.b16 %v457, %v453
    %v702 = vpack.c.b16 %v462, %v458
    %v703 = vpack.c.b16 %v463, %v459
    %v704 = vpack.c.b16 %v464, %v460
    %v705 = vpack.c.b16 %v465, %v461
    %v706 = vpack.c.b16 %v470, %v466
    %v707 = vpack.c.b16 %v471, %v467
    %v708 = vpack.c.b16 %v472, %v468
    %v709 = vpack.c.b16 %v473, %v469
    %v710 = vpack.c.b16 %v478, %v474
    %v711 = vpack.c.b16 %v479, %v475
    %v712 = vpack.c.b16 %v480, %v476
    %v713 = vpack.c.b16 %v481, %v477
    %v714 = vpack.c.b16 %v486, %v482
    %v715 = vpack.c.b16 %v487, %v483
    %v716 = vpack.c.b16 %v488, %v484
    %v717 = vpack.c.b16 %v489, %v485
    %v718 = vpack.c.b16 %v494, %v490
    %v719 = vpack.c.b16 %v495, %v491
    %v720 = vpack.c.b16 %v496, %v492
    %v721 = vpack.c.b16 %v497, %v493
    %v722 = vpack.c.b16 %v502, %v498
    %v723 = vpack.c.b16 %v503, %v499
    %v724 = vpack.c.b16 %v504, %v500
    %v725 = vpack.c.b16 %v505, %v501
    %v726 = vpack.c.b16 %v510, %v506
    %v727 = vpack.c.b16 %v511, %v507
    %v728 = vpack.c.b16 %v512, %v508
    %v729 = vpack.c.b16 %v513, %v509
    %v730 = vpack.c.b16 %v518, %v514
    %v731 = vpack.c.b16 %v519, %v515
    %v732 = vpack.c.b16 %v520, %v516
    %v733 = vpack.c.b16 %v521, %v517
    %v734 = vpack.c.b16 %v526, %v522
    %v735 = vpack.c.b16 %v527, %v523
    %v736 = vpack.c.b16 %v528, %v524
    %v737 = vpack.c.b16 %v529, %v525
    %v738 = vpack.c.b16 %v534, %v530
    %v739 = vpack.c.b16 %v535, %v531
    %v740 = vpack.c.b16 %v536, %v532
    %v741 = vpack.c.b16 %v537, %v533
    %v742 = vpack.c.b16 %v542, %v538
    %v743 = vpack.c.b16 %v543, %v539
    %v744 = vpack.c.b16 %v544, %v540
    %v745 = vpack.c.b16 %v545, %v541
    %v746 = vpack.c.b16 %v550, %v546
    %v747 = vpack.c.b16 %v551, %v547
    %v748 = vpack.c.b16 %v552, %v548
    %v749 = vpack.c.b16 %v553, %v549
    %v750 = vpack.c.b16 %v558, %v554
    %v751 = vpack.c.b16 %v559, %v555
    %v752 = vpack.c.b16 %v560, %v556
    %v753 = vpack.c.b16 %v561, %v557
    %v754 = vpack.c.b16 %v566, %v562
    %v755 = vpack.c.b16 %v567, %v563
    %v756 = vpack.c.b16 %v568, %v564
    %v757 = vpack.c.b16 %v569, %v565
    %v758 = vpack.c.b16 %v574, %v570
    %v759 = vpack.c.b16 %v575, %v571
    %v760 = vpack.c.b16 %v576, %v572
    %v761 = vpack.c.b16 %v577, %v573
    %v762 = vpack.c.b16 %v582, %v578
    %v763 = vpack.c.b16 %v583, %v579
    %v764 = vpack.c.b16 %v584, %v580
    %v765 = vpack.c.b16 %v585, %v581
    %v766 = vpack.c.b16 %v590, %v586
    %v767 = vpack.c.b16 %v591, %v587
    %v768 = vpack.c.b16 %v592, %v588
    %v769 = vpack.c.b16 %v593, %v589
    %v770 = vpack.c.b16 %v598, %v594
    %v771 = vpack.c.b16 %v599, %v595
    %v772 = vpack.c.b16 %v600, %v596
    %v773 = vpack.c.b16 %v601, %v597
    %v774 = vpack.c.b16 %v606, %v602
    %v775 = vpack.c.b16 %v607, %v603
    %v776 = vpack.c.b16 %v608, %v604
    %v777 = vpack.c.b16 %v609, %v605
    %v778 = vpack.c.b16 %v614, %v610
    %v779 = vpack.c.b16 %v615, %v611
    %v780 = vpack.c.b16 %v616, %v612
    %v781 = vpack.c.b16 %v617, %v613
    %v782 = vpack.c.b16 %v622, %v618
    %v783 = vpack.c.b16 %v623, %v619
    %v784 = vpack.c.b16 %v624, %v620
    %v785 = vpack.c.b16 %v625, %v621
    %v786 = vpack.c.b16 %v630, %v626
    %v787 = vpack.c.b16 %v631, %v627
    %v788 = vpack.c.b16 %v632, %v628
    %v789 = vpack.c.b16 %v633, %v629
    %v790 = vpack.c.b16 %v638, %v634
    %v791 = vpack.c.b16 %v639, %v635
    %v792 = vpack.c.b16 %v640, %v636
    %v793 = vpack.c.b16 %v641, %v637
    %v794 = vpack.c.b16 %v646, %v642
    %v795 = vpack.c.b16 %v647, %v643
    %v796 = vpack.c.b16 %v648, %v644
    %v797 = vpack.c.b16 %v649, %v645
    %v798 = vpack.c.b16 %v650, %v650
    %v799 = vpack.c.b16 %v651, %v651
    %v800 = vpack.c.b16 %v652, %v652
    %v801 = vpack.c.b16 %v653, %v653
    %v967 = vunpack.c.l.b16 %v162
    %v968 = vunpack.c.h.b16 %v162
    %v969 = vunpack.c.l.b16 %v163
    %v970 = vunpack.c.h.b16 %v163
    %v971 = vunpack.c.l.b16 %v164
    %v972 = vunpack.c.h.b16 %v164
    %v973 = vunpack.c.l.b16 %v165
    %v974 = vunpack.c.h.b16 %v165
    %v975 = vunpack.c.l.b16 %v166
    %v976 = vunpack.c.h.b16 %v166
    %v977 = vunpack.c.l.b16 %v167
    %v978 = vunpack.c.h.b16 %v167
    %v979 = vunpack.c.l.b16 %v168
    %v980 = vunpack.c.h.b16 %v168
    %v981 = vunpack.c.l.b16 %v169
    %v982 = vunpack.c.h.b16 %v169
    %v983 = vunpack.c.l.b16 %v170
    %v984 = vunpack.c.h.b16 %v170
    %v985 = vunpack.c.l.b16 %v171
    %v986 = vunpack.c.h.b16 %v171
    %v987 = vunpack.c.l.b16 %v172
    %v988 = vunpack.c.h.b16 %v172
    %v989 = vunpack.c.l.b16 %v173
    %v990 = vunpack.c.h.b16 %v173
    %v991 = vunpack.c.l.b16 %v174
    %v992 = vunpack.c.h.b16 %v174
    %v993 = vunpack.c.l.b16 %v175
    %v994 = vunpack.c.h.b16 %v175
    %v995 = vunpack.c.l.b16 %v176
    %v996 = vunpack.c.h.b16 %v176
    %v997 = vunpack.c.l.b16 %v177
    %v998 = vunpack.c.h.b16 %v177
    %v999 = vunpack.c.l.b16 %v178
    %v1000 = vunpack.c.h.b16 %v178
    %v1001 = vunpack.c.l.b16 %v179
    %v1002 = vunpack.c.h.b16 %v179
    %v1003 = vunpack.c.l.b16 %v180
    %v1004 = vunpack.c.h.b16 %v180
    %v1005 = vunpack.c.l.b16 %v181
    %v1006 = vunpack.c.h.b16 %v181
    %v1007 = vunpack.c.l.b16 %v182
    %v1008 = vunpack.c.h.b16 %v182
    %v1009 = vunpack.c.l.b16 %v183
    %v1010 = vunpack.c.h.b16 %v183
    %v1011 = vunpack.c.l.b16 %v184
    %v1012 = vunpack.c.h.b16 %v184
    %v1013 = vunpack.c.l.b16 %v185
    %v1014 = vunpack.c.h.b16 %v185
    %v1015 = vunpack.c.l.b16 %v186
    %v1016 = vunpack.c.h.b16 %v186
    %v1017 = vunpack.c.l.b16 %v187
    %v1018 = vunpack.c.h.b16 %v187
    %v1019 = vunpack.c.l.b16 %v188
    %v1020 = vunpack.c.h.b16 %v188
    %v1021 = vunpack.c.l.b16 %v189
    %v1022 = vunpack.c.h.b16 %v189
    %v1023 = vunpack.c.l.b16 %v190
    %v1024 = vunpack.c.h.b16 %v190
    %v1025 = vunpack.c.l.b16 %v191
    %v1026 = vunpack.c.h.b16 %v191
    %v1027 = vunpack.c.l.b16 %v192
    %v1028 = vunpack.c.h.b16 %v192
    %v1029 = vunpack.c.l.b16 %v193
    %v1030 = vunpack.c.h.b16 %v193
    %v1031 = vunpack.c.l.b16 %v194
    %v1032 = vunpack.c.h.b16 %v194
    %v1033 = vunpack.c.l.b16 %v195
    %v1034 = vunpack.c.h.b16 %v195
    %v1035 = vunpack.c.l.b16 %v196
    %v1036 = vunpack.c.h.b16 %v196
    %v1037 = vunpack.c.l.b16 %v197
    %v1038 = vunpack.c.h.b16 %v197
    %v1039 = vunpack.c.l.b16 %v198
    %v1040 = vunpack.c.h.b16 %v198
    %v1041 = vunpack.c.l.b16 %v199
    %v1042 = vunpack.c.h.b16 %v199
    %v1043 = vunpack.c.l.b16 %v200
    %v1044 = vunpack.c.h.b16 %v200
    %v1045 = vunpack.c.l.b16 %v201
    %v1046 = vunpack.c.h.b16 %v201
    %v1047 = vunpack.c.l.b16 %v202
    %v1048 = vunpack.c.h.b16 %v202
    %v1049 = vunpack.c.l.b16 %v203
    %v1050 = vunpack.c.h.b16 %v203
    %v1051 = vunpack.c.l.b16 %v204
    %v1052 = vunpack.c.h.b16 %v204
    %v1053 = vunpack.c.l.b16 %v205
    %v1054 = vunpack.c.h.b16 %v205
    %v1055 = vunpack.c.l.b16 %v206
    %v1056 = vunpack.c.h.b16 %v206
    %v1057 = vunpack.c.l.b16 %v207
    %v1058 = vunpack.c.h.b16 %v207
    %v1059 = vunpack.c.l.b16 %v208
    %v1060 = vunpack.c.h.b16 %v208
    %v1061 = vunpack.c.l.b16 %v209
    %v1062 = vunpack.c.h.b16 %v209
    %v1063 = vunpack.c.l.b16 %v210
    %v1064 = vunpack.c.h.b16 %v210
    %v1065 = vunpack.c.l.b16 %v211
    %v1066 = vunpack.c.h.b16 %v211
    %v1067 = vunpack.c.l.b16 %v212
    %v1068 = vunpack.c.h.b16 %v212
    %v1069 = vunpack.c.l.b16 %v213
    %v1070 = vunpack.c.h.b16 %v213
    %v1071 = vunpack.c.l.b16 %v214
    %v1072 = vunpack.c.h.b16 %v214
    %v1073 = vunpack.c.l.b16 %v215
    %v1074 = vunpack.c.h.b16 %v215
    %v1075 = vpack.c.b16 %v969, %v967
    %v1076 = vpack.c.b16 %v970, %v968
    %v1077 = vpack.c.b16 %v973, %v971
    %v1078 = vpack.c.b16 %v974, %v972
    %v1079 = vpack.c.b16 %v977, %v975
    %v1080 = vpack.c.b16 %v978, %v976
    %v1081 = vpack.c.b16 %v981, %v979
    %v1082 = vpack.c.b16 %v982, %v980
    %v1083 = vpack.c.b16 %v985, %v983
    %v1084 = vpack.c.b16 %v986, %v984
    %v1085 = vpack.c.b16 %v989, %v987
    %v1086 = vpack.c.b16 %v990, %v988
    %v1087 = vpack.c.b16 %v993, %v991
    %v1088 = vpack.c.b16 %v994, %v992
    %v1089 = vpack.c.b16 %v997, %v995
    %v1090 = vpack.c.b16 %v998, %v996
    %v1091 = vpack.c.b16 %v1001, %v999
    %v1092 = vpack.c.b16 %v1002, %v1000
    %v1093 = vpack.c.b16 %v1005, %v1003
    %v1094 = vpack.c.b16 %v1006, %v1004
    %v1095 = vpack.c.b16 %v1009, %v1007
    %v1096 = vpack.c.b16 %v1010, %v1008
    %v1097 = vpack.c.b16 %v1013, %v1011
    %v1098 = vpack.c.b16 %v1014, %v1012
    %v1099 = vpack.c.b16 %v1017, %v1015
    %v1100 = vpack.c.b16 %v1018, %v1016
    %v1101 = vpack.c.b16 %v1021, %v1019
    %v1102 = vpack.c.b16 %v1022, %v1020
    %v1103 = vpack.c.b16 %v1025, %v1023
    %v1104 = vpack.c.b16 %v1026, %v1024
    %v1105 = vpack.c.b16 %v1029, %v1027
    %v1106 = vpack.c.b16 %v1030, %v1028
    %v1107 = vpack.c.b16 %v1033, %v1031
    %v1108 = vpack.c.b16 %v1034, %v1032
    %v1109 = vpack.c.b16 %v1037, %v1035
    %v1110 = vpack.c.b16 %v1038, %v1036
    %v1111 = vpack.c.b16 %v1041, %v1039
    %v1112 = vpack.c.b16 %v1042, %v1040
    %v1113 = vpack.c.b16 %v1045, %v1043
    %v1114 = vpack.c.b16 %v1046, %v1044
    %v1115 = vpack.c.b16 %v1049, %v1047
    %v1116 = vpack.c.b16 %v1050, %v1048
    %v1117 = vpack.c.b16 %v1053, %v1051
    %v1118 = vpack.c.b16 %v1054, %v1052
    %v1119 = vpack.c.b16 %v1057, %v1055
    %v1120 = vpack.c.b16 %v1058, %v1056
    %v1121 = vpack.c.b16 %v1061, %v1059
    %v1122 = vpack.c.b16 %v1062, %v1060
    %v1123 = vpack.c.b16 %v1065, %v1063
    %v1124 = vpack.c.b16 %v1066, %v1064
    %v1125 = vpack.c.b16 %v1069, %v1067
    %v1126 = vpack.c.b16 %v1070, %v1068
    %v1127 = vpack.c.b16 %v1073, %v1071
    %v1128 = vpack.c.b16 %v1074, %v1072
    %vm1183 = vcmask 392192
    %v1185 = vsel %vm1183, %v657, 0
    %v1188 = vsel %vm1183, %v661, 0
    %v1191 = vsel %vm1183, %v665, 0
    %v1194 = vsel %vm1183, %v669, 0
    %v1197 = vsel %vm1183, %v673, 0
    %v1200 = vsel %vm1183, %v677, 0
    %v1203 = vsel %vm1183, %v681, 0
    %v1206 = vsel %vm1183, %v685, 0
    %v1209 = vsel %vm1183, %v689, 0
    %v1212 = vsel %vm1183, %v693, 0
    %v1215 = vsel %vm1183, %v697, 0
    %v1218 = vsel %vm1183, %v701, 0
    %v1221 = vsel %vm1183, %v705, 0
    %v1224 = vsel %vm1183, %v709, 0
    %v1227 = vsel %vm1183, %v713, 0
    %v1230 = vsel %vm1183, %v717, 0
    %v1233 = vsel %vm1183, %v721, 0
    %v1236 = vsel %vm1183, %v725, 0
    %v1239 = vsel %vm1183, %v729, 0
    %v1242 = vsel %vm1183, %v733, 0
    %v1245 = vsel %vm1183, %v737, 0
    %v1248 = vsel %vm1183, %v741, 0
    %v1251 = vsel %vm1183, %v745, 0
    %v1254 = vsel %vm1183, %v749, 0
    %v1257 = vsel %vm1183, %v753, 0
    %v1260 = vsel %vm1183, %v757, 0
    %v1263 = vsel %vm1183, %v761, 0
    %v1266 = vsel %vm1183, %v765, 0
    %v1269 = vsel %vm1183, %v769, 0
    %v1272 = vsel %vm1183, %v773, 0
    %v1275 = vsel %vm1183, %v777, 0
    %v1278 = vsel %vm1183, %v781, 0
    %v1281 = vsel %vm1183, %v785, 0
    %v1284 = vsel %vm1183, %v789, 0
    %v1287 = vsel %vm1183, %v793, 0
    %v1290 = vsel %vm1183, %v797, 0
    %v1293 = vsel %vm1183, %v801, 0
    %1295 = vmatpush.bf16.msra.mxu0 %v1089
    %1296 = vmatpush.bf16.msra.mxu0 %v1087
    %1297 = vmatpush.bf16.msra.mxu0 %v1085
    %1298 = vmatpush.bf16.msra.mxu0 %v1083
    %1299 = vmatpush.bf16.msra.mxu0 %v1081
    %1300 = vmatpush.bf16.msra.mxu0 %v1079
    %1301 = vmatpush.bf16.msra.mxu0 %v1077
    %1302 = vmatpush.bf16.msra.mxu0 %v1075
    %1303 = vmatmul.bf16.gmra.mxu0 %v654
    %v1304 = vpop.f32.mrf.mxu0
    %v1305 = vadd.f32 0.0, %v1304
    %v1306 = vpop.f32.mrf.mxu0
    %v1307 = vadd.f32 0.0, %v1306
    %1308 = vmatmul.bf16.gmra.mxu0 %v658
    %v1309 = vpop.f32.mrf.mxu0
    %v1310 = vadd.f32 0.0, %v1309
    %v1311 = vpop.f32.mrf.mxu0
    %v1312 = vadd.f32 0.0, %v1311
    %1313 = vmatmul.bf16.gmra.mxu0 %v662
    %v1314 = vpop.f32.mrf.mxu0
    %v1315 = vadd.f32 0.0, %v1314
    %v1316 = vpop.f32.mrf.mxu0
    %v1317 = vadd.f32 0.0, %v1316
    %1318 = vmatmul.bf16.gmra.mxu0 %v666
    %v1319 = vpop.f32.mrf.mxu0
    %v1320 = vadd.f32 0.0, %v1319
    %v1321 = vpop.f32.mrf.mxu0
    %v1322 = vadd.f32 0.0, %v1321
    %1323 = vmatmul.bf16.gmra.mxu0 %v670
    %v1324 = vpop.f32.mrf.mxu0
    %v1325 = vadd.f32 0.0, %v1324
    %v1326 = vpop.f32.mrf.mxu0
    %v1327 = vadd.f32 0.0, %v1326
    %1328 = vmatmul.bf16.gmra.mxu0 %v674
    %v1329 = vpop.f32.mrf.mxu0
    %v1330 = vadd.f32 0.0, %v1329
    %v1331 = vpop.f32.mrf.mxu0
    %v1332 = vadd.f32 0.0, %v1331
    %1333 = vmatmul.bf16.gmra.mxu0 %v678
    %v1334 = vpop.f32.mrf.mxu0
    %v1335 = vadd.f32 0.0, %v1334
    %v1336 = vpop.f32.mrf.mxu0
    %v1337 = vadd.f32 0.0, %v1336
    %1338 = vmatmul.bf16.gmra.mxu0 %v682
    %v1339 = vpop.f32.mrf.mxu0
    %v1340 = vadd.f32 0.0, %v1339
    %v1341 = vpop.f32.mrf.mxu0
    %v1342 = vadd.f32 0.0, %v1341
    %1343 = vmatmul.bf16.gmra.mxu0 %v686
    %v1344 = vpop.f32.mrf.mxu0
    %v1345 = vadd.f32 0.0, %v1344
    %v1346 = vpop.f32.mrf.mxu0
    %v1347 = vadd.f32 0.0, %v1346
    %1348 = vmatmul.bf16.gmra.mxu0 %v690
    %v1349 = vpop.f32.mrf.mxu0
    %v1350 = vadd.f32 0.0, %v1349
    %v1351 = vpop.f32.mrf.mxu0
    %v1352 = vadd.f32 0.0, %v1351
    %1353 = vmatmul.bf16.gmra.mxu0 %v694
    %v1354 = vpop.f32.mrf.mxu0
    %v1355 = vadd.f32 0.0, %v1354
    %v1356 = vpop.f32.mrf.mxu0
    %v1357 = vadd.f32 0.0, %v1356
    %1358 = vmatmul.bf16.gmra.mxu0 %v698
    %v1359 = vpop.f32.mrf.mxu0
    %v1360 = vadd.f32 0.0, %v1359
    %v1361 = vpop.f32.mrf.mxu0
    %v1362 = vadd.f32 0.0, %v1361
    %1363 = vmatmul.bf16.gmra.mxu0 %v702
    %v1364 = vpop.f32.mrf.mxu0
    %v1365 = vadd.f32 0.0, %v1364
    %v1366 = vpop.f32.mrf.mxu0
    %v1367 = vadd.f32 0.0, %v1366
    %1368 = vmatmul.bf16.gmra.mxu0 %v706
    %v1369 = vpop.f32.mrf.mxu0
    %v1370 = vadd.f32 0.0, %v1369
    %v1371 = vpop.f32.mrf.mxu0
    %v1372 = vadd.f32 0.0, %v1371
    %1373 = vmatmul.bf16.gmra.mxu0 %v710
    %v1374 = vpop.f32.mrf.mxu0
    %v1375 = vadd.f32 0.0, %v1374
    %v1376 = vpop.f32.mrf.mxu0
    %v1377 = vadd.f32 0.0, %v1376
    %1378 = vmatmul.bf16.gmra.mxu0 %v714
    %v1379 = vpop.f32.mrf.mxu0
    %v1380 = vadd.f32 0.0, %v1379
    %v1381 = vpop.f32.mrf.mxu0
    %v1382 = vadd.f32 0.0, %v1381
    %1383 = vmatmul.bf16.gmra.mxu0 %v718
    %v1384 = vpop.f32.mrf.mxu0
    %v1385 = vadd.f32 0.0, %v1384
    %v1386 = vpop.f32.mrf.mxu0
    %v1387 = vadd.f32 0.0, %v1386
    %1388 = vmatmul.bf16.gmra.mxu0 %v722
    %v1389 = vpop.f32.mrf.mxu0
    %v1390 = vadd.f32 0.0, %v1389
    %v1391 = vpop.f32.mrf.mxu0
    %v1392 = vadd.f32 0.0, %v1391
    %1393 = vmatmul.bf16.gmra.mxu0 %v726
    %v1394 = vpop.f32.mrf.mxu0
    %v1395 = vadd.f32 0.0, %v1394
    %v1396 = vpop.f32.mrf.mxu0
    %v1397 = vadd.f32 0.0, %v1396
    %1398 = vmatmul.bf16.gmra.mxu0 %v730
    %v1399 = vpop.f32.mrf.mxu0
    %v1400 = vadd.f32 0.0, %v1399
    %v1401 = vpop.f32.mrf.mxu0
    %v1402 = vadd.f32 0.0, %v1401
    %1403 = vmatmul.bf16.gmra.mxu0 %v734
    %v1404 = vpop.f32.mrf.mxu0
    %v1405 = vadd.f32 0.0, %v1404
    %v1406 = vpop.f32.mrf.mxu0
    %v1407 = vadd.f32 0.0, %v1406
    %1408 = vmatmul.bf16.gmra.mxu0 %v738
    %v1409 = vpop.f32.mrf.mxu0
    %v1410 = vadd.f32 0.0, %v1409
    %v1411 = vpop.f32.mrf.mxu0
    %v1412 = vadd.f32 0.0, %v1411
    %1413 = vmatmul.bf16.gmra.mxu0 %v742
    %v1414 = vpop.f32.mrf.mxu0
    %v1415 = vadd.f32 0.0, %v1414
    %v1416 = vpop.f32.mrf.mxu0
    %v1417 = vadd.f32 0.0, %v1416
    %1418 = vmatmul.bf16.gmra.mxu0 %v746
    %v1419 = vpop.f32.mrf.mxu0
    %v1420 = vadd.f32 0.0, %v1419
    %v1421 = vpop.f32.mrf.mxu0
    %v1422 = vadd.f32 0.0, %v1421
    %1423 = vmatmul.bf16.gmra.mxu0 %v750
    %v1424 = vpop.f32.mrf.mxu0
    %v1425 = vadd.f32 0.0, %v1424
    %v1426 = vpop.f32.mrf.mxu0
    %v1427 = vadd.f32 0.0, %v1426
    %1428 = vmatmul.bf16.gmra.mxu0 %v754
    %v1429 = vpop.f32.mrf.mxu0
    %v1430 = vadd.f32 0.0, %v1429
    %v1431 = vpop.f32.mrf.mxu0
    %v1432 = vadd.f32 0.0, %v1431
    %1433 = vmatmul.bf16.gmra.mxu0 %v758
    %v1434 = vpop.f32.mrf.mxu0
    %v1435 = vadd.f32 0.0, %v1434
    %v1436 = vpop.f32.mrf.mxu0
    %v1437 = vadd.f32 0.0, %v1436
    %1438 = vmatmul.bf16.gmra.mxu0 %v762
    %v1439 = vpop.f32.mrf.mxu0
    %v1440 = vadd.f32 0.0, %v1439
    %v1441 = vpop.f32.mrf.mxu0
    %v1442 = vadd.f32 0.0, %v1441
    %1443 = vmatmul.bf16.gmra.mxu0 %v766
    %v1444 = vpop.f32.mrf.mxu0
    %v1445 = vadd.f32 0.0, %v1444
    %v1446 = vpop.f32.mrf.mxu0
    %v1447 = vadd.f32 0.0, %v1446
    %1448 = vmatmul.bf16.gmra.mxu0 %v770
    %v1449 = vpop.f32.mrf.mxu0
    %v1450 = vadd.f32 0.0, %v1449
    %v1451 = vpop.f32.mrf.mxu0
    %v1452 = vadd.f32 0.0, %v1451
    %1453 = vmatmul.bf16.gmra.mxu0 %v774
    %v1454 = vpop.f32.mrf.mxu0
    %v1455 = vadd.f32 0.0, %v1454
    %v1456 = vpop.f32.mrf.mxu0
    %v1457 = vadd.f32 0.0, %v1456
    %1458 = vmatmul.bf16.gmra.mxu0 %v778
    %v1459 = vpop.f32.mrf.mxu0
    %v1460 = vadd.f32 0.0, %v1459
    %v1461 = vpop.f32.mrf.mxu0
    %v1462 = vadd.f32 0.0, %v1461
    %1463 = vmatmul.bf16.gmra.mxu0 %v782
    %v1464 = vpop.f32.mrf.mxu0
    %v1465 = vadd.f32 0.0, %v1464
    %v1466 = vpop.f32.mrf.mxu0
    %v1467 = vadd.f32 0.0, %v1466
    %1468 = vmatmul.bf16.gmra.mxu0 %v786
    %v1469 = vpop.f32.mrf.mxu0
    %v1470 = vadd.f32 0.0, %v1469
    %v1471 = vpop.f32.mrf.mxu0
    %v1472 = vadd.f32 0.0, %v1471
    %1473 = vmatmul.bf16.gmra.mxu0 %v790
    %v1474 = vpop.f32.mrf.mxu0
    %v1475 = vadd.f32 0.0, %v1474
    %v1476 = vpop.f32.mrf.mxu0
    %v1477 = vadd.f32 0.0, %v1476
    %1478 = vmatmul.bf16.gmra.mxu0 %v794
    %v1479 = vpop.f32.mrf.mxu0
    %v1480 = vadd.f32 0.0, %v1479
    %v1481 = vpop.f32.mrf.mxu0
    %v1482 = vadd.f32 0.0, %v1481
    %1483 = vmatmul.bf16.gmra.mxu0 %v798
    %v1484 = vpop.f32.mrf.mxu0
    %v1485 = vadd.f32 0.0, %v1484
    %v1486 = vpop.f32.mrf.mxu0
    %1487 = vdwg.mxu0
    %1488 = vmatpush.bf16.msra.mxu0 %v1105
    %1489 = vmatpush.bf16.msra.mxu0 %v1103
    %1490 = vmatpush.bf16.msra.mxu0 %v1101
    %1491 = vmatpush.bf16.msra.mxu0 %v1099
    %1492 = vmatpush.bf16.msra.mxu0 %v1097
    %1493 = vmatpush.bf16.msra.mxu0 %v1095
    %1494 = vmatpush.bf16.msra.mxu0 %v1093
    %1495 = vmatpush.bf16.msra.mxu0 %v1091
    %1496 = vmatmul.bf16.gmra.mxu0 %v655
    %v1497 = vpop.f32.mrf.mxu0
    %v1498 = vadd.f32 %v1305, %v1497
    %v1499 = vpop.f32.mrf.mxu0
    %v1500 = vadd.f32 %v1307, %v1499
    %1501 = vmatmul.bf16.gmra.mxu0 %v659
    %v1502 = vpop.f32.mrf.mxu0
    %v1503 = vadd.f32 %v1310, %v1502
    %v1504 = vpop.f32.mrf.mxu0
    %v1505 = vadd.f32 %v1312, %v1504
    %1506 = vmatmul.bf16.gmra.mxu0 %v663
    %v1507 = vpop.f32.mrf.mxu0
    %v1508 = vadd.f32 %v1315, %v1507
    %v1509 = vpop.f32.mrf.mxu0
    %v1510 = vadd.f32 %v1317, %v1509
    %1511 = vmatmul.bf16.gmra.mxu0 %v667
    %v1512 = vpop.f32.mrf.mxu0
    %v1513 = vadd.f32 %v1320, %v1512
    %v1514 = vpop.f32.mrf.mxu0
    %v1515 = vadd.f32 %v1322, %v1514
    %1516 = vmatmul.bf16.gmra.mxu0 %v671
    %v1517 = vpop.f32.mrf.mxu0
    %v1518 = vadd.f32 %v1325, %v1517
    %v1519 = vpop.f32.mrf.mxu0
    %v1520 = vadd.f32 %v1327, %v1519
    %1521 = vmatmul.bf16.gmra.mxu0 %v675
    %v1522 = vpop.f32.mrf.mxu0
    %v1523 = vadd.f32 %v1330, %v1522
    %v1524 = vpop.f32.mrf.mxu0
    %v1525 = vadd.f32 %v1332, %v1524
    %1526 = vmatmul.bf16.gmra.mxu0 %v679
    %v1527 = vpop.f32.mrf.mxu0
    %v1528 = vadd.f32 %v1335, %v1527
    %v1529 = vpop.f32.mrf.mxu0
    %v1530 = vadd.f32 %v1337, %v1529
    %1531 = vmatmul.bf16.gmra.mxu0 %v683
    %v1532 = vpop.f32.mrf.mxu0
    %v1533 = vadd.f32 %v1340, %v1532
    %v1534 = vpop.f32.mrf.mxu0
    %v1535 = vadd.f32 %v1342, %v1534
    %1536 = vmatmul.bf16.gmra.mxu0 %v687
    %v1537 = vpop.f32.mrf.mxu0
    %v1538 = vadd.f32 %v1345, %v1537
    %v1539 = vpop.f32.mrf.mxu0
    %v1540 = vadd.f32 %v1347, %v1539
    %1541 = vmatmul.bf16.gmra.mxu0 %v691
    %v1542 = vpop.f32.mrf.mxu0
    %v1543 = vadd.f32 %v1350, %v1542
    %v1544 = vpop.f32.mrf.mxu0
    %v1545 = vadd.f32 %v1352, %v1544
    %1546 = vmatmul.bf16.gmra.mxu0 %v695
    %v1547 = vpop.f32.mrf.mxu0
    %v1548 = vadd.f32 %v1355, %v1547
    %v1549 = vpop.f32.mrf.mxu0
    %v1550 = vadd.f32 %v1357, %v1549
    %1551 = vmatmul.bf16.gmra.mxu0 %v699
    %v1552 = vpop.f32.mrf.mxu0
    %v1553 = vadd.f32 %v1360, %v1552
    %v1554 = vpop.f32.mrf.mxu0
    %v1555 = vadd.f32 %v1362, %v1554
    %1556 = vmatmul.bf16.gmra.mxu0 %v703
    %v1557 = vpop.f32.mrf.mxu0
    %v1558 = vadd.f32 %v1365, %v1557
    %v1559 = vpop.f32.mrf.mxu0
    %v1560 = vadd.f32 %v1367, %v1559
    %1561 = vmatmul.bf16.gmra.mxu0 %v707
    %v1562 = vpop.f32.mrf.mxu0
    %v1563 = vadd.f32 %v1370, %v1562
    %v1564 = vpop.f32.mrf.mxu0
    %v1565 = vadd.f32 %v1372, %v1564
    %1566 = vmatmul.bf16.gmra.mxu0 %v711
    %v1567 = vpop.f32.mrf.mxu0
    %v1568 = vadd.f32 %v1375, %v1567
    %v1569 = vpop.f32.mrf.mxu0
    %v1570 = vadd.f32 %v1377, %v1569
    %1571 = vmatmul.bf16.gmra.mxu0 %v715
    %v1572 = vpop.f32.mrf.mxu0
    %v1573 = vadd.f32 %v1380, %v1572
    %v1574 = vpop.f32.mrf.mxu0
    %v1575 = vadd.f32 %v1382, %v1574
    %1576 = vmatmul.bf16.gmra.mxu0 %v719
    %v1577 = vpop.f32.mrf.mxu0
    %v1578 = vadd.f32 %v1385, %v1577
    %v1579 = vpop.f32.mrf.mxu0
    %v1580 = vadd.f32 %v1387, %v1579
    %1581 = vmatmul.bf16.gmra.mxu0 %v723
    %v1582 = vpop.f32.mrf.mxu0
    %v1583 = vadd.f32 %v1390, %v1582
    %v1584 = vpop.f32.mrf.mxu0
    %v1585 = vadd.f32 %v1392, %v1584
    %1586 = vmatmul.bf16.gmra.mxu0 %v727
    %v1587 = vpop.f32.mrf.mxu0
    %v1588 = vadd.f32 %v1395, %v1587
    %v1589 = vpop.f32.mrf.mxu0
    %v1590 = vadd.f32 %v1397, %v1589
    %1591 = vmatmul.bf16.gmra.mxu0 %v731
    %v1592 = vpop.f32.mrf.mxu0
    %v1593 = vadd.f32 %v1400, %v1592
    %v1594 = vpop.f32.mrf.mxu0
    %v1595 = vadd.f32 %v1402, %v1594
    %1596 = vmatmul.bf16.gmra.mxu0 %v735
    %v1597 = vpop.f32.mrf.mxu0
    %v1598 = vadd.f32 %v1405, %v1597
    %v1599 = vpop.f32.mrf.mxu0
    %v1600 = vadd.f32 %v1407, %v1599
    %1601 = vmatmul.bf16.gmra.mxu0 %v739
    %v1602 = vpop.f32.mrf.mxu0
    %v1603 = vadd.f32 %v1410, %v1602
    %v1604 = vpop.f32.mrf.mxu0
    %v1605 = vadd.f32 %v1412, %v1604
    %1606 = vmatmul.bf16.gmra.mxu0 %v743
    %v1607 = vpop.f32.mrf.mxu0
    %v1608 = vadd.f32 %v1415, %v1607
    %v1609 = vpop.f32.mrf.mxu0
    %v1610 = vadd.f32 %v1417, %v1609
    %1611 = vmatmul.bf16.gmra.mxu0 %v747
    %v1612 = vpop.f32.mrf.mxu0
    %v1613 = vadd.f32 %v1420, %v1612
    %v1614 = vpop.f32.mrf.mxu0
    %v1615 = vadd.f32 %v1422, %v1614
    %1616 = vmatmul.bf16.gmra.mxu0 %v751
    %v1617 = vpop.f32.mrf.mxu0
    %v1618 = vadd.f32 %v1425, %v1617
    %v1619 = vpop.f32.mrf.mxu0
    %v1620 = vadd.f32 %v1427, %v1619
    %1621 = vmatmul.bf16.gmra.mxu0 %v755
    %v1622 = vpop.f32.mrf.mxu0
    %v1623 = vadd.f32 %v1430, %v1622
    %v1624 = vpop.f32.mrf.mxu0
    %v1625 = vadd.f32 %v1432, %v1624
    %1626 = vmatmul.bf16.gmra.mxu0 %v759
    %v1627 = vpop.f32.mrf.mxu0
    %v1628 = vadd.f32 %v1435, %v1627
    %v1629 = vpop.f32.mrf.mxu0
    %v1630 = vadd.f32 %v1437, %v1629
    %1631 = vmatmul.bf16.gmra.mxu0 %v763
    %v1632 = vpop.f32.mrf.mxu0
    %v1633 = vadd.f32 %v1440, %v1632
    %v1634 = vpop.f32.mrf.mxu0
    %v1635 = vadd.f32 %v1442, %v1634
    %1636 = vmatmul.bf16.gmra.mxu0 %v767
    %v1637 = vpop.f32.mrf.mxu0
    %v1638 = vadd.f32 %v1445, %v1637
    %v1639 = vpop.f32.mrf.mxu0
    %v1640 = vadd.f32 %v1447, %v1639
    %1641 = vmatmul.bf16.gmra.mxu0 %v771
    %v1642 = vpop.f32.mrf.mxu0
    %v1643 = vadd.f32 %v1450, %v1642
    %v1644 = vpop.f32.mrf.mxu0
    %v1645 = vadd.f32 %v1452, %v1644
    %1646 = vmatmul.bf16.gmra.mxu0 %v775
    %v1647 = vpop.f32.mrf.mxu0
    %v1648 = vadd.f32 %v1455, %v1647
    %v1649 = vpop.f32.mrf.mxu0
    %v1650 = vadd.f32 %v1457, %v1649
    %1651 = vmatmul.bf16.gmra.mxu0 %v779
    %v1652 = vpop.f32.mrf.mxu0
    %v1653 = vadd.f32 %v1460, %v1652
    %v1654 = vpop.f32.mrf.mxu0
    %v1655 = vadd.f32 %v1462, %v1654
    %1656 = vmatmul.bf16.gmra.mxu0 %v783
    %v1657 = vpop.f32.mrf.mxu0
    %v1658 = vadd.f32 %v1465, %v1657
    %v1659 = vpop.f32.mrf.mxu0
    %v1660 = vadd.f32 %v1467, %v1659
    %1661 = vmatmul.bf16.gmra.mxu0 %v787
    %v1662 = vpop.f32.mrf.mxu0
    %v1663 = vadd.f32 %v1470, %v1662
    %v1664 = vpop.f32.mrf.mxu0
    %v1665 = vadd.f32 %v1472, %v1664
    %1666 = vmatmul.bf16.gmra.mxu0 %v791
    %v1667 = vpop.f32.mrf.mxu0
    %v1668 = vadd.f32 %v1475, %v1667
    %v1669 = vpop.f32.mrf.mxu0
    %v1670 = vadd.f32 %v1477, %v1669
    %1671 = vmatmul.bf16.gmra.mxu0 %v795
    %v1672 = vpop.f32.mrf.mxu0
    %v1673 = vadd.f32 %v1480, %v1672
    %v1674 = vpop.f32.mrf.mxu0
    %v1675 = vadd.f32 %v1482, %v1674
    %1676 = vmatmul.bf16.gmra.mxu0 %v799
    %v1677 = vpop.f32.mrf.mxu0
    %v1678 = vadd.f32 %v1485, %v1677
    %v1679 = vpop.f32.mrf.mxu0
    %1680 = vdwg.mxu0
    %1681 = vmatpush.bf16.msra.mxu0 %v1121
    %1682 = vmatpush.bf16.msra.mxu0 %v1119
    %1683 = vmatpush.bf16.msra.mxu0 %v1117
    %1684 = vmatpush.bf16.msra.mxu0 %v1115
    %1685 = vmatpush.bf16.msra.mxu0 %v1113
    %1686 = vmatpush.bf16.msra.mxu0 %v1111
    %1687 = vmatpush.bf16.msra.mxu0 %v1109
    %1688 = vmatpush.bf16.msra.mxu0 %v1107
    %1689 = vmatmul.bf16.gmra.mxu0 %v656
    %v1690 = vpop.f32.mrf.mxu0
    %v1691 = vadd.f32 %v1498, %v1690
    %v1692 = vpop.f32.mrf.mxu0
    %v1693 = vadd.f32 %v1500, %v1692
    %1694 = vmatmul.bf16.gmra.mxu0 %v660
    %v1695 = vpop.f32.mrf.mxu0
    %v1696 = vadd.f32 %v1503, %v1695
    %v1697 = vpop.f32.mrf.mxu0
    %v1698 = vadd.f32 %v1505, %v1697
    %1699 = vmatmul.bf16.gmra.mxu0 %v664
    %v1700 = vpop.f32.mrf.mxu0
    %v1701 = vadd.f32 %v1508, %v1700
    %v1702 = vpop.f32.mrf.mxu0
    %v1703 = vadd.f32 %v1510, %v1702
    %1704 = vmatmul.bf16.gmra.mxu0 %v668
    %v1705 = vpop.f32.mrf.mxu0
    %v1706 = vadd.f32 %v1513, %v1705
    %v1707 = vpop.f32.mrf.mxu0
    %v1708 = vadd.f32 %v1515, %v1707
    %1709 = vmatmul.bf16.gmra.mxu0 %v672
    %v1710 = vpop.f32.mrf.mxu0
    %v1711 = vadd.f32 %v1518, %v1710
    %v1712 = vpop.f32.mrf.mxu0
    %v1713 = vadd.f32 %v1520, %v1712
    %1714 = vmatmul.bf16.gmra.mxu0 %v676
    %v1715 = vpop.f32.mrf.mxu0
    %v1716 = vadd.f32 %v1523, %v1715
    %v1717 = vpop.f32.mrf.mxu0
    %v1718 = vadd.f32 %v1525, %v1717
    %1719 = vmatmul.bf16.gmra.mxu0 %v680
    %v1720 = vpop.f32.mrf.mxu0
    %v1721 = vadd.f32 %v1528, %v1720
    %v1722 = vpop.f32.mrf.mxu0
    %v1723 = vadd.f32 %v1530, %v1722
    %1724 = vmatmul.bf16.gmra.mxu0 %v684
    %v1725 = vpop.f32.mrf.mxu0
    %v1726 = vadd.f32 %v1533, %v1725
    %v1727 = vpop.f32.mrf.mxu0
    %v1728 = vadd.f32 %v1535, %v1727
    %1729 = vmatmul.bf16.gmra.mxu0 %v688
    %v1730 = vpop.f32.mrf.mxu0
    %v1731 = vadd.f32 %v1538, %v1730
    %v1732 = vpop.f32.mrf.mxu0
    %v1733 = vadd.f32 %v1540, %v1732
    %1734 = vmatmul.bf16.gmra.mxu0 %v692
    %v1735 = vpop.f32.mrf.mxu0
    %v1736 = vadd.f32 %v1543, %v1735
    %v1737 = vpop.f32.mrf.mxu0
    %v1738 = vadd.f32 %v1545, %v1737
    %1739 = vmatmul.bf16.gmra.mxu0 %v696
    %v1740 = vpop.f32.mrf.mxu0
    %v1741 = vadd.f32 %v1548, %v1740
    %v1742 = vpop.f32.mrf.mxu0
    %v1743 = vadd.f32 %v1550, %v1742
    %1744 = vmatmul.bf16.gmra.mxu0 %v700
    %v1745 = vpop.f32.mrf.mxu0
    %v1746 = vadd.f32 %v1553, %v1745
    %v1747 = vpop.f32.mrf.mxu0
    %v1748 = vadd.f32 %v1555, %v1747
    %1749 = vmatmul.bf16.gmra.mxu0 %v704
    %v1750 = vpop.f32.mrf.mxu0
    %v1751 = vadd.f32 %v1558, %v1750
    %v1752 = vpop.f32.mrf.mxu0
    %v1753 = vadd.f32 %v1560, %v1752
    %1754 = vmatmul.bf16.gmra.mxu0 %v708
    %v1755 = vpop.f32.mrf.mxu0
    %v1756 = vadd.f32 %v1563, %v1755
    %v1757 = vpop.f32.mrf.mxu0
    %v1758 = vadd.f32 %v1565, %v1757
    %1759 = vmatmul.bf16.gmra.mxu0 %v712
    %v1760 = vpop.f32.mrf.mxu0
    %v1761 = vadd.f32 %v1568, %v1760
    %v1762 = vpop.f32.mrf.mxu0
    %v1763 = vadd.f32 %v1570, %v1762
    %1764 = vmatmul.bf16.gmra.mxu0 %v716
    %v1765 = vpop.f32.mrf.mxu0
    %v1766 = vadd.f32 %v1573, %v1765
    %v1767 = vpop.f32.mrf.mxu0
    %v1768 = vadd.f32 %v1575, %v1767
    %1769 = vmatmul.bf16.gmra.mxu0 %v720
    %v1770 = vpop.f32.mrf.mxu0
    %v1771 = vadd.f32 %v1578, %v1770
    %v1772 = vpop.f32.mrf.mxu0
    %v1773 = vadd.f32 %v1580, %v1772
    %1774 = vmatmul.bf16.gmra.mxu0 %v724
    %v1775 = vpop.f32.mrf.mxu0
    %v1776 = vadd.f32 %v1583, %v1775
    %v1777 = vpop.f32.mrf.mxu0
    %v1778 = vadd.f32 %v1585, %v1777
    %1779 = vmatmul.bf16.gmra.mxu0 %v728
    %v1780 = vpop.f32.mrf.mxu0
    %v1781 = vadd.f32 %v1588, %v1780
    %v1782 = vpop.f32.mrf.mxu0
    %v1783 = vadd.f32 %v1590, %v1782
    %1784 = vmatmul.bf16.gmra.mxu0 %v732
    %v1785 = vpop.f32.mrf.mxu0
    %v1786 = vadd.f32 %v1593, %v1785
    %v1787 = vpop.f32.mrf.mxu0
    %v1788 = vadd.f32 %v1595, %v1787
    %1789 = vmatmul.bf16.gmra.mxu0 %v736
    %v1790 = vpop.f32.mrf.mxu0
    %v1791 = vadd.f32 %v1598, %v1790
    %v1792 = vpop.f32.mrf.mxu0
    %v1793 = vadd.f32 %v1600, %v1792
    %1794 = vmatmul.bf16.gmra.mxu0 %v740
    %v1795 = vpop.f32.mrf.mxu0
    %v1796 = vadd.f32 %v1603, %v1795
    %v1797 = vpop.f32.mrf.mxu0
    %v1798 = vadd.f32 %v1605, %v1797
    %1799 = vmatmul.bf16.gmra.mxu0 %v744
    %v1800 = vpop.f32.mrf.mxu0
    %v1801 = vadd.f32 %v1608, %v1800
    %v1802 = vpop.f32.mrf.mxu0
    %v1803 = vadd.f32 %v1610, %v1802
    %1804 = vmatmul.bf16.gmra.mxu0 %v748
    %v1805 = vpop.f32.mrf.mxu0
    %v1806 = vadd.f32 %v1613, %v1805
    %v1807 = vpop.f32.mrf.mxu0
    %v1808 = vadd.f32 %v1615, %v1807
    %1809 = vmatmul.bf16.gmra.mxu0 %v752
    %v1810 = vpop.f32.mrf.mxu0
    %v1811 = vadd.f32 %v1618, %v1810
    %v1812 = vpop.f32.mrf.mxu0
    %v1813 = vadd.f32 %v1620, %v1812
    %1814 = vmatmul.bf16.gmra.mxu0 %v756
    %v1815 = vpop.f32.mrf.mxu0
    %v1816 = vadd.f32 %v1623, %v1815
    %v1817 = vpop.f32.mrf.mxu0
    %v1818 = vadd.f32 %v1625, %v1817
    %1819 = vmatmul.bf16.gmra.mxu0 %v760
    %v1820 = vpop.f32.mrf.mxu0
    %v1821 = vadd.f32 %v1628, %v1820
    %v1822 = vpop.f32.mrf.mxu0
    %v1823 = vadd.f32 %v1630, %v1822
    %1824 = vmatmul.bf16.gmra.mxu0 %v764
    %v1825 = vpop.f32.mrf.mxu0
    %v1826 = vadd.f32 %v1633, %v1825
    %v1827 = vpop.f32.mrf.mxu0
    %v1828 = vadd.f32 %v1635, %v1827
    %1829 = vmatmul.bf16.gmra.mxu0 %v768
    %v1830 = vpop.f32.mrf.mxu0
    %v1831 = vadd.f32 %v1638, %v1830
    %v1832 = vpop.f32.mrf.mxu0
    %v1833 = vadd.f32 %v1640, %v1832
    %1834 = vmatmul.bf16.gmra.mxu0 %v772
    %v1835 = vpop.f32.mrf.mxu0
    %v1836 = vadd.f32 %v1643, %v1835
    %v1837 = vpop.f32.mrf.mxu0
    %v1838 = vadd.f32 %v1645, %v1837
    %1839 = vmatmul.bf16.gmra.mxu0 %v776
    %v1840 = vpop.f32.mrf.mxu0
    %v1841 = vadd.f32 %v1648, %v1840
    %v1842 = vpop.f32.mrf.mxu0
    %v1843 = vadd.f32 %v1650, %v1842
    %1844 = vmatmul.bf16.gmra.mxu0 %v780
    %v1845 = vpop.f32.mrf.mxu0
    %v1846 = vadd.f32 %v1653, %v1845
    %v1847 = vpop.f32.mrf.mxu0
    %v1848 = vadd.f32 %v1655, %v1847
    %1849 = vmatmul.bf16.gmra.mxu0 %v784
    %v1850 = vpop.f32.mrf.mxu0
    %v1851 = vadd.f32 %v1658, %v1850
    %v1852 = vpop.f32.mrf.mxu0
    %v1853 = vadd.f32 %v1660, %v1852
    %1854 = vmatmul.bf16.gmra.mxu0 %v788
    %v1855 = vpop.f32.mrf.mxu0
    %v1856 = vadd.f32 %v1663, %v1855
    %v1857 = vpop.f32.mrf.mxu0
    %v1858 = vadd.f32 %v1665, %v1857
    %1859 = vmatmul.bf16.gmra.mxu0 %v792
    %v1860 = vpop.f32.mrf.mxu0
    %v1861 = vadd.f32 %v1668, %v1860
    %v1862 = vpop.f32.mrf.mxu0
    %v1863 = vadd.f32 %v1670, %v1862
    %1864 = vmatmul.bf16.gmra.mxu0 %v796
    %v1865 = vpop.f32.mrf.mxu0
    %v1866 = vadd.f32 %v1673, %v1865
    %v1867 = vpop.f32.mrf.mxu0
    %v1868 = vadd.f32 %v1675, %v1867
    %1869 = vmatmul.bf16.gmra.mxu0 %v800
    %v1870 = vpop.f32.mrf.mxu0
    %v1871 = vadd.f32 %v1678, %v1870
    %v1872 = vpop.f32.mrf.mxu0
    %1873 = vdwg.mxu0
    %1874 = vmatpush.bf16.msra.mxu0 0
    %1875 = vmatpush.bf16.msra.mxu0 0
    %1876 = vmatpush.bf16.msra.mxu0 0
    %1877 = vmatpush.bf16.msra.mxu0 0
    %1878 = vmatpush.bf16.msra.mxu0 0
    %1879 = vmatpush.bf16.msra.mxu0 %v1127
    %1880 = vmatpush.bf16.msra.mxu0 %v1125
    %1881 = vmatpush.bf16.msra.mxu0 %v1123
    %1882 = vmatmul.bf16.gmra.mxu0 %v1185
    %v1883 = vpop.f32.mrf.mxu0
    %v1884 = vadd.f32 %v1691, %v1883
    %v1885 = vpop.f32.mrf.mxu0
    %v1886 = vadd.f32 %v1693, %v1885
    %1887 = vmatmul.bf16.gmra.mxu0 %v1188
    %v1888 = vpop.f32.mrf.mxu0
    %v1889 = vadd.f32 %v1696, %v1888
    %v1890 = vpop.f32.mrf.mxu0
    %v1891 = vadd.f32 %v1698, %v1890
    %1892 = vmatmul.bf16.gmra.mxu0 %v1191
    %v1893 = vpop.f32.mrf.mxu0
    %v1894 = vadd.f32 %v1701, %v1893
    %v1895 = vpop.f32.mrf.mxu0
    %v1896 = vadd.f32 %v1703, %v1895
    %1897 = vmatmul.bf16.gmra.mxu0 %v1194
    %v1898 = vpop.f32.mrf.mxu0
    %v1899 = vadd.f32 %v1706, %v1898
    %v1900 = vpop.f32.mrf.mxu0
    %v1901 = vadd.f32 %v1708, %v1900
    %1902 = vmatmul.bf16.gmra.mxu0 %v1197
    %v1903 = vpop.f32.mrf.mxu0
    %v1904 = vadd.f32 %v1711, %v1903
    %v1905 = vpop.f32.mrf.mxu0
    %v1906 = vadd.f32 %v1713, %v1905
    %1907 = vmatmul.bf16.gmra.mxu0 %v1200
    %v1908 = vpop.f32.mrf.mxu0
    %v1909 = vadd.f32 %v1716, %v1908
    %v1910 = vpop.f32.mrf.mxu0
    %v1911 = vadd.f32 %v1718, %v1910
    %1912 = vmatmul.bf16.gmra.mxu0 %v1203
    %v1913 = vpop.f32.mrf.mxu0
    %v1914 = vadd.f32 %v1721, %v1913
    %v1915 = vpop.f32.mrf.mxu0
    %v1916 = vadd.f32 %v1723, %v1915
    %1917 = vmatmul.bf16.gmra.mxu0 %v1206
    %v1918 = vpop.f32.mrf.mxu0
    %v1919 = vadd.f32 %v1726, %v1918
    %v1920 = vpop.f32.mrf.mxu0
    %v1921 = vadd.f32 %v1728, %v1920
    %1922 = vmatmul.bf16.gmra.mxu0 %v1209
    %v1923 = vpop.f32.mrf.mxu0
    %v1924 = vadd.f32 %v1731, %v1923
    %v1925 = vpop.f32.mrf.mxu0
    %v1926 = vadd.f32 %v1733, %v1925
    %1927 = vmatmul.bf16.gmra.mxu0 %v1212
    %v1928 = vpop.f32.mrf.mxu0
    %v1929 = vadd.f32 %v1736, %v1928
    %v1930 = vpop.f32.mrf.mxu0
    %v1931 = vadd.f32 %v1738, %v1930
    %1932 = vmatmul.bf16.gmra.mxu0 %v1215
    %v1933 = vpop.f32.mrf.mxu0
    %v1934 = vadd.f32 %v1741, %v1933
    %v1935 = vpop.f32.mrf.mxu0
    %v1936 = vadd.f32 %v1743, %v1935
    %1937 = vmatmul.bf16.gmra.mxu0 %v1218
    %v1938 = vpop.f32.mrf.mxu0
    %v1939 = vadd.f32 %v1746, %v1938
    %v1940 = vpop.f32.mrf.mxu0
    %v1941 = vadd.f32 %v1748, %v1940
    %1942 = vmatmul.bf16.gmra.mxu0 %v1221
    %v1943 = vpop.f32.mrf.mxu0
    %v1944 = vadd.f32 %v1751, %v1943
    %v1945 = vpop.f32.mrf.mxu0
    %v1946 = vadd.f32 %v1753, %v1945
    %1947 = vmatmul.bf16.gmra.mxu0 %v1224
    %v1948 = vpop.f32.mrf.mxu0
    %v1949 = vadd.f32 %v1756, %v1948
    %v1950 = vpop.f32.mrf.mxu0
    %v1951 = vadd.f32 %v1758, %v1950
    %1952 = vmatmul.bf16.gmra.mxu0 %v1227
    %v1953 = vpop.f32.mrf.mxu0
    %v1954 = vadd.f32 %v1761, %v1953
    %v1955 = vpop.f32.mrf.mxu0
    %v1956 = vadd.f32 %v1763, %v1955
    %1957 = vmatmul.bf16.gmra.mxu0 %v1230
    %v1958 = vpop.f32.mrf.mxu0
    %v1959 = vadd.f32 %v1766, %v1958
    %v1960 = vpop.f32.mrf.mxu0
    %v1961 = vadd.f32 %v1768, %v1960
    %1962 = vmatmul.bf16.gmra.mxu0 %v1233
    %v1963 = vpop.f32.mrf.mxu0
    %v1964 = vadd.f32 %v1771, %v1963
    %v1965 = vpop.f32.mrf.mxu0
    %v1966 = vadd.f32 %v1773, %v1965
    %1967 = vmatmul.bf16.gmra.mxu0 %v1236
    %v1968 = vpop.f32.mrf.mxu0
    %v1969 = vadd.f32 %v1776, %v1968
    %v1970 = vpop.f32.mrf.mxu0
    %v1971 = vadd.f32 %v1778, %v1970
    %1972 = vmatmul.bf16.gmra.mxu0 %v1239
    %v1973 = vpop.f32.mrf.mxu0
    %v1974 = vadd.f32 %v1781, %v1973
    %v1975 = vpop.f32.mrf.mxu0
    %v1976 = vadd.f32 %v1783, %v1975
    %1977 = vmatmul.bf16.gmra.mxu0 %v1242
    %v1978 = vpop.f32.mrf.mxu0
    %v1979 = vadd.f32 %v1786, %v1978
    %v1980 = vpop.f32.mrf.mxu0
    %v1981 = vadd.f32 %v1788, %v1980
    %1982 = vmatmul.bf16.gmra.mxu0 %v1245
    %v1983 = vpop.f32.mrf.mxu0
    %v1984 = vadd.f32 %v1791, %v1983
    %v1985 = vpop.f32.mrf.mxu0
    %v1986 = vadd.f32 %v1793, %v1985
    %1987 = vmatmul.bf16.gmra.mxu0 %v1248
    %v1988 = vpop.f32.mrf.mxu0
    %v1989 = vadd.f32 %v1796, %v1988
    %v1990 = vpop.f32.mrf.mxu0
    %v1991 = vadd.f32 %v1798, %v1990
    %1992 = vmatmul.bf16.gmra.mxu0 %v1251
    %v1993 = vpop.f32.mrf.mxu0
    %v1994 = vadd.f32 %v1801, %v1993
    %v1995 = vpop.f32.mrf.mxu0
    %v1996 = vadd.f32 %v1803, %v1995
    %1997 = vmatmul.bf16.gmra.mxu0 %v1254
    %v1998 = vpop.f32.mrf.mxu0
    %v1999 = vadd.f32 %v1806, %v1998
    %v2000 = vpop.f32.mrf.mxu0
    %v2001 = vadd.f32 %v1808, %v2000
    %2002 = vmatmul.bf16.gmra.mxu0 %v1257
    %v2003 = vpop.f32.mrf.mxu0
    %v2004 = vadd.f32 %v1811, %v2003
    %v2005 = vpop.f32.mrf.mxu0
    %v2006 = vadd.f32 %v1813, %v2005
    %2007 = vmatmul.bf16.gmra.mxu0 %v1260
    %v2008 = vpop.f32.mrf.mxu0
    %v2009 = vadd.f32 %v1816, %v2008
    %v2010 = vpop.f32.mrf.mxu0
    %v2011 = vadd.f32 %v1818, %v2010
    %2012 = vmatmul.bf16.gmra.mxu0 %v1263
    %v2013 = vpop.f32.mrf.mxu0
    %v2014 = vadd.f32 %v1821, %v2013
    %v2015 = vpop.f32.mrf.mxu0
    %v2016 = vadd.f32 %v1823, %v2015
    %2017 = vmatmul.bf16.gmra.mxu0 %v1266
    %v2018 = vpop.f32.mrf.mxu0
    %v2019 = vadd.f32 %v1826, %v2018
    %v2020 = vpop.f32.mrf.mxu0
    %v2021 = vadd.f32 %v1828, %v2020
    %2022 = vmatmul.bf16.gmra.mxu0 %v1269
    %v2023 = vpop.f32.mrf.mxu0
    %v2024 = vadd.f32 %v1831, %v2023
    %v2025 = vpop.f32.mrf.mxu0
    %v2026 = vadd.f32 %v1833, %v2025
    %2027 = vmatmul.bf16.gmra.mxu0 %v1272
    %v2028 = vpop.f32.mrf.mxu0
    %v2029 = vadd.f32 %v1836, %v2028
    %v2030 = vpop.f32.mrf.mxu0
    %v2031 = vadd.f32 %v1838, %v2030
    %2032 = vmatmul.bf16.gmra.mxu0 %v1275
    %v2033 = vpop.f32.mrf.mxu0
    %v2034 = vadd.f32 %v1841, %v2033
    %v2035 = vpop.f32.mrf.mxu0
    %v2036 = vadd.f32 %v1843, %v2035
    %2037 = vmatmul.bf16.gmra.mxu0 %v1278
    %v2038 = vpop.f32.mrf.mxu0
    %v2039 = vadd.f32 %v1846, %v2038
    %v2040 = vpop.f32.mrf.mxu0
    %v2041 = vadd.f32 %v1848, %v2040
    %2042 = vmatmul.bf16.gmra.mxu0 %v1281
    %v2043 = vpop.f32.mrf.mxu0
    %v2044 = vadd.f32 %v1851, %v2043
    %v2045 = vpop.f32.mrf.mxu0
    %v2046 = vadd.f32 %v1853, %v2045
    %2047 = vmatmul.bf16.gmra.mxu0 %v1284
    %v2048 = vpop.f32.mrf.mxu0
    %v2049 = vadd.f32 %v1856, %v2048
    %v2050 = vpop.f32.mrf.mxu0
    %v2051 = vadd.f32 %v1858, %v2050
    %2052 = vmatmul.bf16.gmra.mxu0 %v1287
    %v2053 = vpop.f32.mrf.mxu0
    %v2054 = vadd.f32 %v1861, %v2053
    %v2055 = vpop.f32.mrf.mxu0
    %v2056 = vadd.f32 %v1863, %v2055
    %2057 = vmatmul.bf16.gmra.mxu0 %v1290
    %v2058 = vpop.f32.mrf.mxu0
    %v2059 = vadd.f32 %v1866, %v2058
    %v2060 = vpop.f32.mrf.mxu0
    %v2061 = vadd.f32 %v1868, %v2060
    %2062 = vmatmul.bf16.gmra.mxu0 %v1293
    %v2063 = vpop.f32.mrf.mxu0
    %v2064 = vadd.f32 %v1871, %v2063
    %v2065 = vpop.f32.mrf.mxu0
    %2066 = vdwg.mxu0
    %2067 = vmatpush.bf16.msra.mxu0 %v1090
    %2068 = vmatpush.bf16.msra.mxu0 %v1088
    %2069 = vmatpush.bf16.msra.mxu0 %v1086
    %2070 = vmatpush.bf16.msra.mxu0 %v1084
    %2071 = vmatpush.bf16.msra.mxu0 %v1082
    %2072 = vmatpush.bf16.msra.mxu0 %v1080
    %2073 = vmatpush.bf16.msra.mxu0 %v1078
    %2074 = vmatpush.bf16.msra.mxu0 %v1076
    %2075 = vmatmul.bf16.gmra.mxu0 %v654
    %v2076 = vpop.f32.mrf.mxu0
    %v2077 = vadd.f32 0.0, %v2076
    %v2078 = vpop.f32.mrf.mxu0
    %v2079 = vadd.f32 0.0, %v2078
    %2080 = vmatmul.bf16.gmra.mxu0 %v658
    %v2081 = vpop.f32.mrf.mxu0
    %v2082 = vadd.f32 0.0, %v2081
    %v2083 = vpop.f32.mrf.mxu0
    %v2084 = vadd.f32 0.0, %v2083
    %2085 = vmatmul.bf16.gmra.mxu0 %v662
    %v2086 = vpop.f32.mrf.mxu0
    %v2087 = vadd.f32 0.0, %v2086
    %v2088 = vpop.f32.mrf.mxu0
    %v2089 = vadd.f32 0.0, %v2088
    %2090 = vmatmul.bf16.gmra.mxu0 %v666
    %v2091 = vpop.f32.mrf.mxu0
    %v2092 = vadd.f32 0.0, %v2091
    %v2093 = vpop.f32.mrf.mxu0
    %v2094 = vadd.f32 0.0, %v2093
    %2095 = vmatmul.bf16.gmra.mxu0 %v670
    %v2096 = vpop.f32.mrf.mxu0
    %v2097 = vadd.f32 0.0, %v2096
    %v2098 = vpop.f32.mrf.mxu0
    %v2099 = vadd.f32 0.0, %v2098
    %2100 = vmatmul.bf16.gmra.mxu0 %v674
    %v2101 = vpop.f32.mrf.mxu0
    %v2102 = vadd.f32 0.0, %v2101
    %v2103 = vpop.f32.mrf.mxu0
    %v2104 = vadd.f32 0.0, %v2103
    %2105 = vmatmul.bf16.gmra.mxu0 %v678
    %v2106 = vpop.f32.mrf.mxu0
    %v2107 = vadd.f32 0.0, %v2106
    %v2108 = vpop.f32.mrf.mxu0
    %v2109 = vadd.f32 0.0, %v2108
    %2110 = vmatmul.bf16.gmra.mxu0 %v682
    %v2111 = vpop.f32.mrf.mxu0
    %v2112 = vadd.f32 0.0, %v2111
    %v2113 = vpop.f32.mrf.mxu0
    %v2114 = vadd.f32 0.0, %v2113
    %2115 = vmatmul.bf16.gmra.mxu0 %v686
    %v2116 = vpop.f32.mrf.mxu0
    %v2117 = vadd.f32 0.0, %v2116
    %v2118 = vpop.f32.mrf.mxu0
    %v2119 = vadd.f32 0.0, %v2118
    %2120 = vmatmul.bf16.gmra.mxu0 %v690
    %v2121 = vpop.f32.mrf.mxu0
    %v2122 = vadd.f32 0.0, %v2121
    %v2123 = vpop.f32.mrf.mxu0
    %v2124 = vadd.f32 0.0, %v2123
    %2125 = vmatmul.bf16.gmra.mxu0 %v694
    %v2126 = vpop.f32.mrf.mxu0
    %v2127 = vadd.f32 0.0, %v2126
    %v2128 = vpop.f32.mrf.mxu0
    %v2129 = vadd.f32 0.0, %v2128
    %2130 = vmatmul.bf16.gmra.mxu0 %v698
    %v2131 = vpop.f32.mrf.mxu0
    %v2132 = vadd.f32 0.0, %v2131
    %v2133 = vpop.f32.mrf.mxu0
    %v2134 = vadd.f32 0.0, %v2133
    %2135 = vmatmul.bf16.gmra.mxu0 %v702
    %v2136 = vpop.f32.mrf.mxu0
    %v2137 = vadd.f32 0.0, %v2136
    %v2138 = vpop.f32.mrf.mxu0
    %v2139 = vadd.f32 0.0, %v2138
    %2140 = vmatmul.bf16.gmra.mxu0 %v706
    %v2141 = vpop.f32.mrf.mxu0
    %v2142 = vadd.f32 0.0, %v2141
    %v2143 = vpop.f32.mrf.mxu0
    %v2144 = vadd.f32 0.0, %v2143
    %2145 = vmatmul.bf16.gmra.mxu0 %v710
    %v2146 = vpop.f32.mrf.mxu0
    %v2147 = vadd.f32 0.0, %v2146
    %v2148 = vpop.f32.mrf.mxu0
    %v2149 = vadd.f32 0.0, %v2148
    %2150 = vmatmul.bf16.gmra.mxu0 %v714
    %v2151 = vpop.f32.mrf.mxu0
    %v2152 = vadd.f32 0.0, %v2151
    %v2153 = vpop.f32.mrf.mxu0
    %v2154 = vadd.f32 0.0, %v2153
    %2155 = vmatmul.bf16.gmra.mxu0 %v718
    %v2156 = vpop.f32.mrf.mxu0
    %v2157 = vadd.f32 0.0, %v2156
    %v2158 = vpop.f32.mrf.mxu0
    %v2159 = vadd.f32 0.0, %v2158
    %2160 = vmatmul.bf16.gmra.mxu0 %v722
    %v2161 = vpop.f32.mrf.mxu0
    %v2162 = vadd.f32 0.0, %v2161
    %v2163 = vpop.f32.mrf.mxu0
    %v2164 = vadd.f32 0.0, %v2163
    %2165 = vmatmul.bf16.gmra.mxu0 %v726
    %v2166 = vpop.f32.mrf.mxu0
    %v2167 = vadd.f32 0.0, %v2166
    %v2168 = vpop.f32.mrf.mxu0
    %v2169 = vadd.f32 0.0, %v2168
    %2170 = vmatmul.bf16.gmra.mxu0 %v730
    %v2171 = vpop.f32.mrf.mxu0
    %v2172 = vadd.f32 0.0, %v2171
    %v2173 = vpop.f32.mrf.mxu0
    %v2174 = vadd.f32 0.0, %v2173
    %2175 = vmatmul.bf16.gmra.mxu0 %v734
    %v2176 = vpop.f32.mrf.mxu0
    %v2177 = vadd.f32 0.0, %v2176
    %v2178 = vpop.f32.mrf.mxu0
    %v2179 = vadd.f32 0.0, %v2178
    %2180 = vmatmul.bf16.gmra.mxu0 %v738
    %v2181 = vpop.f32.mrf.mxu0
    %v2182 = vadd.f32 0.0, %v2181
    %v2183 = vpop.f32.mrf.mxu0
    %v2184 = vadd.f32 0.0, %v2183
    %2185 = vmatmul.bf16.gmra.mxu0 %v742
    %v2186 = vpop.f32.mrf.mxu0
    %v2187 = vadd.f32 0.0, %v2186
    %v2188 = vpop.f32.mrf.mxu0
    %v2189 = vadd.f32 0.0, %v2188
    %2190 = vmatmul.bf16.gmra.mxu0 %v746
    %v2191 = vpop.f32.mrf.mxu0
    %v2192 = vadd.f32 0.0, %v2191
    %v2193 = vpop.f32.mrf.mxu0
    %v2194 = vadd.f32 0.0, %v2193
    %2195 = vmatmul.bf16.gmra.mxu0 %v750
    %v2196 = vpop.f32.mrf.mxu0
    %v2197 = vadd.f32 0.0, %v2196
    %v2198 = vpop.f32.mrf.mxu0
    %v2199 = vadd.f32 0.0, %v2198
    %2200 = vmatmul.bf16.gmra.mxu0 %v754
    %v2201 = vpop.f32.mrf.mxu0
    %v2202 = vadd.f32 0.0, %v2201
    %v2203 = vpop.f32.mrf.mxu0
    %v2204 = vadd.f32 0.0, %v2203
    %2205 = vmatmul.bf16.gmra.mxu0 %v758
    %v2206 = vpop.f32.mrf.mxu0
    %v2207 = vadd.f32 0.0, %v2206
    %v2208 = vpop.f32.mrf.mxu0
    %v2209 = vadd.f32 0.0, %v2208
    %2210 = vmatmul.bf16.gmra.mxu0 %v762
    %v2211 = vpop.f32.mrf.mxu0
    %v2212 = vadd.f32 0.0, %v2211
    %v2213 = vpop.f32.mrf.mxu0
    %v2214 = vadd.f32 0.0, %v2213
    %2215 = vmatmul.bf16.gmra.mxu0 %v766
    %v2216 = vpop.f32.mrf.mxu0
    %v2217 = vadd.f32 0.0, %v2216
    %v2218 = vpop.f32.mrf.mxu0
    %v2219 = vadd.f32 0.0, %v2218
    %2220 = vmatmul.bf16.gmra.mxu0 %v770
    %v2221 = vpop.f32.mrf.mxu0
    %v2222 = vadd.f32 0.0, %v2221
    %v2223 = vpop.f32.mrf.mxu0
    %v2224 = vadd.f32 0.0, %v2223
    %2225 = vmatmul.bf16.gmra.mxu0 %v774
    %v2226 = vpop.f32.mrf.mxu0
    %v2227 = vadd.f32 0.0, %v2226
    %v2228 = vpop.f32.mrf.mxu0
    %v2229 = vadd.f32 0.0, %v2228
    %2230 = vmatmul.bf16.gmra.mxu0 %v778
    %v2231 = vpop.f32.mrf.mxu0
    %v2232 = vadd.f32 0.0, %v2231
    %v2233 = vpop.f32.mrf.mxu0
    %v2234 = vadd.f32 0.0, %v2233
    %2235 = vmatmul.bf16.gmra.mxu0 %v782
    %v2236 = vpop.f32.mrf.mxu0
    %v2237 = vadd.f32 0.0, %v2236
    %v2238 = vpop.f32.mrf.mxu0
    %v2239 = vadd.f32 0.0, %v2238
    %2240 = vmatmul.bf16.gmra.mxu0 %v786
    %v2241 = vpop.f32.mrf.mxu0
    %v2242 = vadd.f32 0.0, %v2241
    %v2243 = vpop.f32.mrf.mxu0
    %v2244 = vadd.f32 0.0, %v2243
    %2245 = vmatmul.bf16.gmra.mxu0 %v790
    %v2246 = vpop.f32.mrf.mxu0
    %v2247 = vadd.f32 0.0, %v2246
    %v2248 = vpop.f32.mrf.mxu0
    %v2249 = vadd.f32 0.0, %v2248
    %2250 = vmatmul.bf16.gmra.mxu0 %v794
    %v2251 = vpop.f32.mrf.mxu0
    %v2252 = vadd.f32 0.0, %v2251
    %v2253 = vpop.f32.mrf.mxu0
    %v2254 = vadd.f32 0.0, %v2253
    %2255 = vmatmul.bf16.gmra.mxu0 %v798
    %v2256 = vpop.f32.mrf.mxu0
    %v2257 = vadd.f32 0.0, %v2256
    %v2258 = vpop.f32.mrf.mxu0
    %2259 = vdwg.mxu0
    %2260 = vmatpush.bf16.msra.mxu0 %v1106
    %2261 = vmatpush.bf16.msra.mxu0 %v1104
    %2262 = vmatpush.bf16.msra.mxu0 %v1102
    %2263 = vmatpush.bf16.msra.mxu0 %v1100
    %2264 = vmatpush.bf16.msra.mxu0 %v1098
    %2265 = vmatpush.bf16.msra.mxu0 %v1096
    %2266 = vmatpush.bf16.msra.mxu0 %v1094
    %2267 = vmatpush.bf16.msra.mxu0 %v1092
    %2268 = vmatmul.bf16.gmra.mxu0 %v655
    %v2269 = vpop.f32.mrf.mxu0
    %v2270 = vadd.f32 %v2077, %v2269
    %v2271 = vpop.f32.mrf.mxu0
    %v2272 = vadd.f32 %v2079, %v2271
    %2273 = vmatmul.bf16.gmra.mxu0 %v659
    %v2274 = vpop.f32.mrf.mxu0
    %v2275 = vadd.f32 %v2082, %v2274
    %v2276 = vpop.f32.mrf.mxu0
    %v2277 = vadd.f32 %v2084, %v2276
    %2278 = vmatmul.bf16.gmra.mxu0 %v663
    %v2279 = vpop.f32.mrf.mxu0
    %v2280 = vadd.f32 %v2087, %v2279
    %v2281 = vpop.f32.mrf.mxu0
    %v2282 = vadd.f32 %v2089, %v2281
    %2283 = vmatmul.bf16.gmra.mxu0 %v667
    %v2284 = vpop.f32.mrf.mxu0
    %v2285 = vadd.f32 %v2092, %v2284
    %v2286 = vpop.f32.mrf.mxu0
    %v2287 = vadd.f32 %v2094, %v2286
    %2288 = vmatmul.bf16.gmra.mxu0 %v671
    %v2289 = vpop.f32.mrf.mxu0
    %v2290 = vadd.f32 %v2097, %v2289
    %v2291 = vpop.f32.mrf.mxu0
    %v2292 = vadd.f32 %v2099, %v2291
    %2293 = vmatmul.bf16.gmra.mxu0 %v675
    %v2294 = vpop.f32.mrf.mxu0
    %v2295 = vadd.f32 %v2102, %v2294
    %v2296 = vpop.f32.mrf.mxu0
    %v2297 = vadd.f32 %v2104, %v2296
    %2298 = vmatmul.bf16.gmra.mxu0 %v679
    %v2299 = vpop.f32.mrf.mxu0
    %v2300 = vadd.f32 %v2107, %v2299
    %v2301 = vpop.f32.mrf.mxu0
    %v2302 = vadd.f32 %v2109, %v2301
    %2303 = vmatmul.bf16.gmra.mxu0 %v683
    %v2304 = vpop.f32.mrf.mxu0
    %v2305 = vadd.f32 %v2112, %v2304
    %v2306 = vpop.f32.mrf.mxu0
    %v2307 = vadd.f32 %v2114, %v2306
    %2308 = vmatmul.bf16.gmra.mxu0 %v687
    %v2309 = vpop.f32.mrf.mxu0
    %v2310 = vadd.f32 %v2117, %v2309
    %v2311 = vpop.f32.mrf.mxu0
    %v2312 = vadd.f32 %v2119, %v2311
    %2313 = vmatmul.bf16.gmra.mxu0 %v691
    %v2314 = vpop.f32.mrf.mxu0
    %v2315 = vadd.f32 %v2122, %v2314
    %v2316 = vpop.f32.mrf.mxu0
    %v2317 = vadd.f32 %v2124, %v2316
    %2318 = vmatmul.bf16.gmra.mxu0 %v695
    %v2319 = vpop.f32.mrf.mxu0
    %v2320 = vadd.f32 %v2127, %v2319
    %v2321 = vpop.f32.mrf.mxu0
    %v2322 = vadd.f32 %v2129, %v2321
    %2323 = vmatmul.bf16.gmra.mxu0 %v699
    %v2324 = vpop.f32.mrf.mxu0
    %v2325 = vadd.f32 %v2132, %v2324
    %v2326 = vpop.f32.mrf.mxu0
    %v2327 = vadd.f32 %v2134, %v2326
    %2328 = vmatmul.bf16.gmra.mxu0 %v703
    %v2329 = vpop.f32.mrf.mxu0
    %v2330 = vadd.f32 %v2137, %v2329
    %v2331 = vpop.f32.mrf.mxu0
    %v2332 = vadd.f32 %v2139, %v2331
    %2333 = vmatmul.bf16.gmra.mxu0 %v707
    %v2334 = vpop.f32.mrf.mxu0
    %v2335 = vadd.f32 %v2142, %v2334
    %v2336 = vpop.f32.mrf.mxu0
    %v2337 = vadd.f32 %v2144, %v2336
    %2338 = vmatmul.bf16.gmra.mxu0 %v711
    %v2339 = vpop.f32.mrf.mxu0
    %v2340 = vadd.f32 %v2147, %v2339
    %v2341 = vpop.f32.mrf.mxu0
    %v2342 = vadd.f32 %v2149, %v2341
    %2343 = vmatmul.bf16.gmra.mxu0 %v715
    %v2344 = vpop.f32.mrf.mxu0
    %v2345 = vadd.f32 %v2152, %v2344
    %v2346 = vpop.f32.mrf.mxu0
    %v2347 = vadd.f32 %v2154, %v2346
    %2348 = vmatmul.bf16.gmra.mxu0 %v719
    %v2349 = vpop.f32.mrf.mxu0
    %v2350 = vadd.f32 %v2157, %v2349
    %v2351 = vpop.f32.mrf.mxu0
    %v2352 = vadd.f32 %v2159, %v2351
    %2353 = vmatmul.bf16.gmra.mxu0 %v723
    %v2354 = vpop.f32.mrf.mxu0
    %v2355 = vadd.f32 %v2162, %v2354
    %v2356 = vpop.f32.mrf.mxu0
    %v2357 = vadd.f32 %v2164, %v2356
    %2358 = vmatmul.bf16.gmra.mxu0 %v727
    %v2359 = vpop.f32.mrf.mxu0
    %v2360 = vadd.f32 %v2167, %v2359
    %v2361 = vpop.f32.mrf.mxu0
    %v2362 = vadd.f32 %v2169, %v2361
    %2363 = vmatmul.bf16.gmra.mxu0 %v731
    %v2364 = vpop.f32.mrf.mxu0
    %v2365 = vadd.f32 %v2172, %v2364
    %v2366 = vpop.f32.mrf.mxu0
    %v2367 = vadd.f32 %v2174, %v2366
    %2368 = vmatmul.bf16.gmra.mxu0 %v735
    %v2369 = vpop.f32.mrf.mxu0
    %v2370 = vadd.f32 %v2177, %v2369
    %v2371 = vpop.f32.mrf.mxu0
    %v2372 = vadd.f32 %v2179, %v2371
    %2373 = vmatmul.bf16.gmra.mxu0 %v739
    %v2374 = vpop.f32.mrf.mxu0
    %v2375 = vadd.f32 %v2182, %v2374
    %v2376 = vpop.f32.mrf.mxu0
    %v2377 = vadd.f32 %v2184, %v2376
    %2378 = vmatmul.bf16.gmra.mxu0 %v743
    %v2379 = vpop.f32.mrf.mxu0
    %v2380 = vadd.f32 %v2187, %v2379
    %v2381 = vpop.f32.mrf.mxu0
    %v2382 = vadd.f32 %v2189, %v2381
    %2383 = vmatmul.bf16.gmra.mxu0 %v747
    %v2384 = vpop.f32.mrf.mxu0
    %v2385 = vadd.f32 %v2192, %v2384
    %v2386 = vpop.f32.mrf.mxu0
    %v2387 = vadd.f32 %v2194, %v2386
    %2388 = vmatmul.bf16.gmra.mxu0 %v751
    %v2389 = vpop.f32.mrf.mxu0
    %v2390 = vadd.f32 %v2197, %v2389
    %v2391 = vpop.f32.mrf.mxu0
    %v2392 = vadd.f32 %v2199, %v2391
    %2393 = vmatmul.bf16.gmra.mxu0 %v755
    %v2394 = vpop.f32.mrf.mxu0
    %v2395 = vadd.f32 %v2202, %v2394
    %v2396 = vpop.f32.mrf.mxu0
    %v2397 = vadd.f32 %v2204, %v2396
    %2398 = vmatmul.bf16.gmra.mxu0 %v759
    %v2399 = vpop.f32.mrf.mxu0
    %v2400 = vadd.f32 %v2207, %v2399
    %v2401 = vpop.f32.mrf.mxu0
    %v2402 = vadd.f32 %v2209, %v2401
    %2403 = vmatmul.bf16.gmra.mxu0 %v763
    %v2404 = vpop.f32.mrf.mxu0
    %v2405 = vadd.f32 %v2212, %v2404
    %v2406 = vpop.f32.mrf.mxu0
    %v2407 = vadd.f32 %v2214, %v2406
    %2408 = vmatmul.bf16.gmra.mxu0 %v767
    %v2409 = vpop.f32.mrf.mxu0
    %v2410 = vadd.f32 %v2217, %v2409
    %v2411 = vpop.f32.mrf.mxu0
    %v2412 = vadd.f32 %v2219, %v2411
    %2413 = vmatmul.bf16.gmra.mxu0 %v771
    %v2414 = vpop.f32.mrf.mxu0
    %v2415 = vadd.f32 %v2222, %v2414
    %v2416 = vpop.f32.mrf.mxu0
    %v2417 = vadd.f32 %v2224, %v2416
    %2418 = vmatmul.bf16.gmra.mxu0 %v775
    %v2419 = vpop.f32.mrf.mxu0
    %v2420 = vadd.f32 %v2227, %v2419
    %v2421 = vpop.f32.mrf.mxu0
    %v2422 = vadd.f32 %v2229, %v2421
    %2423 = vmatmul.bf16.gmra.mxu0 %v779
    %v2424 = vpop.f32.mrf.mxu0
    %v2425 = vadd.f32 %v2232, %v2424
    %v2426 = vpop.f32.mrf.mxu0
    %v2427 = vadd.f32 %v2234, %v2426
    %2428 = vmatmul.bf16.gmra.mxu0 %v783
    %v2429 = vpop.f32.mrf.mxu0
    %v2430 = vadd.f32 %v2237, %v2429
    %v2431 = vpop.f32.mrf.mxu0
    %v2432 = vadd.f32 %v2239, %v2431
    %2433 = vmatmul.bf16.gmra.mxu0 %v787
    %v2434 = vpop.f32.mrf.mxu0
    %v2435 = vadd.f32 %v2242, %v2434
    %v2436 = vpop.f32.mrf.mxu0
    %v2437 = vadd.f32 %v2244, %v2436
    %2438 = vmatmul.bf16.gmra.mxu0 %v791
    %v2439 = vpop.f32.mrf.mxu0
    %v2440 = vadd.f32 %v2247, %v2439
    %v2441 = vpop.f32.mrf.mxu0
    %v2442 = vadd.f32 %v2249, %v2441
    %2443 = vmatmul.bf16.gmra.mxu0 %v795
    %v2444 = vpop.f32.mrf.mxu0
    %v2445 = vadd.f32 %v2252, %v2444
    %v2446 = vpop.f32.mrf.mxu0
    %v2447 = vadd.f32 %v2254, %v2446
    %2448 = vmatmul.bf16.gmra.mxu0 %v799
    %v2449 = vpop.f32.mrf.mxu0
    %v2450 = vadd.f32 %v2257, %v2449
    %v2451 = vpop.f32.mrf.mxu0
    %2452 = vdwg.mxu0
    %2453 = vmatpush.bf16.msra.mxu0 %v1122
    %2454 = vmatpush.bf16.msra.mxu0 %v1120
    %2455 = vmatpush.bf16.msra.mxu0 %v1118
    %2456 = vmatpush.bf16.msra.mxu0 %v1116
    %2457 = vmatpush.bf16.msra.mxu0 %v1114
    %2458 = vmatpush.bf16.msra.mxu0 %v1112
    %2459 = vmatpush.bf16.msra.mxu0 %v1110
    %2460 = vmatpush.bf16.msra.mxu0 %v1108
    %2461 = vmatmul.bf16.gmra.mxu0 %v656
    %v2462 = vpop.f32.mrf.mxu0
    %v2463 = vadd.f32 %v2270, %v2462
    %v2464 = vpop.f32.mrf.mxu0
    %v2465 = vadd.f32 %v2272, %v2464
    %2466 = vmatmul.bf16.gmra.mxu0 %v660
    %v2467 = vpop.f32.mrf.mxu0
    %v2468 = vadd.f32 %v2275, %v2467
    %v2469 = vpop.f32.mrf.mxu0
    %v2470 = vadd.f32 %v2277, %v2469
    %2471 = vmatmul.bf16.gmra.mxu0 %v664
    %v2472 = vpop.f32.mrf.mxu0
    %v2473 = vadd.f32 %v2280, %v2472
    %v2474 = vpop.f32.mrf.mxu0
    %v2475 = vadd.f32 %v2282, %v2474
    %2476 = vmatmul.bf16.gmra.mxu0 %v668
    %v2477 = vpop.f32.mrf.mxu0
    %v2478 = vadd.f32 %v2285, %v2477
    %v2479 = vpop.f32.mrf.mxu0
    %v2480 = vadd.f32 %v2287, %v2479
    %2481 = vmatmul.bf16.gmra.mxu0 %v672
    %v2482 = vpop.f32.mrf.mxu0
    %v2483 = vadd.f32 %v2290, %v2482
    %v2484 = vpop.f32.mrf.mxu0
    %v2485 = vadd.f32 %v2292, %v2484
    %2486 = vmatmul.bf16.gmra.mxu0 %v676
    %v2487 = vpop.f32.mrf.mxu0
    %v2488 = vadd.f32 %v2295, %v2487
    %v2489 = vpop.f32.mrf.mxu0
    %v2490 = vadd.f32 %v2297, %v2489
    %2491 = vmatmul.bf16.gmra.mxu0 %v680
    %v2492 = vpop.f32.mrf.mxu0
    %v2493 = vadd.f32 %v2300, %v2492
    %v2494 = vpop.f32.mrf.mxu0
    %v2495 = vadd.f32 %v2302, %v2494
    %2496 = vmatmul.bf16.gmra.mxu0 %v684
    %v2497 = vpop.f32.mrf.mxu0
    %v2498 = vadd.f32 %v2305, %v2497
    %v2499 = vpop.f32.mrf.mxu0
    %v2500 = vadd.f32 %v2307, %v2499
    %2501 = vmatmul.bf16.gmra.mxu0 %v688
    %v2502 = vpop.f32.mrf.mxu0
    %v2503 = vadd.f32 %v2310, %v2502
    %v2504 = vpop.f32.mrf.mxu0
    %v2505 = vadd.f32 %v2312, %v2504
    %2506 = vmatmul.bf16.gmra.mxu0 %v692
    %v2507 = vpop.f32.mrf.mxu0
    %v2508 = vadd.f32 %v2315, %v2507
    %v2509 = vpop.f32.mrf.mxu0
    %v2510 = vadd.f32 %v2317, %v2509
    %2511 = vmatmul.bf16.gmra.mxu0 %v696
    %v2512 = vpop.f32.mrf.mxu0
    %v2513 = vadd.f32 %v2320, %v2512
    %v2514 = vpop.f32.mrf.mxu0
    %v2515 = vadd.f32 %v2322, %v2514
    %2516 = vmatmul.bf16.gmra.mxu0 %v700
    %v2517 = vpop.f32.mrf.mxu0
    %v2518 = vadd.f32 %v2325, %v2517
    %v2519 = vpop.f32.mrf.mxu0
    %v2520 = vadd.f32 %v2327, %v2519
    %2521 = vmatmul.bf16.gmra.mxu0 %v704
    %v2522 = vpop.f32.mrf.mxu0
    %v2523 = vadd.f32 %v2330, %v2522
    %v2524 = vpop.f32.mrf.mxu0
    %v2525 = vadd.f32 %v2332, %v2524
    %2526 = vmatmul.bf16.gmra.mxu0 %v708
    %v2527 = vpop.f32.mrf.mxu0
    %v2528 = vadd.f32 %v2335, %v2527
    %v2529 = vpop.f32.mrf.mxu0
    %v2530 = vadd.f32 %v2337, %v2529
    %2531 = vmatmul.bf16.gmra.mxu0 %v712
    %v2532 = vpop.f32.mrf.mxu0
    %v2533 = vadd.f32 %v2340, %v2532
    %v2534 = vpop.f32.mrf.mxu0
    %v2535 = vadd.f32 %v2342, %v2534
    %2536 = vmatmul.bf16.gmra.mxu0 %v716
    %v2537 = vpop.f32.mrf.mxu0
    %v2538 = vadd.f32 %v2345, %v2537
    %v2539 = vpop.f32.mrf.mxu0
    %v2540 = vadd.f32 %v2347, %v2539
    %2541 = vmatmul.bf16.gmra.mxu0 %v720
    %v2542 = vpop.f32.mrf.mxu0
    %v2543 = vadd.f32 %v2350, %v2542
    %v2544 = vpop.f32.mrf.mxu0
    %v2545 = vadd.f32 %v2352, %v2544
    %2546 = vmatmul.bf16.gmra.mxu0 %v724
    %v2547 = vpop.f32.mrf.mxu0
    %v2548 = vadd.f32 %v2355, %v2547
    %v2549 = vpop.f32.mrf.mxu0
    %v2550 = vadd.f32 %v2357, %v2549
    %2551 = vmatmul.bf16.gmra.mxu0 %v728
    %v2552 = vpop.f32.mrf.mxu0
    %v2553 = vadd.f32 %v2360, %v2552
    %v2554 = vpop.f32.mrf.mxu0
    %v2555 = vadd.f32 %v2362, %v2554
    %2556 = vmatmul.bf16.gmra.mxu0 %v732
    %v2557 = vpop.f32.mrf.mxu0
    %v2558 = vadd.f32 %v2365, %v2557
    %v2559 = vpop.f32.mrf.mxu0
    %v2560 = vadd.f32 %v2367, %v2559
    %2561 = vmatmul.bf16.gmra.mxu0 %v736
    %v2562 = vpop.f32.mrf.mxu0
    %v2563 = vadd.f32 %v2370, %v2562
    %v2564 = vpop.f32.mrf.mxu0
    %v2565 = vadd.f32 %v2372, %v2564
    %2566 = vmatmul.bf16.gmra.mxu0 %v740
    %v2567 = vpop.f32.mrf.mxu0
    %v2568 = vadd.f32 %v2375, %v2567
    %v2569 = vpop.f32.mrf.mxu0
    %v2570 = vadd.f32 %v2377, %v2569
    %2571 = vmatmul.bf16.gmra.mxu0 %v744
    %v2572 = vpop.f32.mrf.mxu0
    %v2573 = vadd.f32 %v2380, %v2572
    %v2574 = vpop.f32.mrf.mxu0
    %v2575 = vadd.f32 %v2382, %v2574
    %2576 = vmatmul.bf16.gmra.mxu0 %v748
    %v2577 = vpop.f32.mrf.mxu0
    %v2578 = vadd.f32 %v2385, %v2577
    %v2579 = vpop.f32.mrf.mxu0
    %v2580 = vadd.f32 %v2387, %v2579
    %2581 = vmatmul.bf16.gmra.mxu0 %v752
    %v2582 = vpop.f32.mrf.mxu0
    %v2583 = vadd.f32 %v2390, %v2582
    %v2584 = vpop.f32.mrf.mxu0
    %v2585 = vadd.f32 %v2392, %v2584
    %2586 = vmatmul.bf16.gmra.mxu0 %v756
    %v2587 = vpop.f32.mrf.mxu0
    %v2588 = vadd.f32 %v2395, %v2587
    %v2589 = vpop.f32.mrf.mxu0
    %v2590 = vadd.f32 %v2397, %v2589
    %2591 = vmatmul.bf16.gmra.mxu0 %v760
    %v2592 = vpop.f32.mrf.mxu0
    %v2593 = vadd.f32 %v2400, %v2592
    %v2594 = vpop.f32.mrf.mxu0
    %v2595 = vadd.f32 %v2402, %v2594
    %2596 = vmatmul.bf16.gmra.mxu0 %v764
    %v2597 = vpop.f32.mrf.mxu0
    %v2598 = vadd.f32 %v2405, %v2597
    %v2599 = vpop.f32.mrf.mxu0
    %v2600 = vadd.f32 %v2407, %v2599
    %2601 = vmatmul.bf16.gmra.mxu0 %v768
    %v2602 = vpop.f32.mrf.mxu0
    %v2603 = vadd.f32 %v2410, %v2602
    %v2604 = vpop.f32.mrf.mxu0
    %v2605 = vadd.f32 %v2412, %v2604
    %2606 = vmatmul.bf16.gmra.mxu0 %v772
    %v2607 = vpop.f32.mrf.mxu0
    %v2608 = vadd.f32 %v2415, %v2607
    %v2609 = vpop.f32.mrf.mxu0
    %v2610 = vadd.f32 %v2417, %v2609
    %2611 = vmatmul.bf16.gmra.mxu0 %v776
    %v2612 = vpop.f32.mrf.mxu0
    %v2613 = vadd.f32 %v2420, %v2612
    %v2614 = vpop.f32.mrf.mxu0
    %v2615 = vadd.f32 %v2422, %v2614
    %2616 = vmatmul.bf16.gmra.mxu0 %v780
    %v2617 = vpop.f32.mrf.mxu0
    %v2618 = vadd.f32 %v2425, %v2617
    %v2619 = vpop.f32.mrf.mxu0
    %v2620 = vadd.f32 %v2427, %v2619
    %2621 = vmatmul.bf16.gmra.mxu0 %v784
    %v2622 = vpop.f32.mrf.mxu0
    %v2623 = vadd.f32 %v2430, %v2622
    %v2624 = vpop.f32.mrf.mxu0
    %v2625 = vadd.f32 %v2432, %v2624
    %2626 = vmatmul.bf16.gmra.mxu0 %v788
    %v2627 = vpop.f32.mrf.mxu0
    %v2628 = vadd.f32 %v2435, %v2627
    %v2629 = vpop.f32.mrf.mxu0
    %v2630 = vadd.f32 %v2437, %v2629
    %2631 = vmatmul.bf16.gmra.mxu0 %v792
    %v2632 = vpop.f32.mrf.mxu0
    %v2633 = vadd.f32 %v2440, %v2632
    %v2634 = vpop.f32.mrf.mxu0
    %v2635 = vadd.f32 %v2442, %v2634
    %2636 = vmatmul.bf16.gmra.mxu0 %v796
    %v2637 = vpop.f32.mrf.mxu0
    %v2638 = vadd.f32 %v2445, %v2637
    %v2639 = vpop.f32.mrf.mxu0
    %v2640 = vadd.f32 %v2447, %v2639
    %2641 = vmatmul.bf16.gmra.mxu0 %v800
    %v2642 = vpop.f32.mrf.mxu0
    %v2643 = vadd.f32 %v2450, %v2642
    %v2644 = vpop.f32.mrf.mxu0
    %2645 = vdwg.mxu0
    %2646 = vmatpush.bf16.msra.mxu0 0
    %2647 = vmatpush.bf16.msra.mxu0 0
    %2648 = vmatpush.bf16.msra.mxu0 0
    %2649 = vmatpush.bf16.msra.mxu0 0
    %2650 = vmatpush.bf16.msra.mxu0 0
    %2651 = vmatpush.bf16.msra.mxu0 %v1128
    %2652 = vmatpush.bf16.msra.mxu0 %v1126
    %2653 = vmatpush.bf16.msra.mxu0 %v1124
    %2654 = vmatmul.bf16.gmra.mxu0 %v1185
    %v2655 = vpop.f32.mrf.mxu0
    %v2656 = vadd.f32 %v2463, %v2655
    %v2657 = vpop.f32.mrf.mxu0
    %v2658 = vadd.f32 %v2465, %v2657
    %2659 = vmatmul.bf16.gmra.mxu0 %v1188
    %v2660 = vpop.f32.mrf.mxu0
    %v2661 = vadd.f32 %v2468, %v2660
    %v2662 = vpop.f32.mrf.mxu0
    %v2663 = vadd.f32 %v2470, %v2662
    %2664 = vmatmul.bf16.gmra.mxu0 %v1191
    %v2665 = vpop.f32.mrf.mxu0
    %v2666 = vadd.f32 %v2473, %v2665
    %v2667 = vpop.f32.mrf.mxu0
    %v2668 = vadd.f32 %v2475, %v2667
    %2669 = vmatmul.bf16.gmra.mxu0 %v1194
    %v2670 = vpop.f32.mrf.mxu0
    %v2671 = vadd.f32 %v2478, %v2670
    %v2672 = vpop.f32.mrf.mxu0
    %v2673 = vadd.f32 %v2480, %v2672
    %2674 = vmatmul.bf16.gmra.mxu0 %v1197
    %v2675 = vpop.f32.mrf.mxu0
    %v2676 = vadd.f32 %v2483, %v2675
    %v2677 = vpop.f32.mrf.mxu0
    %v2678 = vadd.f32 %v2485, %v2677
    %2679 = vmatmul.bf16.gmra.mxu0 %v1200
    %v2680 = vpop.f32.mrf.mxu0
    %v2681 = vadd.f32 %v2488, %v2680
    %v2682 = vpop.f32.mrf.mxu0
    %v2683 = vadd.f32 %v2490, %v2682
    %2684 = vmatmul.bf16.gmra.mxu0 %v1203
    %v2685 = vpop.f32.mrf.mxu0
    %v2686 = vadd.f32 %v2493, %v2685
    %v2687 = vpop.f32.mrf.mxu0
    %v2688 = vadd.f32 %v2495, %v2687
    %2689 = vmatmul.bf16.gmra.mxu0 %v1206
    %v2690 = vpop.f32.mrf.mxu0
    %v2691 = vadd.f32 %v2498, %v2690
    %v2692 = vpop.f32.mrf.mxu0
    %v2693 = vadd.f32 %v2500, %v2692
    %2694 = vmatmul.bf16.gmra.mxu0 %v1209
    %v2695 = vpop.f32.mrf.mxu0
    %v2696 = vadd.f32 %v2503, %v2695
    %v2697 = vpop.f32.mrf.mxu0
    %v2698 = vadd.f32 %v2505, %v2697
    %2699 = vmatmul.bf16.gmra.mxu0 %v1212
    %v2700 = vpop.f32.mrf.mxu0
    %v2701 = vadd.f32 %v2508, %v2700
    %v2702 = vpop.f32.mrf.mxu0
    %v2703 = vadd.f32 %v2510, %v2702
    %2704 = vmatmul.bf16.gmra.mxu0 %v1215
    %v2705 = vpop.f32.mrf.mxu0
    %v2706 = vadd.f32 %v2513, %v2705
    %v2707 = vpop.f32.mrf.mxu0
    %v2708 = vadd.f32 %v2515, %v2707
    %2709 = vmatmul.bf16.gmra.mxu0 %v1218
    %v2710 = vpop.f32.mrf.mxu0
    %v2711 = vadd.f32 %v2518, %v2710
    %v2712 = vpop.f32.mrf.mxu0
    %v2713 = vadd.f32 %v2520, %v2712
    %2714 = vmatmul.bf16.gmra.mxu0 %v1221
    %v2715 = vpop.f32.mrf.mxu0
    %v2716 = vadd.f32 %v2523, %v2715
    %v2717 = vpop.f32.mrf.mxu0
    %v2718 = vadd.f32 %v2525, %v2717
    %2719 = vmatmul.bf16.gmra.mxu0 %v1224
    %v2720 = vpop.f32.mrf.mxu0
    %v2721 = vadd.f32 %v2528, %v2720
    %v2722 = vpop.f32.mrf.mxu0
    %v2723 = vadd.f32 %v2530, %v2722
    %2724 = vmatmul.bf16.gmra.mxu0 %v1227
    %v2725 = vpop.f32.mrf.mxu0
    %v2726 = vadd.f32 %v2533, %v2725
    %v2727 = vpop.f32.mrf.mxu0
    %v2728 = vadd.f32 %v2535, %v2727
    %2729 = vmatmul.bf16.gmra.mxu0 %v1230
    %v2730 = vpop.f32.mrf.mxu0
    %v2731 = vadd.f32 %v2538, %v2730
    %v2732 = vpop.f32.mrf.mxu0
    %v2733 = vadd.f32 %v2540, %v2732
    %2734 = vmatmul.bf16.gmra.mxu0 %v1233
    %v2735 = vpop.f32.mrf.mxu0
    %v2736 = vadd.f32 %v2543, %v2735
    %v2737 = vpop.f32.mrf.mxu0
    %v2738 = vadd.f32 %v2545, %v2737
    %2739 = vmatmul.bf16.gmra.mxu0 %v1236
    %v2740 = vpop.f32.mrf.mxu0
    %v2741 = vadd.f32 %v2548, %v2740
    %v2742 = vpop.f32.mrf.mxu0
    %v2743 = vadd.f32 %v2550, %v2742
    %2744 = vmatmul.bf16.gmra.mxu0 %v1239
    %v2745 = vpop.f32.mrf.mxu0
    %v2746 = vadd.f32 %v2553, %v2745
    %v2747 = vpop.f32.mrf.mxu0
    %v2748 = vadd.f32 %v2555, %v2747
    %2749 = vmatmul.bf16.gmra.mxu0 %v1242
    %v2750 = vpop.f32.mrf.mxu0
    %v2751 = vadd.f32 %v2558, %v2750
    %v2752 = vpop.f32.mrf.mxu0
    %v2753 = vadd.f32 %v2560, %v2752
    %2754 = vmatmul.bf16.gmra.mxu0 %v1245
    %v2755 = vpop.f32.mrf.mxu0
    %v2756 = vadd.f32 %v2563, %v2755
    %v2757 = vpop.f32.mrf.mxu0
    %v2758 = vadd.f32 %v2565, %v2757
    %2759 = vmatmul.bf16.gmra.mxu0 %v1248
    %v2760 = vpop.f32.mrf.mxu0
    %v2761 = vadd.f32 %v2568, %v2760
    %v2762 = vpop.f32.mrf.mxu0
    %v2763 = vadd.f32 %v2570, %v2762
    %2764 = vmatmul.bf16.gmra.mxu0 %v1251
    %v2765 = vpop.f32.mrf.mxu0
    %v2766 = vadd.f32 %v2573, %v2765
    %v2767 = vpop.f32.mrf.mxu0
    %v2768 = vadd.f32 %v2575, %v2767
    %2769 = vmatmul.bf16.gmra.mxu0 %v1254
    %v2770 = vpop.f32.mrf.mxu0
    %v2771 = vadd.f32 %v2578, %v2770
    %v2772 = vpop.f32.mrf.mxu0
    %v2773 = vadd.f32 %v2580, %v2772
    %2774 = vmatmul.bf16.gmra.mxu0 %v1257
    %v2775 = vpop.f32.mrf.mxu0
    %v2776 = vadd.f32 %v2583, %v2775
    %v2777 = vpop.f32.mrf.mxu0
    %v2778 = vadd.f32 %v2585, %v2777
    %2779 = vmatmul.bf16.gmra.mxu0 %v1260
    %v2780 = vpop.f32.mrf.mxu0
    %v2781 = vadd.f32 %v2588, %v2780
    %v2782 = vpop.f32.mrf.mxu0
    %v2783 = vadd.f32 %v2590, %v2782
    %2784 = vmatmul.bf16.gmra.mxu0 %v1263
    %v2785 = vpop.f32.mrf.mxu0
    %v2786 = vadd.f32 %v2593, %v2785
    %v2787 = vpop.f32.mrf.mxu0
    %v2788 = vadd.f32 %v2595, %v2787
    %2789 = vmatmul.bf16.gmra.mxu0 %v1266
    %v2790 = vpop.f32.mrf.mxu0
    %v2791 = vadd.f32 %v2598, %v2790
    %v2792 = vpop.f32.mrf.mxu0
    %v2793 = vadd.f32 %v2600, %v2792
    %2794 = vmatmul.bf16.gmra.mxu0 %v1269
    %v2795 = vpop.f32.mrf.mxu0
    %v2796 = vadd.f32 %v2603, %v2795
    %v2797 = vpop.f32.mrf.mxu0
    %v2798 = vadd.f32 %v2605, %v2797
    %2799 = vmatmul.bf16.gmra.mxu0 %v1272
    %v2800 = vpop.f32.mrf.mxu0
    %v2801 = vadd.f32 %v2608, %v2800
    %v2802 = vpop.f32.mrf.mxu0
    %v2803 = vadd.f32 %v2610, %v2802
    %2804 = vmatmul.bf16.gmra.mxu0 %v1275
    %v2805 = vpop.f32.mrf.mxu0
    %v2806 = vadd.f32 %v2613, %v2805
    %v2807 = vpop.f32.mrf.mxu0
    %v2808 = vadd.f32 %v2615, %v2807
    %2809 = vmatmul.bf16.gmra.mxu0 %v1278
    %v2810 = vpop.f32.mrf.mxu0
    %v2811 = vadd.f32 %v2618, %v2810
    %v2812 = vpop.f32.mrf.mxu0
    %v2813 = vadd.f32 %v2620, %v2812
    %2814 = vmatmul.bf16.gmra.mxu0 %v1281
    %v2815 = vpop.f32.mrf.mxu0
    %v2816 = vadd.f32 %v2623, %v2815
    %v2817 = vpop.f32.mrf.mxu0
    %v2818 = vadd.f32 %v2625, %v2817
    %2819 = vmatmul.bf16.gmra.mxu0 %v1284
    %v2820 = vpop.f32.mrf.mxu0
    %v2821 = vadd.f32 %v2628, %v2820
    %v2822 = vpop.f32.mrf.mxu0
    %v2823 = vadd.f32 %v2630, %v2822
    %2824 = vmatmul.bf16.gmra.mxu0 %v1287
    %v2825 = vpop.f32.mrf.mxu0
    %v2826 = vadd.f32 %v2633, %v2825
    %v2827 = vpop.f32.mrf.mxu0
    %v2828 = vadd.f32 %v2635, %v2827
    %2829 = vmatmul.bf16.gmra.mxu0 %v1290
    %v2830 = vpop.f32.mrf.mxu0
    %v2831 = vadd.f32 %v2638, %v2830
    %v2832 = vpop.f32.mrf.mxu0
    %v2833 = vadd.f32 %v2640, %v2832
    %2834 = vmatmul.bf16.gmra.mxu0 %v1293
    %v2835 = vpop.f32.mrf.mxu0
    %v2836 = vadd.f32 %v2643, %v2835
    %v2837 = vpop.f32.mrf.mxu0
    %2838 = vdwg.mxu0
    %p2839 = scmp.eq.s32.totalorder 0, 0
    // Predicated region
    $region14: #{tpu_custom_call.1} parent=1 // pred_check
      %p2840 = pneg %p2839
    $region15: #{tpu_custom_call.1} parent=1 // pred_check_branch
      %2842 = sbr.rel (%p2840) target = $region17
    $region16: #{tpu_custom_call.1} parent=1 // pred_region
      %2843 = vst [vmem:[#allocation2] sm:$0xff] %v1884
      %2844 = vst [vmem:[#allocation2 + $0x8] sm:$0xff] %v2656
      %2845 = vst [vmem:[#allocation2 + $0x10] sm:$0xff] %v1886
      %2846 = vst [vmem:[#allocation2 + $0x18] sm:$0xff] %v2658
      %2847 = vst [vmem:[#allocation2 + $0x20] sm:$0xff] %v1889
      %2848 = vst [vmem:[#allocation2 + $0x28] sm:$0xff] %v2661
      %2849 = vst [vmem:[#allocation2 + $0x30] sm:$0xff] %v1891
      %2850 = vst [vmem:[#allocation2 + $0x38] sm:$0xff] %v2663
      %2851 = vst [vmem:[#allocation2 + $0x40] sm:$0xff] %v1894
      %2852 = vst [vmem:[#allocation2 + $0x48] sm:$0xff] %v2666
      %2853 = vst [vmem:[#allocation2 + $0x50] sm:$0xff] %v1896
      %2854 = vst [vmem:[#allocation2 + $0x58] sm:$0xff] %v2668
      %2855 = vst [vmem:[#allocation2 + $0x60] sm:$0xff] %v1899
      %2856 = vst [vmem:[#allocation2 + $0x68] sm:$0xff] %v2671
      %2857 = vst [vmem:[#allocation2 + $0x70] sm:$0xff] %v1901
      %2858 = vst [vmem:[#allocation2 + $0x78] sm:$0xff] %v2673
      %2859 = vst [vmem:[#allocation2 + $0x80] sm:$0xff] %v1904
      %2860 = vst [vmem:[#allocation2 + $0x88] sm:$0xff] %v2676
      %2861 = vst [vmem:[#allocation2 + $0x90] sm:$0xff] %v1906
      %2862 = vst [vmem:[#allocation2 + $0x98] sm:$0xff] %v2678
      %2863 = vst [vmem:[#allocation2 + $0xa0] sm:$0xff] %v1909
      %2864 = vst [vmem:[#allocation2 + $0xa8] sm:$0xff] %v2681
      %2865 = vst [vmem:[#allocation2 + $0xb0] sm:$0xff] %v1911
      %2866 = vst [vmem:[#allocation2 + $0xb8] sm:$0xff] %v2683
      %2867 = vst [vmem:[#allocation2 + $0xc0] sm:$0xff] %v1914
      %2868 = vst [vmem:[#allocation2 + $0xc8] sm:$0xff] %v2686
      %2869 = vst [vmem:[#allocation2 + $0xd0] sm:$0xff] %v1916
      %2870 = vst [vmem:[#allocation2 + $0xd8] sm:$0xff] %v2688
      %2871 = vst [vmem:[#allocation2 + $0xe0] sm:$0xff] %v1919
      %2872 = vst [vmem:[#allocation2 + $0xe8] sm:$0xff] %v2691
      %2873 = vst [vmem:[#allocation2 + $0xf0] sm:$0xff] %v1921
      %2874 = vst [vmem:[#allocation2 + $0xf8] sm:$0xff] %v2693
      %2875 = vst [vmem:[#allocation2 + $0x100] sm:$0xff] %v1924
      %2876 = vst [vmem:[#allocation2 + $0x108] sm:$0xff] %v2696
      %2877 = vst [vmem:[#allocation2 + $0x110] sm:$0xff] %v1926
      %2878 = vst [vmem:[#allocation2 + $0x118] sm:$0xff] %v2698
      %2879 = vst [vmem:[#allocation2 + $0x120] sm:$0xff] %v1929
      %2880 = vst [vmem:[#allocation2 + $0x128] sm:$0xff] %v2701
      %2881 = vst [vmem:[#allocation2 + $0x130] sm:$0xff] %v1931
      %2882 = vst [vmem:[#allocation2 + $0x138] sm:$0xff] %v2703
      %2883 = vst [vmem:[#allocation2 + $0x140] sm:$0xff] %v1934
      %2884 = vst [vmem:[#allocation2 + $0x148] sm:$0xff] %v2706
      %2885 = vst [vmem:[#allocation2 + $0x150] sm:$0xff] %v1936
      %2886 = vst [vmem:[#allocation2 + $0x158] sm:$0xff] %v2708
      %2887 = vst [vmem:[#allocation2 + $0x160] sm:$0xff] %v1939
      %2888 = vst [vmem:[#allocation2 + $0x168] sm:$0xff] %v2711
      %2889 = vst [vmem:[#allocation2 + $0x170] sm:$0xff] %v1941
      %2890 = vst [vmem:[#allocation2 + $0x178] sm:$0xff] %v2713
      %2891 = vst [vmem:[#allocation2 + $0x180] sm:$0xff] %v1944
      %2892 = vst [vmem:[#allocation2 + $0x188] sm:$0xff] %v2716
      %2893 = vst [vmem:[#allocation2 + $0x190] sm:$0xff] %v1946
      %2894 = vst [vmem:[#allocation2 + $0x198] sm:$0xff] %v2718
      %2895 = vst [vmem:[#allocation2 + $0x1a0] sm:$0xff] %v1949
      %2896 = vst [vmem:[#allocation2 + $0x1a8] sm:$0xff] %v2721
      %2897 = vst [vmem:[#allocation2 + $0x1b0] sm:$0xff] %v1951
      %2898 = vst [vmem:[#allocation2 + $0x1b8] sm:$0xff] %v2723
      %2899 = vst [vmem:[#allocation2 + $0x1c0] sm:$0xff] %v1954
      %2900 = vst [vmem:[#allocation2 + $0x1c8] sm:$0xff] %v2726
      %2901 = vst [vmem:[#allocation2 + $0x1d0] sm:$0xff] %v1956
      %2902 = vst [vmem:[#allocation2 + $0x1d8] sm:$0xff] %v2728
      %2903 = vst [vmem:[#allocation2 + $0x1e0] sm:$0xff] %v1959
      %2904 = vst [vmem:[#allocation2 + $0x1e8] sm:$0xff] %v2731
      %2905 = vst [vmem:[#allocation2 + $0x1f0] sm:$0xff] %v1961
      %2906 = vst [vmem:[#allocation2 + $0x1f8] sm:$0xff] %v2733
      %2907 = vst [vmem:[#allocation2 + $0x200] sm:$0xff] %v1964
      %2908 = vst [vmem:[#allocation2 + $0x208] sm:$0xff] %v2736
      %2909 = vst [vmem:[#allocation2 + $0x210] sm:$0xff] %v1966
      %2910 = vst [vmem:[#allocation2 + $0x218] sm:$0xff] %v2738
      %2911 = vst [vmem:[#allocation2 + $0x220] sm:$0xff] %v1969
      %2912 = vst [vmem:[#allocation2 + $0x228] sm:$0xff] %v2741
      %2913 = vst [vmem:[#allocation2 + $0x230] sm:$0xff] %v1971
      %2914 = vst [vmem:[#allocation2 + $0x238] sm:$0xff] %v2743
      %2915 = vst [vmem:[#allocation2 + $0x240] sm:$0xff] %v1974
      %2916 = vst [vmem:[#allocation2 + $0x248] sm:$0xff] %v2746
      %2917 = vst [vmem:[#allocation2 + $0x250] sm:$0xff] %v1976
      %2918 = vst [vmem:[#allocation2 + $0x258] sm:$0xff] %v2748
      %2919 = vst [vmem:[#allocation2 + $0x260] sm:$0xff] %v1979
      %2920 = vst [vmem:[#allocation2 + $0x268] sm:$0xff] %v2751
      %2921 = vst [vmem:[#allocation2 + $0x270] sm:$0xff] %v1981
      %2922 = vst [vmem:[#allocation2 + $0x278] sm:$0xff] %v2753
      %2923 = vst [vmem:[#allocation2 + $0x280] sm:$0xff] %v1984
      %2924 = vst [vmem:[#allocation2 + $0x288] sm:$0xff] %v2756
      %2925 = vst [vmem:[#allocation2 + $0x290] sm:$0xff] %v1986
      %2926 = vst [vmem:[#allocation2 + $0x298] sm:$0xff] %v2758
      %2927 = vst [vmem:[#allocation2 + $0x2a0] sm:$0xff] %v1989
      %2928 = vst [vmem:[#allocation2 + $0x2a8] sm:$0xff] %v2761
      %2929 = vst [vmem:[#allocation2 + $0x2b0] sm:$0xff] %v1991
      %2930 = vst [vmem:[#allocation2 + $0x2b8] sm:$0xff] %v2763
      %2931 = vst [vmem:[#allocation2 + $0x2c0] sm:$0xff] %v1994
      %2932 = vst [vmem:[#allocation2 + $0x2c8] sm:$0xff] %v2766
      %2933 = vst [vmem:[#allocation2 + $0x2d0] sm:$0xff] %v1996
      %2934 = vst [vmem:[#allocation2 + $0x2d8] sm:$0xff] %v2768
      %2935 = vst [vmem:[#allocation2 + $0x2e0] sm:$0xff] %v1999
      %2936 = vst [vmem:[#allocation2 + $0x2e8] sm:$0xff] %v2771
      %2937 = vst [vmem:[#allocation2 + $0x2f0] sm:$0xff] %v2001
      %2938 = vst [vmem:[#allocation2 + $0x2f8] sm:$0xff] %v2773
      %2939 = vst [vmem:[#allocation2 + $0x300] sm:$0xff] %v2004
      %2940 = vst [vmem:[#allocation2 + $0x308] sm:$0xff] %v2776
      %2941 = vst [vmem:[#allocation2 + $0x310] sm:$0xff] %v2006
      %2942 = vst [vmem:[#allocation2 + $0x318] sm:$0xff] %v2778
      %2943 = vst [vmem:[#allocation2 + $0x320] sm:$0xff] %v2009
      %2944 = vst [vmem:[#allocation2 + $0x328] sm:$0xff] %v2781
      %2945 = vst [vmem:[#allocation2 + $0x330] sm:$0xff] %v2011
      %2946 = vst [vmem:[#allocation2 + $0x338] sm:$0xff] %v2783
      %2947 = vst [vmem:[#allocation2 + $0x340] sm:$0xff] %v2014
      %2948 = vst [vmem:[#allocation2 + $0x348] sm:$0xff] %v2786
      %2949 = vst [vmem:[#allocation2 + $0x350] sm:$0xff] %v2016
      %2950 = vst [vmem:[#allocation2 + $0x358] sm:$0xff] %v2788
      %2951 = vst [vmem:[#allocation2 + $0x360] sm:$0xff] %v2019
      %2952 = vst [vmem:[#allocation2 + $0x368] sm:$0xff] %v2791
      %2953 = vst [vmem:[#allocation2 + $0x370] sm:$0xff] %v2021
      %2954 = vst [vmem:[#allocation2 + $0x378] sm:$0xff] %v2793
      %2955 = vst [vmem:[#allocation2 + $0x380] sm:$0xff] %v2024
      %2956 = vst [vmem:[#allocation2 + $0x388] sm:$0xff] %v2796
      %2957 = vst [vmem:[#allocation2 + $0x390] sm:$0xff] %v2026
      %2958 = vst [vmem:[#allocation2 + $0x398] sm:$0xff] %v2798
      %2959 = vst [vmem:[#allocation2 + $0x3a0] sm:$0xff] %v2029
      %2960 = vst [vmem:[#allocation2 + $0x3a8] sm:$0xff] %v2801
      %2961 = vst [vmem:[#allocation2 + $0x3b0] sm:$0xff] %v2031
      %2962 = vst [vmem:[#allocation2 + $0x3b8] sm:$0xff] %v2803
      %2963 = vst [vmem:[#allocation2 + $0x3c0] sm:$0xff] %v2034
      %2964 = vst [vmem:[#allocation2 + $0x3c8] sm:$0xff] %v2806
      %2965 = vst [vmem:[#allocation2 + $0x3d0] sm:$0xff] %v2036
      %2966 = vst [vmem:[#allocation2 + $0x3d8] sm:$0xff] %v2808
      %2967 = vst [vmem:[#allocation2 + $0x3e0] sm:$0xff] %v2039
      %2968 = vst [vmem:[#allocation2 + $0x3e8] sm:$0xff] %v2811
      %2969 = vst [vmem:[#allocation2 + $0x3f0] sm:$0xff] %v2041
      %2970 = vst [vmem:[#allocation2 + $0x3f8] sm:$0xff] %v2813
      %2971 = vst [vmem:[#allocation2 + $0x400] sm:$0xff] %v2044
      %2972 = vst [vmem:[#allocation2 + $0x408] sm:$0xff] %v2816
      %2973 = vst [vmem:[#allocation2 + $0x410] sm:$0xff] %v2046
      %2974 = vst [vmem:[#allocation2 + $0x418] sm:$0xff] %v2818
      %2975 = vst [vmem:[#allocation2 + $0x420] sm:$0xff] %v2049
      %2976 = vst [vmem:[#allocation2 + $0x428] sm:$0xff] %v2821
      %2977 = vst [vmem:[#allocation2 + $0x430] sm:$0xff] %v2051
      %2978 = vst [vmem:[#allocation2 + $0x438] sm:$0xff] %v2823
      %2979 = vst [vmem:[#allocation2 + $0x440] sm:$0xff] %v2054
      %2980 = vst [vmem:[#allocation2 + $0x448] sm:$0xff] %v2826
      %2981 = vst [vmem:[#allocation2 + $0x450] sm:$0xff] %v2056
      %2982 = vst [vmem:[#allocation2 + $0x458] sm:$0xff] %v2828
      %2983 = vst [vmem:[#allocation2 + $0x460] sm:$0xff] %v2059
      %2984 = vst [vmem:[#allocation2 + $0x468] sm:$0xff] %v2831
      %2985 = vst [vmem:[#allocation2 + $0x470] sm:$0xff] %v2061
      %2986 = vst [vmem:[#allocation2 + $0x478] sm:$0xff] %v2833
      %2987 = vst [vmem:[#allocation2 + $0x480] sm:$0xff] %v2064
      %2988 = vst [vmem:[#allocation2 + $0x488] sm:$0xff] %v2836
    $region17: #{tpu_custom_call.1} parent=1 // pred_fallthru
      _
    %p2989 = scmp.ne.s32.totalorder 0, 0
    // Predicated region
    $region18: #{tpu_custom_call.1} parent=1 // pred_check
      %p2990 = pneg %p2989
    $region19: #{tpu_custom_call.1} parent=1 // pred_check_branch
      %2992 = sbr.rel (%p2990) target = $region21
    $region20: #{tpu_custom_call.1} parent=1 // pred_region
      %v2993 = vld [vmem:[#allocation2] sm:$0xff]
      %v2994 = vld [vmem:[#allocation2 + $0x8] sm:$0xff]
      %v2995 = vld [vmem:[#allocation2 + $0x10] sm:$0xff]
      %v2996 = vld [vmem:[#allocation2 + $0x18] sm:$0xff]
      %v2997 = vld [vmem:[#allocation2 + $0x20] sm:$0xff]
      %v2998 = vld [vmem:[#allocation2 + $0x28] sm:$0xff]
      %v2999 = vld [vmem:[#allocation2 + $0x30] sm:$0xff]
      %v3000 = vld [vmem:[#allocation2 + $0x38] sm:$0xff]
      %v3001 = vld [vmem:[#allocation2 + $0x40] sm:$0xff]
      %v3002 = vld [vmem:[#allocation2 + $0x48] sm:$0xff]
      %v3003 = vld [vmem:[#allocation2 + $0x50] sm:$0xff]
      %v3004 = vld [vmem:[#allocation2 + $0x58] sm:$0xff]
      %v3005 = vld [vmem:[#allocation2 + $0x60] sm:$0xff]
      %v3006 = vld [vmem:[#allocation2 + $0x68] sm:$0xff]
      %v3007 = vld [vmem:[#allocation2 + $0x70] sm:$0xff]
      %v3008 = vld [vmem:[#allocation2 + $0x78] sm:$0xff]
      %v3009 = vld [vmem:[#allocation2 + $0x80] sm:$0xff]
      %v3010 = vld [vmem:[#allocation2 + $0x88] sm:$0xff]
      %v3011 = vld [vmem:[#allocation2 + $0x90] sm:$0xff]
      %v3012 = vld [vmem:[#allocation2 + $0x98] sm:$0xff]
      %v3013 = vld [vmem:[#allocation2 + $0xa0] sm:$0xff]
      %v3014 = vld [vmem:[#allocation2 + $0xa8] sm:$0xff]
      %v3015 = vld [vmem:[#allocation2 + $0xb0] sm:$0xff]
      %v3016 = vld [vmem:[#allocation2 + $0xb8] sm:$0xff]
      %v3017 = vld [vmem:[#allocation2 + $0xc0] sm:$0xff]
      %v3018 = vld [vmem:[#allocation2 + $0xc8] sm:$0xff]
      %v3019 = vld [vmem:[#allocation2 + $0xd0] sm:$0xff]
      %v3020 = vld [vmem:[#allocation2 + $0xd8] sm:$0xff]
      %v3021 = vld [vmem:[#allocation2 + $0xe0] sm:$0xff]
      %v3022 = vld [vmem:[#allocation2 + $0xe8] sm:$0xff]
      %v3023 = vld [vmem:[#allocation2 + $0xf0] sm:$0xff]
      %v3024 = vld [vmem:[#allocation2 + $0xf8] sm:$0xff]
      %v3025 = vld [vmem:[#allocation2 + $0x100] sm:$0xff]
      %v3026 = vld [vmem:[#allocation2 + $0x108] sm:$0xff]
      %v3027 = vld [vmem:[#allocation2 + $0x110] sm:$0xff]
      %v3028 = vld [vmem:[#allocation2 + $0x118] sm:$0xff]
      %v3029 = vld [vmem:[#allocation2 + $0x120] sm:$0xff]
      %v3030 = vld [vmem:[#allocation2 + $0x128] sm:$0xff]
      %v3031 = vld [vmem:[#allocation2 + $0x130] sm:$0xff]
      %v3032 = vld [vmem:[#allocation2 + $0x138] sm:$0xff]
      %v3033 = vld [vmem:[#allocation2 + $0x140] sm:$0xff]
      %v3034 = vld [vmem:[#allocation2 + $0x148] sm:$0xff]
      %v3035 = vld [vmem:[#allocation2 + $0x150] sm:$0xff]
      %v3036 = vld [vmem:[#allocation2 + $0x158] sm:$0xff]
      %v3037 = vld [vmem:[#allocation2 + $0x160] sm:$0xff]
      %v3038 = vld [vmem:[#allocation2 + $0x168] sm:$0xff]
      %v3039 = vld [vmem:[#allocation2 + $0x170] sm:$0xff]
      %v3040 = vld [vmem:[#allocation2 + $0x178] sm:$0xff]
      %v3041 = vld [vmem:[#allocation2 + $0x180] sm:$0xff]
      %v3042 = vld [vmem:[#allocation2 + $0x188] sm:$0xff]
      %v3043 = vld [vmem:[#allocation2 + $0x190] sm:$0xff]
      %v3044 = vld [vmem:[#allocation2 + $0x198] sm:$0xff]
      %v3045 = vld [vmem:[#allocation2 + $0x1a0] sm:$0xff]
      %v3046 = vld [vmem:[#allocation2 + $0x1a8] sm:$0xff]
      %v3047 = vld [vmem:[#allocation2 + $0x1b0] sm:$0xff]
      %v3048 = vld [vmem:[#allocation2 + $0x1b8] sm:$0xff]
      %v3049 = vld [vmem:[#allocation2 + $0x1c0] sm:$0xff]
      %v3050 = vld [vmem:[#allocation2 + $0x1c8] sm:$0xff]
      %v3051 = vld [vmem:[#allocation2 + $0x1d0] sm:$0xff]
      %v3052 = vld [vmem:[#allocation2 + $0x1d8] sm:$0xff]
      %v3053 = vld [vmem:[#allocation2 + $0x1e0] sm:$0xff]
      %v3054 = vld [vmem:[#allocation2 + $0x1e8] sm:$0xff]
      %v3055 = vld [vmem:[#allocation2 + $0x1f0] sm:$0xff]
      %v3056 = vld [vmem:[#allocation2 + $0x1f8] sm:$0xff]
      %v3057 = vld [vmem:[#allocation2 + $0x200] sm:$0xff]
      %v3058 = vld [vmem:[#allocation2 + $0x208] sm:$0xff]
      %v3059 = vld [vmem:[#allocation2 + $0x210] sm:$0xff]
      %v3060 = vld [vmem:[#allocation2 + $0x218] sm:$0xff]
      %v3061 = vld [vmem:[#allocation2 + $0x220] sm:$0xff]
      %v3062 = vld [vmem:[#allocation2 + $0x228] sm:$0xff]
      %v3063 = vld [vmem:[#allocation2 + $0x230] sm:$0xff]
      %v3064 = vld [vmem:[#allocation2 + $0x238] sm:$0xff]
      %v3065 = vld [vmem:[#allocation2 + $0x240] sm:$0xff]
      %v3066 = vld [vmem:[#allocation2 + $0x248] sm:$0xff]
      %v3067 = vld [vmem:[#allocation2 + $0x250] sm:$0xff]
      %v3068 = vld [vmem:[#allocation2 + $0x258] sm:$0xff]
      %v3069 = vld [vmem:[#allocation2 + $0x260] sm:$0xff]
      %v3070 = vld [vmem:[#allocation2 + $0x268] sm:$0xff]
      %v3071 = vld [vmem:[#allocation2 + $0x270] sm:$0xff]
      %v3072 = vld [vmem:[#allocation2 + $0x278] sm:$0xff]
      %v3073 = vld [vmem:[#allocation2 + $0x280] sm:$0xff]
      %v3074 = vld [vmem:[#allocation2 + $0x288] sm:$0xff]
      %v3075 = vld [vmem:[#allocation2 + $0x290] sm:$0xff]
      %v3076 = vld [vmem:[#allocation2 + $0x298] sm:$0xff]
      %v3077 = vld [vmem:[#allocation2 + $0x2a0] sm:$0xff]
      %v3078 = vld [vmem:[#allocation2 + $0x2a8] sm:$0xff]
      %v3079 = vld [vmem:[#allocation2 + $0x2b0] sm:$0xff]
      %v3080 = vld [vmem:[#allocation2 + $0x2b8] sm:$0xff]
      %v3081 = vld [vmem:[#allocation2 + $0x2c0] sm:$0xff]
      %v3082 = vld [vmem:[#allocation2 + $0x2c8] sm:$0xff]
      %v3083 = vld [vmem:[#allocation2 + $0x2d0] sm:$0xff]
      %v3084 = vld [vmem:[#allocation2 + $0x2d8] sm:$0xff]
      %v3085 = vld [vmem:[#allocation2 + $0x2e0] sm:$0xff]
      %v3086 = vld [vmem:[#allocation2 + $0x2e8] sm:$0xff]
      %v3087 = vld [vmem:[#allocation2 + $0x2f0] sm:$0xff]
      %v3088 = vld [vmem:[#allocation2 + $0x2f8] sm:$0xff]
      %v3089 = vld [vmem:[#allocation2 + $0x300] sm:$0xff]
      %v3090 = vld [vmem:[#allocation2 + $0x308] sm:$0xff]
      %v3091 = vld [vmem:[#allocation2 + $0x310] sm:$0xff]
      %v3092 = vld [vmem:[#allocation2 + $0x318] sm:$0xff]
      %v3093 = vld [vmem:[#allocation2 + $0x320] sm:$0xff]
      %v3094 = vld [vmem:[#allocation2 + $0x328] sm:$0xff]
      %v3095 = vld [vmem:[#allocation2 + $0x330] sm:$0xff]
      %v3096 = vld [vmem:[#allocation2 + $0x338] sm:$0xff]
      %v3097 = vld [vmem:[#allocation2 + $0x340] sm:$0xff]
      %v3098 = vld [vmem:[#allocation2 + $0x348] sm:$0xff]
      %v3099 = vld [vmem:[#allocation2 + $0x350] sm:$0xff]
      %v3100 = vld [vmem:[#allocation2 + $0x358] sm:$0xff]
      %v3101 = vld [vmem:[#allocation2 + $0x360] sm:$0xff]
      %v3102 = vld [vmem:[#allocation2 + $0x368] sm:$0xff]
      %v3103 = vld [vmem:[#allocation2 + $0x370] sm:$0xff]
      %v3104 = vld [vmem:[#allocation2 + $0x378] sm:$0xff]
      %v3105 = vld [vmem:[#allocation2 + $0x380] sm:$0xff]
      %v3106 = vld [vmem:[#allocation2 + $0x388] sm:$0xff]
      %v3107 = vld [vmem:[#allocation2 + $0x390] sm:$0xff]
      %v3108 = vld [vmem:[#allocation2 + $0x398] sm:$0xff]
      %v3109 = vld [vmem:[#allocation2 + $0x3a0] sm:$0xff]
      %v3110 = vld [vmem:[#allocation2 + $0x3a8] sm:$0xff]
      %v3111 = vld [vmem:[#allocation2 + $0x3b0] sm:$0xff]
      %v3112 = vld [vmem:[#allocation2 + $0x3b8] sm:$0xff]
      %v3113 = vld [vmem:[#allocation2 + $0x3c0] sm:$0xff]
      %v3114 = vld [vmem:[#allocation2 + $0x3c8] sm:$0xff]
      %v3115 = vld [vmem:[#allocation2 + $0x3d0] sm:$0xff]
      %v3116 = vld [vmem:[#allocation2 + $0x3d8] sm:$0xff]
      %v3117 = vld [vmem:[#allocation2 + $0x3e0] sm:$0xff]
      %v3118 = vld [vmem:[#allocation2 + $0x3e8] sm:$0xff]
      %v3119 = vld [vmem:[#allocation2 + $0x3f0] sm:$0xff]
      %v3120 = vld [vmem:[#allocation2 + $0x3f8] sm:$0xff]
      %v3121 = vld [vmem:[#allocation2 + $0x400] sm:$0xff]
      %v3122 = vld [vmem:[#allocation2 + $0x408] sm:$0xff]
      %v3123 = vld [vmem:[#allocation2 + $0x410] sm:$0xff]
      %v3124 = vld [vmem:[#allocation2 + $0x418] sm:$0xff]
      %v3125 = vld [vmem:[#allocation2 + $0x420] sm:$0xff]
      %v3126 = vld [vmem:[#allocation2 + $0x428] sm:$0xff]
      %v3127 = vld [vmem:[#allocation2 + $0x430] sm:$0xff]
      %v3128 = vld [vmem:[#allocation2 + $0x438] sm:$0xff]
      %v3129 = vld [vmem:[#allocation2 + $0x440] sm:$0xff]
      %v3130 = vld [vmem:[#allocation2 + $0x448] sm:$0xff]
      %v3131 = vld [vmem:[#allocation2 + $0x450] sm:$0xff]
      %v3132 = vld [vmem:[#allocation2 + $0x458] sm:$0xff]
      %v3133 = vld [vmem:[#allocation2 + $0x460] sm:$0xff]
      %v3134 = vld [vmem:[#allocation2 + $0x468] sm:$0xff]
      %v3135 = vld [vmem:[#allocation2 + $0x470] sm:$0xff]
      %v3136 = vld [vmem:[#allocation2 + $0x478] sm:$0xff]
      %v3137 = vld [vmem:[#allocation2 + $0x480] sm:$0xff]
      %v3138 = vld [vmem:[#allocation2 + $0x488] sm:$0xff]
      %v3139 = vadd.f32 %v2993, %v1884
      %v3140 = vadd.f32 %v2994, %v2656
      %v3141 = vadd.f32 %v2995, %v1886
      %v3142 = vadd.f32 %v2996, %v2658
      %v3143 = vadd.f32 %v2997, %v1889
      %v3144 = vadd.f32 %v2998, %v2661
      %v3145 = vadd.f32 %v2999, %v1891
      %v3146 = vadd.f32 %v3000, %v2663
      %v3147 = vadd.f32 %v3001, %v1894
      %v3148 = vadd.f32 %v3002, %v2666
      %v3149 = vadd.f32 %v3003, %v1896
      %v3150 = vadd.f32 %v3004, %v2668
      %v3151 = vadd.f32 %v3005, %v1899
      %v3152 = vadd.f32 %v3006, %v2671
      %v3153 = vadd.f32 %v3007, %v1901
      %v3154 = vadd.f32 %v3008, %v2673
      %v3155 = vadd.f32 %v3009, %v1904
      %v3156 = vadd.f32 %v3010, %v2676
      %v3157 = vadd.f32 %v3011, %v1906
      %v3158 = vadd.f32 %v3012, %v2678
      %v3159 = vadd.f32 %v3013, %v1909
      %v3160 = vadd.f32 %v3014, %v2681
      %v3161 = vadd.f32 %v3015, %v1911
      %v3162 = vadd.f32 %v3016, %v2683
      %v3163 = vadd.f32 %v3017, %v1914
      %v3164 = vadd.f32 %v3018, %v2686
      %v3165 = vadd.f32 %v3019, %v1916
      %v3166 = vadd.f32 %v3020, %v2688
      %v3167 = vadd.f32 %v3021, %v1919
      %v3168 = vadd.f32 %v3022, %v2691
      %v3169 = vadd.f32 %v3023, %v1921
      %v3170 = vadd.f32 %v3024, %v2693
      %v3171 = vadd.f32 %v3025, %v1924
      %v3172 = vadd.f32 %v3026, %v2696
      %v3173 = vadd.f32 %v3027, %v1926
      %v3174 = vadd.f32 %v3028, %v2698
      %v3175 = vadd.f32 %v3029, %v1929
      %v3176 = vadd.f32 %v3030, %v2701
      %v3177 = vadd.f32 %v3031, %v1931
      %v3178 = vadd.f32 %v3032, %v2703
      %v3179 = vadd.f32 %v3033, %v1934
      %v3180 = vadd.f32 %v3034, %v2706
      %v3181 = vadd.f32 %v3035, %v1936
      %v3182 = vadd.f32 %v3036, %v2708
      %v3183 = vadd.f32 %v3037, %v1939
      %v3184 = vadd.f32 %v3038, %v2711
      %v3185 = vadd.f32 %v3039, %v1941
      %v3186 = vadd.f32 %v3040, %v2713
      %v3187 = vadd.f32 %v3041, %v1944
      %v3188 = vadd.f32 %v3042, %v2716
      %v3189 = vadd.f32 %v3043, %v1946
      %v3190 = vadd.f32 %v3044, %v2718
      %v3191 = vadd.f32 %v3045, %v1949
      %v3192 = vadd.f32 %v3046, %v2721
      %v3193 = vadd.f32 %v3047, %v1951
      %v3194 = vadd.f32 %v3048, %v2723
      %v3195 = vadd.f32 %v3049, %v1954
      %v3196 = vadd.f32 %v3050, %v2726
      %v3197 = vadd.f32 %v3051, %v1956
      %v3198 = vadd.f32 %v3052, %v2728
      %v3199 = vadd.f32 %v3053, %v1959
      %v3200 = vadd.f32 %v3054, %v2731
      %v3201 = vadd.f32 %v3055, %v1961
      %v3202 = vadd.f32 %v3056, %v2733
      %v3203 = vadd.f32 %v3057, %v1964
      %v3204 = vadd.f32 %v3058, %v2736
      %v3205 = vadd.f32 %v3059, %v1966
      %v3206 = vadd.f32 %v3060, %v2738
      %v3207 = vadd.f32 %v3061, %v1969
      %v3208 = vadd.f32 %v3062, %v2741
      %v3209 = vadd.f32 %v3063, %v1971
      %v3210 = vadd.f32 %v3064, %v2743
      %v3211 = vadd.f32 %v3065, %v1974
      %v3212 = vadd.f32 %v3066, %v2746
      %v3213 = vadd.f32 %v3067, %v1976
      %v3214 = vadd.f32 %v3068, %v2748
      %v3215 = vadd.f32 %v3069, %v1979
      %v3216 = vadd.f32 %v3070, %v2751
      %v3217 = vadd.f32 %v3071, %v1981
      %v3218 = vadd.f32 %v3072, %v2753
      %v3219 = vadd.f32 %v3073, %v1984
      %v3220 = vadd.f32 %v3074, %v2756
      %v3221 = vadd.f32 %v3075, %v1986
      %v3222 = vadd.f32 %v3076, %v2758
      %v3223 = vadd.f32 %v3077, %v1989
      %v3224 = vadd.f32 %v3078, %v2761
      %v3225 = vadd.f32 %v3079, %v1991
      %v3226 = vadd.f32 %v3080, %v2763
      %v3227 = vadd.f32 %v3081, %v1994
      %v3228 = vadd.f32 %v3082, %v2766
      %v3229 = vadd.f32 %v3083, %v1996
      %v3230 = vadd.f32 %v3084, %v2768
      %v3231 = vadd.f32 %v3085, %v1999
      %v3232 = vadd.f32 %v3086, %v2771
      %v3233 = vadd.f32 %v3087, %v2001
      %v3234 = vadd.f32 %v3088, %v2773
      %v3235 = vadd.f32 %v3089, %v2004
      %v3236 = vadd.f32 %v3090, %v2776
      %v3237 = vadd.f32 %v3091, %v2006
      %v3238 = vadd.f32 %v3092, %v2778
      %v3239 = vadd.f32 %v3093, %v2009
      %v3240 = vadd.f32 %v3094, %v2781
      %v3241 = vadd.f32 %v3095, %v2011
      %v3242 = vadd.f32 %v3096, %v2783
      %v3243 = vadd.f32 %v3097, %v2014
      %v3244 = vadd.f32 %v3098, %v2786
      %v3245 = vadd.f32 %v3099, %v2016
      %v3246 = vadd.f32 %v3100, %v2788
      %v3247 = vadd.f32 %v3101, %v2019
      %v3248 = vadd.f32 %v3102, %v2791
      %v3249 = vadd.f32 %v3103, %v2021
      %v3250 = vadd.f32 %v3104, %v2793
      %v3251 = vadd.f32 %v3105, %v2024
      %v3252 = vadd.f32 %v3106, %v2796
      %v3253 = vadd.f32 %v3107, %v2026
      %v3254 = vadd.f32 %v3108, %v2798
      %v3255 = vadd.f32 %v3109, %v2029
      %v3256 = vadd.f32 %v3110, %v2801
      %v3257 = vadd.f32 %v3111, %v2031
      %v3258 = vadd.f32 %v3112, %v2803
      %v3259 = vadd.f32 %v3113, %v2034
      %v3260 = vadd.f32 %v3114, %v2806
      %v3261 = vadd.f32 %v3115, %v2036
      %v3262 = vadd.f32 %v3116, %v2808
      %v3263 = vadd.f32 %v3117, %v2039
      %v3264 = vadd.f32 %v3118, %v2811
      %v3265 = vadd.f32 %v3119, %v2041
      %v3266 = vadd.f32 %v3120, %v2813
      %v3267 = vadd.f32 %v3121, %v2044
      %v3268 = vadd.f32 %v3122, %v2816
      %v3269 = vadd.f32 %v3123, %v2046
      %v3270 = vadd.f32 %v3124, %v2818
      %v3271 = vadd.f32 %v3125, %v2049
      %v3272 = vadd.f32 %v3126, %v2821
      %v3273 = vadd.f32 %v3127, %v2051
      %v3274 = vadd.f32 %v3128, %v2823
      %v3275 = vadd.f32 %v3129, %v2054
      %v3276 = vadd.f32 %v3130, %v2826
      %v3277 = vadd.f32 %v3131, %v2056
      %v3278 = vadd.f32 %v3132, %v2828
      %v3279 = vadd.f32 %v3133, %v2059
      %v3280 = vadd.f32 %v3134, %v2831
      %v3281 = vadd.f32 %v3135, %v2061
      %v3282 = vadd.f32 %v3136, %v2833
      %v3283 = vadd.f32 %v3137, %v2064
      %v3284 = vadd.f32 %v3138, %v2836
      %3285 = vst [vmem:[#allocation2] sm:$0xff] %v3139
      %3286 = vst [vmem:[#allocation2 + $0x8] sm:$0xff] %v3140
      %3287 = vst [vmem:[#allocation2 + $0x10] sm:$0xff] %v3141
      %3288 = vst [vmem:[#allocation2 + $0x18] sm:$0xff] %v3142
      %3289 = vst [vmem:[#allocation2 + $0x20] sm:$0xff] %v3143
      %3290 = vst [vmem:[#allocation2 + $0x28] sm:$0xff] %v3144
      %3291 = vst [vmem:[#allocation2 + $0x30] sm:$0xff] %v3145
      %3292 = vst [vmem:[#allocation2 + $0x38] sm:$0xff] %v3146
      %3293 = vst [vmem:[#allocation2 + $0x40] sm:$0xff] %v3147
      %3294 = vst [vmem:[#allocation2 + $0x48] sm:$0xff] %v3148
      %3295 = vst [vmem:[#allocation2 + $0x50] sm:$0xff] %v3149
      %3296 = vst [vmem:[#allocation2 + $0x58] sm:$0xff] %v3150
      %3297 = vst [vmem:[#allocation2 + $0x60] sm:$0xff] %v3151
      %3298 = vst [vmem:[#allocation2 + $0x68] sm:$0xff] %v3152
      %3299 = vst [vmem:[#allocation2 + $0x70] sm:$0xff] %v3153
      %3300 = vst [vmem:[#allocation2 + $0x78] sm:$0xff] %v3154
      %3301 = vst [vmem:[#allocation2 + $0x80] sm:$0xff] %v3155
      %3302 = vst [vmem:[#allocation2 + $0x88] sm:$0xff] %v3156
      %3303 = vst [vmem:[#allocation2 + $0x90] sm:$0xff] %v3157
      %3304 = vst [vmem:[#allocation2 + $0x98] sm:$0xff] %v3158
      %3305 = vst [vmem:[#allocation2 + $0xa0] sm:$0xff] %v3159
      %3306 = vst [vmem:[#allocation2 + $0xa8] sm:$0xff] %v3160
      %3307 = vst [vmem:[#allocation2 + $0xb0] sm:$0xff] %v3161
      %3308 = vst [vmem:[#allocation2 + $0xb8] sm:$0xff] %v3162
      %3309 = vst [vmem:[#allocation2 + $0xc0] sm:$0xff] %v3163
      %3310 = vst [vmem:[#allocation2 + $0xc8] sm:$0xff] %v3164
      %3311 = vst [vmem:[#allocation2 + $0xd0] sm:$0xff] %v3165
      %3312 = vst [vmem:[#allocation2 + $0xd8] sm:$0xff] %v3166
      %3313 = vst [vmem:[#allocation2 + $0xe0] sm:$0xff] %v3167
      %3314 = vst [vmem:[#allocation2 + $0xe8] sm:$0xff] %v3168
      %3315 = vst [vmem:[#allocation2 + $0xf0] sm:$0xff] %v3169
      %3316 = vst [vmem:[#allocation2 + $0xf8] sm:$0xff] %v3170
      %3317 = vst [vmem:[#allocation2 + $0x100] sm:$0xff] %v3171
      %3318 = vst [vmem:[#allocation2 + $0x108] sm:$0xff] %v3172
      %3319 = vst [vmem:[#allocation2 + $0x110] sm:$0xff] %v3173
      %3320 = vst [vmem:[#allocation2 + $0x118] sm:$0xff] %v3174
      %3321 = vst [vmem:[#allocation2 + $0x120] sm:$0xff] %v3175
      %3322 = vst [vmem:[#allocation2 + $0x128] sm:$0xff] %v3176
      %3323 = vst [vmem:[#allocation2 + $0x130] sm:$0xff] %v3177
      %3324 = vst [vmem:[#allocation2 + $0x138] sm:$0xff] %v3178
      %3325 = vst [vmem:[#allocation2 + $0x140] sm:$0xff] %v3179
      %3326 = vst [vmem:[#allocation2 + $0x148] sm:$0xff] %v3180
      %3327 = vst [vmem:[#allocation2 + $0x150] sm:$0xff] %v3181
      %3328 = vst [vmem:[#allocation2 + $0x158] sm:$0xff] %v3182
      %3329 = vst [vmem:[#allocation2 + $0x160] sm:$0xff] %v3183
      %3330 = vst [vmem:[#allocation2 + $0x168] sm:$0xff] %v3184
      %3331 = vst [vmem:[#allocation2 + $0x170] sm:$0xff] %v3185
      %3332 = vst [vmem:[#allocation2 + $0x178] sm:$0xff] %v3186
      %3333 = vst [vmem:[#allocation2 + $0x180] sm:$0xff] %v3187
      %3334 = vst [vmem:[#allocation2 + $0x188] sm:$0xff] %v3188
      %3335 = vst [vmem:[#allocation2 + $0x190] sm:$0xff] %v3189
      %3336 = vst [vmem:[#allocation2 + $0x198] sm:$0xff] %v3190
      %3337 = vst [vmem:[#allocation2 + $0x1a0] sm:$0xff] %v3191
      %3338 = vst [vmem:[#allocation2 + $0x1a8] sm:$0xff] %v3192
      %3339 = vst [vmem:[#allocation2 + $0x1b0] sm:$0xff] %v3193
      %3340 = vst [vmem:[#allocation2 + $0x1b8] sm:$0xff] %v3194
      %3341 = vst [vmem:[#allocation2 + $0x1c0] sm:$0xff] %v3195
      %3342 = vst [vmem:[#allocation2 + $0x1c8] sm:$0xff] %v3196
      %3343 = vst [vmem:[#allocation2 + $0x1d0] sm:$0xff] %v3197
      %3344 = vst [vmem:[#allocation2 + $0x1d8] sm:$0xff] %v3198
      %3345 = vst [vmem:[#allocation2 + $0x1e0] sm:$0xff] %v3199
      %3346 = vst [vmem:[#allocation2 + $0x1e8] sm:$0xff] %v3200
      %3347 = vst [vmem:[#allocation2 + $0x1f0] sm:$0xff] %v3201
      %3348 = vst [vmem:[#allocation2 + $0x1f8] sm:$0xff] %v3202
      %3349 = vst [vmem:[#allocation2 + $0x200] sm:$0xff] %v3203
      %3350 = vst [vmem:[#allocation2 + $0x208] sm:$0xff] %v3204
      %3351 = vst [vmem:[#allocation2 + $0x210] sm:$0xff] %v3205
      %3352 = vst [vmem:[#allocation2 + $0x218] sm:$0xff] %v3206
      %3353 = vst [vmem:[#allocation2 + $0x220] sm:$0xff] %v3207
      %3354 = vst [vmem:[#allocation2 + $0x228] sm:$0xff] %v3208
      %3355 = vst [vmem:[#allocation2 + $0x230] sm:$0xff] %v3209
      %3356 = vst [vmem:[#allocation2 + $0x238] sm:$0xff] %v3210
      %3357 = vst [vmem:[#allocation2 + $0x240] sm:$0xff] %v3211
      %3358 = vst [vmem:[#allocation2 + $0x248] sm:$0xff] %v3212
      %3359 = vst [vmem:[#allocation2 + $0x250] sm:$0xff] %v3213
      %3360 = vst [vmem:[#allocation2 + $0x258] sm:$0xff] %v3214
      %3361 = vst [vmem:[#allocation2 + $0x260] sm:$0xff] %v3215
      %3362 = vst [vmem:[#allocation2 + $0x268] sm:$0xff] %v3216
      %3363 = vst [vmem:[#allocation2 + $0x270] sm:$0xff] %v3217
      %3364 = vst [vmem:[#allocation2 + $0x278] sm:$0xff] %v3218
      %3365 = vst [vmem:[#allocation2 + $0x280] sm:$0xff] %v3219
      %3366 = vst [vmem:[#allocation2 + $0x288] sm:$0xff] %v3220
      %3367 = vst [vmem:[#allocation2 + $0x290] sm:$0xff] %v3221
      %3368 = vst [vmem:[#allocation2 + $0x298] sm:$0xff] %v3222
      %3369 = vst [vmem:[#allocation2 + $0x2a0] sm:$0xff] %v3223
      %3370 = vst [vmem:[#allocation2 + $0x2a8] sm:$0xff] %v3224
      %3371 = vst [vmem:[#allocation2 + $0x2b0] sm:$0xff] %v3225
      %3372 = vst [vmem:[#allocation2 + $0x2b8] sm:$0xff] %v3226
      %3373 = vst [vmem:[#allocation2 + $0x2c0] sm:$0xff] %v3227
      %3374 = vst [vmem:[#allocation2 + $0x2c8] sm:$0xff] %v3228
      %3375 = vst [vmem:[#allocation2 + $0x2d0] sm:$0xff] %v3229
      %3376 = vst [vmem:[#allocation2 + $0x2d8] sm:$0xff] %v3230
      %3377 = vst [vmem:[#allocation2 + $0x2e0] sm:$0xff] %v3231
      %3378 = vst [vmem:[#allocation2 + $0x2e8] sm:$0xff] %v3232
      %3379 = vst [vmem:[#allocation2 + $0x2f0] sm:$0xff] %v3233
      %3380 = vst [vmem:[#allocation2 + $0x2f8] sm:$0xff] %v3234
      %3381 = vst [vmem:[#allocation2 + $0x300] sm:$0xff] %v3235
      %3382 = vst [vmem:[#allocation2 + $0x308] sm:$0xff] %v3236
      %3383 = vst [vmem:[#allocation2 + $0x310] sm:$0xff] %v3237
      %3384 = vst [vmem:[#allocation2 + $0x318] sm:$0xff] %v3238
      %3385 = vst [vmem:[#allocation2 + $0x320] sm:$0xff] %v3239
      %3386 = vst [vmem:[#allocation2 + $0x328] sm:$0xff] %v3240
      %3387 = vst [vmem:[#allocation2 + $0x330] sm:$0xff] %v3241
      %3388 = vst [vmem:[#allocation2 + $0x338] sm:$0xff] %v3242
      %3389 = vst [vmem:[#allocation2 + $0x340] sm:$0xff] %v3243
      %3390 = vst [vmem:[#allocation2 + $0x348] sm:$0xff] %v3244
      %3391 = vst [vmem:[#allocation2 + $0x350] sm:$0xff] %v3245
      %3392 = vst [vmem:[#allocation2 + $0x358] sm:$0xff] %v3246
      %3393 = vst [vmem:[#allocation2 + $0x360] sm:$0xff] %v3247
      %3394 = vst [vmem:[#allocation2 + $0x368] sm:$0xff] %v3248
      %3395 = vst [vmem:[#allocation2 + $0x370] sm:$0xff] %v3249
      %3396 = vst [vmem:[#allocation2 + $0x378] sm:$0xff] %v3250
      %3397 = vst [vmem:[#allocation2 + $0x380] sm:$0xff] %v3251
      %3398 = vst [vmem:[#allocation2 + $0x388] sm:$0xff] %v3252
      %3399 = vst [vmem:[#allocation2 + $0x390] sm:$0xff] %v3253
      %3400 = vst [vmem:[#allocation2 + $0x398] sm:$0xff] %v3254
      %3401 = vst [vmem:[#allocation2 + $0x3a0] sm:$0xff] %v3255
      %3402 = vst [vmem:[#allocation2 + $0x3a8] sm:$0xff] %v3256
      %3403 = vst [vmem:[#allocation2 + $0x3b0] sm:$0xff] %v3257
      %3404 = vst [vmem:[#allocation2 + $0x3b8] sm:$0xff] %v3258
      %3405 = vst [vmem:[#allocation2 + $0x3c0] sm:$0xff] %v3259
      %3406 = vst [vmem:[#allocation2 + $0x3c8] sm:$0xff] %v3260
      %3407 = vst [vmem:[#allocation2 + $0x3d0] sm:$0xff] %v3261
      %3408 = vst [vmem:[#allocation2 + $0x3d8] sm:$0xff] %v3262
      %3409 = vst [vmem:[#allocation2 + $0x3e0] sm:$0xff] %v3263
      %3410 = vst [vmem:[#allocation2 + $0x3e8] sm:$0xff] %v3264
      %3411 = vst [vmem:[#allocation2 + $0x3f0] sm:$0xff] %v3265
      %3412 = vst [vmem:[#allocation2 + $0x3f8] sm:$0xff] %v3266
      %3413 = vst [vmem:[#allocation2 + $0x400] sm:$0xff] %v3267
      %3414 = vst [vmem:[#allocation2 + $0x408] sm:$0xff] %v3268
      %3415 = vst [vmem:[#allocation2 + $0x410] sm:$0xff] %v3269
      %3416 = vst [vmem:[#allocation2 + $0x418] sm:$0xff] %v3270
      %3417 = vst [vmem:[#allocation2 + $0x420] sm:$0xff] %v3271
      %3418 = vst [vmem:[#allocation2 + $0x428] sm:$0xff] %v3272
      %3419 = vst [vmem:[#allocation2 + $0x430] sm:$0xff] %v3273
      %3420 = vst [vmem:[#allocation2 + $0x438] sm:$0xff] %v3274
      %3421 = vst [vmem:[#allocation2 + $0x440] sm:$0xff] %v3275
      %3422 = vst [vmem:[#allocation2 + $0x448] sm:$0xff] %v3276
      %3423 = vst [vmem:[#allocation2 + $0x450] sm:$0xff] %v3277
      %3424 = vst [vmem:[#allocation2 + $0x458] sm:$0xff] %v3278
      %3425 = vst [vmem:[#allocation2 + $0x460] sm:$0xff] %v3279
      %3426 = vst [vmem:[#allocation2 + $0x468] sm:$0xff] %v3280
      %3427 = vst [vmem:[#allocation2 + $0x470] sm:$0xff] %v3281
      %3428 = vst [vmem:[#allocation2 + $0x478] sm:$0xff] %v3282
      %3429 = vst [vmem:[#allocation2 + $0x480] sm:$0xff] %v3283
      %3430 = vst [vmem:[#allocation2 + $0x488] sm:$0xff] %v3284
    $region21: #{tpu_custom_call.1} parent=1 // pred_fallthru
      _
    // Predicated region
    $region22: #{tpu_custom_call.1} parent=1 // pred_check
      %p3431 = pneg %p2839
    $region23: #{tpu_custom_call.1} parent=1 // pred_check_branch
      %3433 = sbr.rel (%p3431) target = $region25
    $region24: #{tpu_custom_call.1} parent=1 // pred_region
      %v3434 = vld [vmem:[#allocation2] sm:$0xff]
      %v3435 = vld [vmem:[#allocation2 + $0x8] sm:$0xff]
      %v3436 = vld [vmem:[#allocation2 + $0x10] sm:$0xff]
      %v3437 = vld [vmem:[#allocation2 + $0x18] sm:$0xff]
      %v3438 = vld [vmem:[#allocation2 + $0x20] sm:$0xff]
      %v3439 = vld [vmem:[#allocation2 + $0x28] sm:$0xff]
      %v3440 = vld [vmem:[#allocation2 + $0x30] sm:$0xff]
      %v3441 = vld [vmem:[#allocation2 + $0x38] sm:$0xff]
      %v3442 = vld [vmem:[#allocation2 + $0x40] sm:$0xff]
      %v3443 = vld [vmem:[#allocation2 + $0x48] sm:$0xff]
      %v3444 = vld [vmem:[#allocation2 + $0x50] sm:$0xff]
      %v3445 = vld [vmem:[#allocation2 + $0x58] sm:$0xff]
      %v3446 = vld [vmem:[#allocation2 + $0x60] sm:$0xff]
      %v3447 = vld [vmem:[#allocation2 + $0x68] sm:$0xff]
      %v3448 = vld [vmem:[#allocation2 + $0x70] sm:$0xff]
      %v3449 = vld [vmem:[#allocation2 + $0x78] sm:$0xff]
      %v3450 = vld [vmem:[#allocation2 + $0x80] sm:$0xff]
      %v3451 = vld [vmem:[#allocation2 + $0x88] sm:$0xff]
      %v3452 = vld [vmem:[#allocation2 + $0x90] sm:$0xff]
      %v3453 = vld [vmem:[#allocation2 + $0x98] sm:$0xff]
      %v3454 = vld [vmem:[#allocation2 + $0xa0] sm:$0xff]
      %v3455 = vld [vmem:[#allocation2 + $0xa8] sm:$0xff]
      %v3456 = vld [vmem:[#allocation2 + $0xb0] sm:$0xff]
      %v3457 = vld [vmem:[#allocation2 + $0xb8] sm:$0xff]
      %v3458 = vld [vmem:[#allocation2 + $0xc0] sm:$0xff]
      %v3459 = vld [vmem:[#allocation2 + $0xc8] sm:$0xff]
      %v3460 = vld [vmem:[#allocation2 + $0xd0] sm:$0xff]
      %v3461 = vld [vmem:[#allocation2 + $0xd8] sm:$0xff]
      %v3462 = vld [vmem:[#allocation2 + $0xe0] sm:$0xff]
      %v3463 = vld [vmem:[#allocation2 + $0xe8] sm:$0xff]
      %v3464 = vld [vmem:[#allocation2 + $0xf0] sm:$0xff]
      %v3465 = vld [vmem:[#allocation2 + $0xf8] sm:$0xff]
      %v3466 = vld [vmem:[#allocation2 + $0x100] sm:$0xff]
      %v3467 = vld [vmem:[#allocation2 + $0x108] sm:$0xff]
      %v3468 = vld [vmem:[#allocation2 + $0x110] sm:$0xff]
      %v3469 = vld [vmem:[#allocation2 + $0x118] sm:$0xff]
      %v3470 = vld [vmem:[#allocation2 + $0x120] sm:$0xff]
      %v3471 = vld [vmem:[#allocation2 + $0x128] sm:$0xff]
      %v3472 = vld [vmem:[#allocation2 + $0x130] sm:$0xff]
      %v3473 = vld [vmem:[#allocation2 + $0x138] sm:$0xff]
      %v3474 = vld [vmem:[#allocation2 + $0x140] sm:$0xff]
      %v3475 = vld [vmem:[#allocation2 + $0x148] sm:$0xff]
      %v3476 = vld [vmem:[#allocation2 + $0x150] sm:$0xff]
      %v3477 = vld [vmem:[#allocation2 + $0x158] sm:$0xff]
      %v3478 = vld [vmem:[#allocation2 + $0x160] sm:$0xff]
      %v3479 = vld [vmem:[#allocation2 + $0x168] sm:$0xff]
      %v3480 = vld [vmem:[#allocation2 + $0x170] sm:$0xff]
      %v3481 = vld [vmem:[#allocation2 + $0x178] sm:$0xff]
      %v3482 = vld [vmem:[#allocation2 + $0x180] sm:$0xff]
      %v3483 = vld [vmem:[#allocation2 + $0x188] sm:$0xff]
      %v3484 = vld [vmem:[#allocation2 + $0x190] sm:$0xff]
      %v3485 = vld [vmem:[#allocation2 + $0x198] sm:$0xff]
      %v3486 = vld [vmem:[#allocation2 + $0x1a0] sm:$0xff]
      %v3487 = vld [vmem:[#allocation2 + $0x1a8] sm:$0xff]
      %v3488 = vld [vmem:[#allocation2 + $0x1b0] sm:$0xff]
      %v3489 = vld [vmem:[#allocation2 + $0x1b8] sm:$0xff]
      %v3490 = vld [vmem:[#allocation2 + $0x1c0] sm:$0xff]
      %v3491 = vld [vmem:[#allocation2 + $0x1c8] sm:$0xff]
      %v3492 = vld [vmem:[#allocation2 + $0x1d0] sm:$0xff]
      %v3493 = vld [vmem:[#allocation2 + $0x1d8] sm:$0xff]
      %v3494 = vld [vmem:[#allocation2 + $0x1e0] sm:$0xff]
      %v3495 = vld [vmem:[#allocation2 + $0x1e8] sm:$0xff]
      %v3496 = vld [vmem:[#allocation2 + $0x1f0] sm:$0xff]
      %v3497 = vld [vmem:[#allocation2 + $0x1f8] sm:$0xff]
      %v3498 = vld [vmem:[#allocation2 + $0x200] sm:$0xff]
      %v3499 = vld [vmem:[#allocation2 + $0x208] sm:$0xff]
      %v3500 = vld [vmem:[#allocation2 + $0x210] sm:$0xff]
      %v3501 = vld [vmem:[#allocation2 + $0x218] sm:$0xff]
      %v3502 = vld [vmem:[#allocation2 + $0x220] sm:$0xff]
      %v3503 = vld [vmem:[#allocation2 + $0x228] sm:$0xff]
      %v3504 = vld [vmem:[#allocation2 + $0x230] sm:$0xff]
      %v3505 = vld [vmem:[#allocation2 + $0x238] sm:$0xff]
      %v3506 = vld [vmem:[#allocation2 + $0x240] sm:$0xff]
      %v3507 = vld [vmem:[#allocation2 + $0x248] sm:$0xff]
      %v3508 = vld [vmem:[#allocation2 + $0x250] sm:$0xff]
      %v3509 = vld [vmem:[#allocation2 + $0x258] sm:$0xff]
      %v3510 = vld [vmem:[#allocation2 + $0x260] sm:$0xff]
      %v3511 = vld [vmem:[#allocation2 + $0x268] sm:$0xff]
      %v3512 = vld [vmem:[#allocation2 + $0x270] sm:$0xff]
      %v3513 = vld [vmem:[#allocation2 + $0x278] sm:$0xff]
      %v3514 = vld [vmem:[#allocation2 + $0x280] sm:$0xff]
      %v3515 = vld [vmem:[#allocation2 + $0x288] sm:$0xff]
      %v3516 = vld [vmem:[#allocation2 + $0x290] sm:$0xff]
      %v3517 = vld [vmem:[#allocation2 + $0x298] sm:$0xff]
      %v3518 = vld [vmem:[#allocation2 + $0x2a0] sm:$0xff]
      %v3519 = vld [vmem:[#allocation2 + $0x2a8] sm:$0xff]
      %v3520 = vld [vmem:[#allocation2 + $0x2b0] sm:$0xff]
      %v3521 = vld [vmem:[#allocation2 + $0x2b8] sm:$0xff]
      %v3522 = vld [vmem:[#allocation2 + $0x2c0] sm:$0xff]
      %v3523 = vld [vmem:[#allocation2 + $0x2c8] sm:$0xff]
      %v3524 = vld [vmem:[#allocation2 + $0x2d0] sm:$0xff]
      %v3525 = vld [vmem:[#allocation2 + $0x2d8] sm:$0xff]
      %v3526 = vld [vmem:[#allocation2 + $0x2e0] sm:$0xff]
      %v3527 = vld [vmem:[#allocation2 + $0x2e8] sm:$0xff]
      %v3528 = vld [vmem:[#allocation2 + $0x2f0] sm:$0xff]
      %v3529 = vld [vmem:[#allocation2 + $0x2f8] sm:$0xff]
      %v3530 = vld [vmem:[#allocation2 + $0x300] sm:$0xff]
      %v3531 = vld [vmem:[#allocation2 + $0x308] sm:$0xff]
      %v3532 = vld [vmem:[#allocation2 + $0x310] sm:$0xff]
      %v3533 = vld [vmem:[#allocation2 + $0x318] sm:$0xff]
      %v3534 = vld [vmem:[#allocation2 + $0x320] sm:$0xff]
      %v3535 = vld [vmem:[#allocation2 + $0x328] sm:$0xff]
      %v3536 = vld [vmem:[#allocation2 + $0x330] sm:$0xff]
      %v3537 = vld [vmem:[#allocation2 + $0x338] sm:$0xff]
      %v3538 = vld [vmem:[#allocation2 + $0x340] sm:$0xff]
      %v3539 = vld [vmem:[#allocation2 + $0x348] sm:$0xff]
      %v3540 = vld [vmem:[#allocation2 + $0x350] sm:$0xff]
      %v3541 = vld [vmem:[#allocation2 + $0x358] sm:$0xff]
      %v3542 = vld [vmem:[#allocation2 + $0x360] sm:$0xff]
      %v3543 = vld [vmem:[#allocation2 + $0x368] sm:$0xff]
      %v3544 = vld [vmem:[#allocation2 + $0x370] sm:$0xff]
      %v3545 = vld [vmem:[#allocation2 + $0x378] sm:$0xff]
      %v3546 = vld [vmem:[#allocation2 + $0x380] sm:$0xff]
      %v3547 = vld [vmem:[#allocation2 + $0x388] sm:$0xff]
      %v3548 = vld [vmem:[#allocation2 + $0x390] sm:$0xff]
      %v3549 = vld [vmem:[#allocation2 + $0x398] sm:$0xff]
      %v3550 = vld [vmem:[#allocation2 + $0x3a0] sm:$0xff]
      %v3551 = vld [vmem:[#allocation2 + $0x3a8] sm:$0xff]
      %v3552 = vld [vmem:[#allocation2 + $0x3b0] sm:$0xff]
      %v3553 = vld [vmem:[#allocation2 + $0x3b8] sm:$0xff]
      %v3554 = vld [vmem:[#allocation2 + $0x3c0] sm:$0xff]
      %v3555 = vld [vmem:[#allocation2 + $0x3c8] sm:$0xff]
      %v3556 = vld [vmem:[#allocation2 + $0x3d0] sm:$0xff]
      %v3557 = vld [vmem:[#allocation2 + $0x3d8] sm:$0xff]
      %v3558 = vld [vmem:[#allocation2 + $0x3e0] sm:$0xff]
      %v3559 = vld [vmem:[#allocation2 + $0x3e8] sm:$0xff]
      %v3560 = vld [vmem:[#allocation2 + $0x3f0] sm:$0xff]
      %v3561 = vld [vmem:[#allocation2 + $0x3f8] sm:$0xff]
      %v3562 = vld [vmem:[#allocation2 + $0x400] sm:$0xff]
      %v3563 = vld [vmem:[#allocation2 + $0x408] sm:$0xff]
      %v3564 = vld [vmem:[#allocation2 + $0x410] sm:$0xff]
      %v3565 = vld [vmem:[#allocation2 + $0x418] sm:$0xff]
      %v3566 = vld [vmem:[#allocation2 + $0x420] sm:$0xff]
      %v3567 = vld [vmem:[#allocation2 + $0x428] sm:$0xff]
      %v3568 = vld [vmem:[#allocation2 + $0x430] sm:$0xff]
      %v3569 = vld [vmem:[#allocation2 + $0x438] sm:$0xff]
      %v3570 = vld [vmem:[#allocation2 + $0x440] sm:$0xff]
      %v3571 = vld [vmem:[#allocation2 + $0x448] sm:$0xff]
      %v3572 = vld [vmem:[#allocation2 + $0x450] sm:$0xff]
      %v3573 = vld [vmem:[#allocation2 + $0x458] sm:$0xff]
      %v3574 = vld [vmem:[#allocation2 + $0x460] sm:$0xff]
      %v3575 = vld [vmem:[#allocation2 + $0x468] sm:$0xff]
      %v3576 = vld [vmem:[#allocation2 + $0x470] sm:$0xff]
      %v3577 = vld [vmem:[#allocation2 + $0x478] sm:$0xff]
      %v3578 = vld [vmem:[#allocation2 + $0x480] sm:$0xff]
      %v3579 = vld [vmem:[#allocation2 + $0x488] sm:$0xff]
      %v3580 = vld [vmem:[%s2] ss:$2 sm:$0x3]
      %v3582 = vperm.slane %v3580, 0
      %v3583 = vperm.slane %v3580, 1
      %v3586 = vadd.f32 %v3434, %v3582
      %v3587 = vadd.f32 %v3435, %v3583
      %v3588 = vadd.f32 %v3436, %v3582
      %v3589 = vadd.f32 %v3437, %v3583
      %v3590 = vadd.f32 %v3438, %v3582
      %v3591 = vadd.f32 %v3439, %v3583
      %v3592 = vadd.f32 %v3440, %v3582
      %v3593 = vadd.f32 %v3441, %v3583
      %v3594 = vadd.f32 %v3442, %v3582
      %v3595 = vadd.f32 %v3443, %v3583
      %v3596 = vadd.f32 %v3444, %v3582
      %v3597 = vadd.f32 %v3445, %v3583
      %v3598 = vadd.f32 %v3446, %v3582
      %v3599 = vadd.f32 %v3447, %v3583
      %v3600 = vadd.f32 %v3448, %v3582
      %v3601 = vadd.f32 %v3449, %v3583
      %v3602 = vadd.f32 %v3450, %v3582
      %v3603 = vadd.f32 %v3451, %v3583
      %v3604 = vadd.f32 %v3452, %v3582
      %v3605 = vadd.f32 %v3453, %v3583
      %v3606 = vadd.f32 %v3454, %v3582
      %v3607 = vadd.f32 %v3455, %v3583
      %v3608 = vadd.f32 %v3456, %v3582
      %v3609 = vadd.f32 %v3457, %v3583
      %v3610 = vadd.f32 %v3458, %v3582
      %v3611 = vadd.f32 %v3459, %v3583
      %v3612 = vadd.f32 %v3460, %v3582
      %v3613 = vadd.f32 %v3461, %v3583
      %v3614 = vadd.f32 %v3462, %v3582
      %v3615 = vadd.f32 %v3463, %v3583
      %v3616 = vadd.f32 %v3464, %v3582
      %v3617 = vadd.f32 %v3465, %v3583
      %v3618 = vadd.f32 %v3466, %v3582
      %v3619 = vadd.f32 %v3467, %v3583
      %v3620 = vadd.f32 %v3468, %v3582
      %v3621 = vadd.f32 %v3469, %v3583
      %v3622 = vadd.f32 %v3470, %v3582
      %v3623 = vadd.f32 %v3471, %v3583
      %v3624 = vadd.f32 %v3472, %v3582
      %v3625 = vadd.f32 %v3473, %v3583
      %v3626 = vadd.f32 %v3474, %v3582
      %v3627 = vadd.f32 %v3475, %v3583
      %v3628 = vadd.f32 %v3476, %v3582
      %v3629 = vadd.f32 %v3477, %v3583
      %v3630 = vadd.f32 %v3478, %v3582
      %v3631 = vadd.f32 %v3479, %v3583
      %v3632 = vadd.f32 %v3480, %v3582
      %v3633 = vadd.f32 %v3481, %v3583
      %v3634 = vadd.f32 %v3482, %v3582
      %v3635 = vadd.f32 %v3483, %v3583
      %v3636 = vadd.f32 %v3484, %v3582
      %v3637 = vadd.f32 %v3485, %v3583
      %v3638 = vadd.f32 %v3486, %v3582
      %v3639 = vadd.f32 %v3487, %v3583
      %v3640 = vadd.f32 %v3488, %v3582
      %v3641 = vadd.f32 %v3489, %v3583
      %v3642 = vadd.f32 %v3490, %v3582
      %v3643 = vadd.f32 %v3491, %v3583
      %v3644 = vadd.f32 %v3492, %v3582
      %v3645 = vadd.f32 %v3493, %v3583
      %v3646 = vadd.f32 %v3494, %v3582
      %v3647 = vadd.f32 %v3495, %v3583
      %v3648 = vadd.f32 %v3496, %v3582
      %v3649 = vadd.f32 %v3497, %v3583
      %v3650 = vadd.f32 %v3498, %v3582
      %v3651 = vadd.f32 %v3499, %v3583
      %v3652 = vadd.f32 %v3500, %v3582
      %v3653 = vadd.f32 %v3501, %v3583
      %v3654 = vadd.f32 %v3502, %v3582
      %v3655 = vadd.f32 %v3503, %v3583
      %v3656 = vadd.f32 %v3504, %v3582
      %v3657 = vadd.f32 %v3505, %v3583
      %v3658 = vadd.f32 %v3506, %v3582
      %v3659 = vadd.f32 %v3507, %v3583
      %v3660 = vadd.f32 %v3508, %v3582
      %v3661 = vadd.f32 %v3509, %v3583
      %v3662 = vadd.f32 %v3510, %v3582
      %v3663 = vadd.f32 %v3511, %v3583
      %v3664 = vadd.f32 %v3512, %v3582
      %v3665 = vadd.f32 %v3513, %v3583
      %v3666 = vadd.f32 %v3514, %v3582
      %v3667 = vadd.f32 %v3515, %v3583
      %v3668 = vadd.f32 %v3516, %v3582
      %v3669 = vadd.f32 %v3517, %v3583
      %v3670 = vadd.f32 %v3518, %v3582
      %v3671 = vadd.f32 %v3519, %v3583
      %v3672 = vadd.f32 %v3520, %v3582
      %v3673 = vadd.f32 %v3521, %v3583
      %v3674 = vadd.f32 %v3522, %v3582
      %v3675 = vadd.f32 %v3523, %v3583
      %v3676 = vadd.f32 %v3524, %v3582
      %v3677 = vadd.f32 %v3525, %v3583
      %v3678 = vadd.f32 %v3526, %v3582
      %v3679 = vadd.f32 %v3527, %v3583
      %v3680 = vadd.f32 %v3528, %v3582
      %v3681 = vadd.f32 %v3529, %v3583
      %v3682 = vadd.f32 %v3530, %v3582
      %v3683 = vadd.f32 %v3531, %v3583
      %v3684 = vadd.f32 %v3532, %v3582
      %v3685 = vadd.f32 %v3533, %v3583
      %v3686 = vadd.f32 %v3534, %v3582
      %v3687 = vadd.f32 %v3535, %v3583
      %v3688 = vadd.f32 %v3536, %v3582
      %v3689 = vadd.f32 %v3537, %v3583
      %v3690 = vadd.f32 %v3538, %v3582
      %v3691 = vadd.f32 %v3539, %v3583
      %v3692 = vadd.f32 %v3540, %v3582
      %v3693 = vadd.f32 %v3541, %v3583
      %v3694 = vadd.f32 %v3542, %v3582
      %v3695 = vadd.f32 %v3543, %v3583
      %v3696 = vadd.f32 %v3544, %v3582
      %v3697 = vadd.f32 %v3545, %v3583
      %v3698 = vadd.f32 %v3546, %v3582
      %v3699 = vadd.f32 %v3547, %v3583
      %v3700 = vadd.f32 %v3548, %v3582
      %v3701 = vadd.f32 %v3549, %v3583
      %v3702 = vadd.f32 %v3550, %v3582
      %v3703 = vadd.f32 %v3551, %v3583
      %v3704 = vadd.f32 %v3552, %v3582
      %v3705 = vadd.f32 %v3553, %v3583
      %v3706 = vadd.f32 %v3554, %v3582
      %v3707 = vadd.f32 %v3555, %v3583
      %v3708 = vadd.f32 %v3556, %v3582
      %v3709 = vadd.f32 %v3557, %v3583
      %v3710 = vadd.f32 %v3558, %v3582
      %v3711 = vadd.f32 %v3559, %v3583
      %v3712 = vadd.f32 %v3560, %v3582
      %v3713 = vadd.f32 %v3561, %v3583
      %v3714 = vadd.f32 %v3562, %v3582
      %v3715 = vadd.f32 %v3563, %v3583
      %v3716 = vadd.f32 %v3564, %v3582
      %v3717 = vadd.f32 %v3565, %v3583
      %v3718 = vadd.f32 %v3566, %v3582
      %v3719 = vadd.f32 %v3567, %v3583
      %v3720 = vadd.f32 %v3568, %v3582
      %v3721 = vadd.f32 %v3569, %v3583
      %v3722 = vadd.f32 %v3570, %v3582
      %v3723 = vadd.f32 %v3571, %v3583
      %v3724 = vadd.f32 %v3572, %v3582
      %v3725 = vadd.f32 %v3573, %v3583
      %v3726 = vadd.f32 %v3574, %v3582
      %v3727 = vadd.f32 %v3575, %v3583
      %v3728 = vadd.f32 %v3576, %v3582
      %v3729 = vadd.f32 %v3577, %v3583
      %v3730 = vadd.f32 %v3578, %v3582
      %v3731 = vadd.f32 %v3579, %v3583
      %v3732 = vmax.f32 %v3586, 0.0
      %v3733 = vmax.f32 %v3587, 0.0
      %v3734 = vmax.f32 %v3588, 0.0
      %v3735 = vmax.f32 %v3589, 0.0
      %v3736 = vmax.f32 %v3590, 0.0
      %v3737 = vmax.f32 %v3591, 0.0
      %v3738 = vmax.f32 %v3592, 0.0
      %v3739 = vmax.f32 %v3593, 0.0
      %v3740 = vmax.f32 %v3594, 0.0
      %v3741 = vmax.f32 %v3595, 0.0
      %v3742 = vmax.f32 %v3596, 0.0
      %v3743 = vmax.f32 %v3597, 0.0
      %v3744 = vmax.f32 %v3598, 0.0
      %v3745 = vmax.f32 %v3599, 0.0
      %v3746 = vmax.f32 %v3600, 0.0
      %v3747 = vmax.f32 %v3601, 0.0
      %v3748 = vmax.f32 %v3602, 0.0
      %v3749 = vmax.f32 %v3603, 0.0
      %v3750 = vmax.f32 %v3604, 0.0
      %v3751 = vmax.f32 %v3605, 0.0
      %v3752 = vmax.f32 %v3606, 0.0
      %v3753 = vmax.f32 %v3607, 0.0
      %v3754 = vmax.f32 %v3608, 0.0
      %v3755 = vmax.f32 %v3609, 0.0
      %v3756 = vmax.f32 %v3610, 0.0
      %v3757 = vmax.f32 %v3611, 0.0
      %v3758 = vmax.f32 %v3612, 0.0
      %v3759 = vmax.f32 %v3613, 0.0
      %v3760 = vmax.f32 %v3614, 0.0
      %v3761 = vmax.f32 %v3615, 0.0
      %v3762 = vmax.f32 %v3616, 0.0
      %v3763 = vmax.f32 %v3617, 0.0
      %v3764 = vmax.f32 %v3618, 0.0
      %v3765 = vmax.f32 %v3619, 0.0
      %v3766 = vmax.f32 %v3620, 0.0
      %v3767 = vmax.f32 %v3621, 0.0
      %v3768 = vmax.f32 %v3622, 0.0
      %v3769 = vmax.f32 %v3623, 0.0
      %v3770 = vmax.f32 %v3624, 0.0
      %v3771 = vmax.f32 %v3625, 0.0
      %v3772 = vmax.f32 %v3626, 0.0
      %v3773 = vmax.f32 %v3627, 0.0
      %v3774 = vmax.f32 %v3628, 0.0
      %v3775 = vmax.f32 %v3629, 0.0
      %v3776 = vmax.f32 %v3630, 0.0
      %v3777 = vmax.f32 %v3631, 0.0
      %v3778 = vmax.f32 %v3632, 0.0
      %v3779 = vmax.f32 %v3633, 0.0
      %v3780 = vmax.f32 %v3634, 0.0
      %v3781 = vmax.f32 %v3635, 0.0
      %v3782 = vmax.f32 %v3636, 0.0
      %v3783 = vmax.f32 %v3637, 0.0
      %v3784 = vmax.f32 %v3638, 0.0
      %v3785 = vmax.f32 %v3639, 0.0
      %v3786 = vmax.f32 %v3640, 0.0
      %v3787 = vmax.f32 %v3641, 0.0
      %v3788 = vmax.f32 %v3642, 0.0
      %v3789 = vmax.f32 %v3643, 0.0
      %v3790 = vmax.f32 %v3644, 0.0
      %v3791 = vmax.f32 %v3645, 0.0
      %v3792 = vmax.f32 %v3646, 0.0
      %v3793 = vmax.f32 %v3647, 0.0
      %v3794 = vmax.f32 %v3648, 0.0
      %v3795 = vmax.f32 %v3649, 0.0
      %v3796 = vmax.f32 %v3650, 0.0
      %v3797 = vmax.f32 %v3651, 0.0
      %v3798 = vmax.f32 %v3652, 0.0
      %v3799 = vmax.f32 %v3653, 0.0
      %v3800 = vmax.f32 %v3654, 0.0
      %v3801 = vmax.f32 %v3655, 0.0
      %v3802 = vmax.f32 %v3656, 0.0
      %v3803 = vmax.f32 %v3657, 0.0
      %v3804 = vmax.f32 %v3658, 0.0
      %v3805 = vmax.f32 %v3659, 0.0
      %v3806 = vmax.f32 %v3660, 0.0
      %v3807 = vmax.f32 %v3661, 0.0
      %v3808 = vmax.f32 %v3662, 0.0
      %v3809 = vmax.f32 %v3663, 0.0
      %v3810 = vmax.f32 %v3664, 0.0
      %v3811 = vmax.f32 %v3665, 0.0
      %v3812 = vmax.f32 %v3666, 0.0
      %v3813 = vmax.f32 %v3667, 0.0
      %v3814 = vmax.f32 %v3668, 0.0
      %v3815 = vmax.f32 %v3669, 0.0
      %v3816 = vmax.f32 %v3670, 0.0
      %v3817 = vmax.f32 %v3671, 0.0
      %v3818 = vmax.f32 %v3672, 0.0
      %v3819 = vmax.f32 %v3673, 0.0
      %v3820 = vmax.f32 %v3674, 0.0
      %v3821 = vmax.f32 %v3675, 0.0
      %v3822 = vmax.f32 %v3676, 0.0
      %v3823 = vmax.f32 %v3677, 0.0
      %v3824 = vmax.f32 %v3678, 0.0
      %v3825 = vmax.f32 %v3679, 0.0
      %v3826 = vmax.f32 %v3680, 0.0
      %v3827 = vmax.f32 %v3681, 0.0
      %v3828 = vmax.f32 %v3682, 0.0
      %v3829 = vmax.f32 %v3683, 0.0
      %v3830 = vmax.f32 %v3684, 0.0
      %v3831 = vmax.f32 %v3685, 0.0
      %v3832 = vmax.f32 %v3686, 0.0
      %v3833 = vmax.f32 %v3687, 0.0
      %v3834 = vmax.f32 %v3688, 0.0
      %v3835 = vmax.f32 %v3689, 0.0
      %v3836 = vmax.f32 %v3690, 0.0
      %v3837 = vmax.f32 %v3691, 0.0
      %v3838 = vmax.f32 %v3692, 0.0
      %v3839 = vmax.f32 %v3693, 0.0
      %v3840 = vmax.f32 %v3694, 0.0
      %v3841 = vmax.f32 %v3695, 0.0
      %v3842 = vmax.f32 %v3696, 0.0
      %v3843 = vmax.f32 %v3697, 0.0
      %v3844 = vmax.f32 %v3698, 0.0
      %v3845 = vmax.f32 %v3699, 0.0
      %v3846 = vmax.f32 %v3700, 0.0
      %v3847 = vmax.f32 %v3701, 0.0
      %v3848 = vmax.f32 %v3702, 0.0
      %v3849 = vmax.f32 %v3703, 0.0
      %v3850 = vmax.f32 %v3704, 0.0
      %v3851 = vmax.f32 %v3705, 0.0
      %v3852 = vmax.f32 %v3706, 0.0
      %v3853 = vmax.f32 %v3707, 0.0
      %v3854 = vmax.f32 %v3708, 0.0
      %v3855 = vmax.f32 %v3709, 0.0
      %v3856 = vmax.f32 %v3710, 0.0
      %v3857 = vmax.f32 %v3711, 0.0
      %v3858 = vmax.f32 %v3712, 0.0
      %v3859 = vmax.f32 %v3713, 0.0
      %v3860 = vmax.f32 %v3714, 0.0
      %v3861 = vmax.f32 %v3715, 0.0
      %v3862 = vmax.f32 %v3716, 0.0
      %v3863 = vmax.f32 %v3717, 0.0
      %v3864 = vmax.f32 %v3718, 0.0
      %v3865 = vmax.f32 %v3719, 0.0
      %v3866 = vmax.f32 %v3720, 0.0
      %v3867 = vmax.f32 %v3721, 0.0
      %v3868 = vmax.f32 %v3722, 0.0
      %v3869 = vmax.f32 %v3723, 0.0
      %v3870 = vmax.f32 %v3724, 0.0
      %v3871 = vmax.f32 %v3725, 0.0
      %v3872 = vmax.f32 %v3726, 0.0
      %v3873 = vmax.f32 %v3727, 0.0
      %v3874 = vmax.f32 %v3728, 0.0
      %v3875 = vmax.f32 %v3729, 0.0
      %v3876 = vmax.f32 %v3730, 0.0
      %v3877 = vmax.f32 %v3731, 0.0
      %s3878 = scalar_lea.vmem %s2, 1
      %v3879 = vld [vmem:[%s3878] ss:$2 sm:$0x3]
      %v3881 = vperm.slane %v3879, 0
      %v3882 = vperm.slane %v3879, 1
      %v3885 = vadd.f32 %v3732, %v3881
      %v3886 = vadd.f32 %v3733, %v3882
      %v3887 = vadd.f32 %v3734, %v3881
      %v3888 = vadd.f32 %v3735, %v3882
      %v3889 = vadd.f32 %v3736, %v3881
      %v3890 = vadd.f32 %v3737, %v3882
      %v3891 = vadd.f32 %v3738, %v3881
      %v3892 = vadd.f32 %v3739, %v3882
      %v3893 = vadd.f32 %v3740, %v3881
      %v3894 = vadd.f32 %v3741, %v3882
      %v3895 = vadd.f32 %v3742, %v3881
      %v3896 = vadd.f32 %v3743, %v3882
      %v3897 = vadd.f32 %v3744, %v3881
      %v3898 = vadd.f32 %v3745, %v3882
      %v3899 = vadd.f32 %v3746, %v3881
      %v3900 = vadd.f32 %v3747, %v3882
      %v3901 = vadd.f32 %v3748, %v3881
      %v3902 = vadd.f32 %v3749, %v3882
      %v3903 = vadd.f32 %v3750, %v3881
      %v3904 = vadd.f32 %v3751, %v3882
      %v3905 = vadd.f32 %v3752, %v3881
      %v3906 = vadd.f32 %v3753, %v3882
      %v3907 = vadd.f32 %v3754, %v3881
      %v3908 = vadd.f32 %v3755, %v3882
      %v3909 = vadd.f32 %v3756, %v3881
      %v3910 = vadd.f32 %v3757, %v3882
      %v3911 = vadd.f32 %v3758, %v3881
      %v3912 = vadd.f32 %v3759, %v3882
      %v3913 = vadd.f32 %v3760, %v3881
      %v3914 = vadd.f32 %v3761, %v3882
      %v3915 = vadd.f32 %v3762, %v3881
      %v3916 = vadd.f32 %v3763, %v3882
      %v3917 = vadd.f32 %v3764, %v3881
      %v3918 = vadd.f32 %v3765, %v3882
      %v3919 = vadd.f32 %v3766, %v3881
      %v3920 = vadd.f32 %v3767, %v3882
      %v3921 = vadd.f32 %v3768, %v3881
      %v3922 = vadd.f32 %v3769, %v3882
      %v3923 = vadd.f32 %v3770, %v3881
      %v3924 = vadd.f32 %v3771, %v3882
      %v3925 = vadd.f32 %v3772, %v3881
      %v3926 = vadd.f32 %v3773, %v3882
      %v3927 = vadd.f32 %v3774, %v3881
      %v3928 = vadd.f32 %v3775, %v3882
      %v3929 = vadd.f32 %v3776, %v3881
      %v3930 = vadd.f32 %v3777, %v3882
      %v3931 = vadd.f32 %v3778, %v3881
      %v3932 = vadd.f32 %v3779, %v3882
      %v3933 = vadd.f32 %v3780, %v3881
      %v3934 = vadd.f32 %v3781, %v3882
      %v3935 = vadd.f32 %v3782, %v3881
      %v3936 = vadd.f32 %v3783, %v3882
      %v3937 = vadd.f32 %v3784, %v3881
      %v3938 = vadd.f32 %v3785, %v3882
      %v3939 = vadd.f32 %v3786, %v3881
      %v3940 = vadd.f32 %v3787, %v3882
      %v3941 = vadd.f32 %v3788, %v3881
      %v3942 = vadd.f32 %v3789, %v3882
      %v3943 = vadd.f32 %v3790, %v3881
      %v3944 = vadd.f32 %v3791, %v3882
      %v3945 = vadd.f32 %v3792, %v3881
      %v3946 = vadd.f32 %v3793, %v3882
      %v3947 = vadd.f32 %v3794, %v3881
      %v3948 = vadd.f32 %v3795, %v3882
      %v3949 = vadd.f32 %v3796, %v3881
      %v3950 = vadd.f32 %v3797, %v3882
      %v3951 = vadd.f32 %v3798, %v3881
      %v3952 = vadd.f32 %v3799, %v3882
      %v3953 = vadd.f32 %v3800, %v3881
      %v3954 = vadd.f32 %v3801, %v3882
      %v3955 = vadd.f32 %v3802, %v3881
      %v3956 = vadd.f32 %v3803, %v3882
      %v3957 = vadd.f32 %v3804, %v3881
      %v3958 = vadd.f32 %v3805, %v3882
      %v3959 = vadd.f32 %v3806, %v3881
      %v3960 = vadd.f32 %v3807, %v3882
      %v3961 = vadd.f32 %v3808, %v3881
      %v3962 = vadd.f32 %v3809, %v3882
      %v3963 = vadd.f32 %v3810, %v3881
      %v3964 = vadd.f32 %v3811, %v3882
      %v3965 = vadd.f32 %v3812, %v3881
      %v3966 = vadd.f32 %v3813, %v3882
      %v3967 = vadd.f32 %v3814, %v3881
      %v3968 = vadd.f32 %v3815, %v3882
      %v3969 = vadd.f32 %v3816, %v3881
      %v3970 = vadd.f32 %v3817, %v3882
      %v3971 = vadd.f32 %v3818, %v3881
      %v3972 = vadd.f32 %v3819, %v3882
      %v3973 = vadd.f32 %v3820, %v3881
      %v3974 = vadd.f32 %v3821, %v3882
      %v3975 = vadd.f32 %v3822, %v3881
      %v3976 = vadd.f32 %v3823, %v3882
      %v3977 = vadd.f32 %v3824, %v3881
      %v3978 = vadd.f32 %v3825, %v3882
      %v3979 = vadd.f32 %v3826, %v3881
      %v3980 = vadd.f32 %v3827, %v3882
      %v3981 = vadd.f32 %v3828, %v3881
      %v3982 = vadd.f32 %v3829, %v3882
      %v3983 = vadd.f32 %v3830, %v3881
      %v3984 = vadd.f32 %v3831, %v3882
      %v3985 = vadd.f32 %v3832, %v3881
      %v3986 = vadd.f32 %v3833, %v3882
      %v3987 = vadd.f32 %v3834, %v3881
      %v3988 = vadd.f32 %v3835, %v3882
      %v3989 = vadd.f32 %v3836, %v3881
      %v3990 = vadd.f32 %v3837, %v3882
      %v3991 = vadd.f32 %v3838, %v3881
      %v3992 = vadd.f32 %v3839, %v3882
      %v3993 = vadd.f32 %v3840, %v3881
      %v3994 = vadd.f32 %v3841, %v3882
      %v3995 = vadd.f32 %v3842, %v3881
      %v3996 = vadd.f32 %v3843, %v3882
      %v3997 = vadd.f32 %v3844, %v3881
      %v3998 = vadd.f32 %v3845, %v3882
      %v3999 = vadd.f32 %v3846, %v3881
      %v4000 = vadd.f32 %v3847, %v3882
      %v4001 = vadd.f32 %v3848, %v3881
      %v4002 = vadd.f32 %v3849, %v3882
      %v4003 = vadd.f32 %v3850, %v3881
      %v4004 = vadd.f32 %v3851, %v3882
      %v4005 = vadd.f32 %v3852, %v3881
      %v4006 = vadd.f32 %v3853, %v3882
      %v4007 = vadd.f32 %v3854, %v3881
      %v4008 = vadd.f32 %v3855, %v3882
      %v4009 = vadd.f32 %v3856, %v3881
      %v4010 = vadd.f32 %v3857, %v3882
      %v4011 = vadd.f32 %v3858, %v3881
      %v4012 = vadd.f32 %v3859, %v3882
      %v4013 = vadd.f32 %v3860, %v3881
      %v4014 = vadd.f32 %v3861, %v3882
      %v4015 = vadd.f32 %v3862, %v3881
      %v4016 = vadd.f32 %v3863, %v3882
      %v4017 = vadd.f32 %v3864, %v3881
      %v4018 = vadd.f32 %v3865, %v3882
      %v4019 = vadd.f32 %v3866, %v3881
      %v4020 = vadd.f32 %v3867, %v3882
      %v4021 = vadd.f32 %v3868, %v3881
      %v4022 = vadd.f32 %v3869, %v3882
      %v4023 = vadd.f32 %v3870, %v3881
      %v4024 = vadd.f32 %v3871, %v3882
      %v4025 = vadd.f32 %v3872, %v3881
      %v4026 = vadd.f32 %v3873, %v3882
      %v4027 = vadd.f32 %v3874, %v3881
      %v4028 = vadd.f32 %v3875, %v3882
      %v4029 = vadd.f32 %v3876, %v3881
      %v4030 = vadd.f32 %v3877, %v3882
      %v4031 = vpack.c.bf16 %v3886, %v3885
      %v4032 = vpack.c.bf16 %v3888, %v3887
      %v4033 = vpack.c.bf16 %v3890, %v3889
      %v4034 = vpack.c.bf16 %v3892, %v3891
      %v4035 = vpack.c.bf16 %v3894, %v3893
      %v4036 = vpack.c.bf16 %v3896, %v3895
      %v4037 = vpack.c.bf16 %v3898, %v3897
      %v4038 = vpack.c.bf16 %v3900, %v3899
      %v4039 = vpack.c.bf16 %v3902, %v3901
      %v4040 = vpack.c.bf16 %v3904, %v3903
      %v4041 = vpack.c.bf16 %v3906, %v3905
      %v4042 = vpack.c.bf16 %v3908, %v3907
      %v4043 = vpack.c.bf16 %v3910, %v3909
      %v4044 = vpack.c.bf16 %v3912, %v3911
      %v4045 = vpack.c.bf16 %v3914, %v3913
      %v4046 = vpack.c.bf16 %v3916, %v3915
      %v4047 = vpack.c.bf16 %v3918, %v3917
      %v4048 = vpack.c.bf16 %v3920, %v3919
      %v4049 = vpack.c.bf16 %v3922, %v3921
      %v4050 = vpack.c.bf16 %v3924, %v3923
      %v4051 = vpack.c.bf16 %v3926, %v3925
      %v4052 = vpack.c.bf16 %v3928, %v3927
      %v4053 = vpack.c.bf16 %v3930, %v3929
      %v4054 = vpack.c.bf16 %v3932, %v3931
      %v4055 = vpack.c.bf16 %v3934, %v3933
      %v4056 = vpack.c.bf16 %v3936, %v3935
      %v4057 = vpack.c.bf16 %v3938, %v3937
      %v4058 = vpack.c.bf16 %v3940, %v3939
      %v4059 = vpack.c.bf16 %v3942, %v3941
      %v4060 = vpack.c.bf16 %v3944, %v3943
      %v4061 = vpack.c.bf16 %v3946, %v3945
      %v4062 = vpack.c.bf16 %v3948, %v3947
      %v4063 = vpack.c.bf16 %v3950, %v3949
      %v4064 = vpack.c.bf16 %v3952, %v3951
      %v4065 = vpack.c.bf16 %v3954, %v3953
      %v4066 = vpack.c.bf16 %v3956, %v3955
      %v4067 = vpack.c.bf16 %v3958, %v3957
      %v4068 = vpack.c.bf16 %v3960, %v3959
      %v4069 = vpack.c.bf16 %v3962, %v3961
      %v4070 = vpack.c.bf16 %v3964, %v3963
      %v4071 = vpack.c.bf16 %v3966, %v3965
      %v4072 = vpack.c.bf16 %v3968, %v3967
      %v4073 = vpack.c.bf16 %v3970, %v3969
      %v4074 = vpack.c.bf16 %v3972, %v3971
      %v4075 = vpack.c.bf16 %v3974, %v3973
      %v4076 = vpack.c.bf16 %v3976, %v3975
      %v4077 = vpack.c.bf16 %v3978, %v3977
      %v4078 = vpack.c.bf16 %v3980, %v3979
      %v4079 = vpack.c.bf16 %v3982, %v3981
      %v4080 = vpack.c.bf16 %v3984, %v3983
      %v4081 = vpack.c.bf16 %v3986, %v3985
      %v4082 = vpack.c.bf16 %v3988, %v3987
      %v4083 = vpack.c.bf16 %v3990, %v3989
      %v4084 = vpack.c.bf16 %v3992, %v3991
      %v4085 = vpack.c.bf16 %v3994, %v3993
      %v4086 = vpack.c.bf16 %v3996, %v3995
      %v4087 = vpack.c.bf16 %v3998, %v3997
      %v4088 = vpack.c.bf16 %v4000, %v3999
      %v4089 = vpack.c.bf16 %v4002, %v4001
      %v4090 = vpack.c.bf16 %v4004, %v4003
      %v4091 = vpack.c.bf16 %v4006, %v4005
      %v4092 = vpack.c.bf16 %v4008, %v4007
      %v4093 = vpack.c.bf16 %v4010, %v4009
      %v4094 = vpack.c.bf16 %v4012, %v4011
      %v4095 = vpack.c.bf16 %v4014, %v4013
      %v4096 = vpack.c.bf16 %v4016, %v4015
      %v4097 = vpack.c.bf16 %v4018, %v4017
      %v4098 = vpack.c.bf16 %v4020, %v4019
      %v4099 = vpack.c.bf16 %v4022, %v4021
      %v4100 = vpack.c.bf16 %v4024, %v4023
      %v4101 = vpack.c.bf16 %v4026, %v4025
      %v4102 = vpack.c.bf16 %v4028, %v4027
      %v4103 = vpack.c.bf16 %v4030, %v4029
      %4104 = vst [vmem:[#allocation3] sm:$0xff] %v4031
      %4105 = vst [vmem:[#allocation3 + $0x8] sm:$0xff] %v4032
      %4106 = vst [vmem:[#allocation3 + $0x10] sm:$0xff] %v4033
      %4107 = vst [vmem:[#allocation3 + $0x18] sm:$0xff] %v4034
      %4108 = vst [vmem:[#allocation3 + $0x20] sm:$0xff] %v4035
      %4109 = vst [vmem:[#allocation3 + $0x28] sm:$0xff] %v4036
      %4110 = vst [vmem:[#allocation3 + $0x30] sm:$0xff] %v4037
      %4111 = vst [vmem:[#allocation3 + $0x38] sm:$0xff] %v4038
      %4112 = vst [vmem:[#allocation3 + $0x40] sm:$0xff] %v4039
      %4113 = vst [vmem:[#allocation3 + $0x48] sm:$0xff] %v4040
      %4114 = vst [vmem:[#allocation3 + $0x50] sm:$0xff] %v4041
      %4115 = vst [vmem:[#allocation3 + $0x58] sm:$0xff] %v4042
      %4116 = vst [vmem:[#allocation3 + $0x60] sm:$0xff] %v4043
      %4117 = vst [vmem:[#allocation3 + $0x68] sm:$0xff] %v4044
      %4118 = vst [vmem:[#allocation3 + $0x70] sm:$0xff] %v4045
      %4119 = vst [vmem:[#allocation3 + $0x78] sm:$0xff] %v4046
      %4120 = vst [vmem:[#allocation3 + $0x80] sm:$0xff] %v4047
      %4121 = vst [vmem:[#allocation3 + $0x88] sm:$0xff] %v4048
      %4122 = vst [vmem:[#allocation3 + $0x90] sm:$0xff] %v4049
      %4123 = vst [vmem:[#allocation3 + $0x98] sm:$0xff] %v4050
      %4124 = vst [vmem:[#allocation3 + $0xa0] sm:$0xff] %v4051
      %4125 = vst [vmem:[#allocation3 + $0xa8] sm:$0xff] %v4052
      %4126 = vst [vmem:[#allocation3 + $0xb0] sm:$0xff] %v4053
      %4127 = vst [vmem:[#allocation3 + $0xb8] sm:$0xff] %v4054
      %4128 = vst [vmem:[#allocation3 + $0xc0] sm:$0xff] %v4055
      %4129 = vst [vmem:[#allocation3 + $0xc8] sm:$0xff] %v4056
      %4130 = vst [vmem:[#allocation3 + $0xd0] sm:$0xff] %v4057
      %4131 = vst [vmem:[#allocation3 + $0xd8] sm:$0xff] %v4058
      %4132 = vst [vmem:[#allocation3 + $0xe0] sm:$0xff] %v4059
      %4133 = vst [vmem:[#allocation3 + $0xe8] sm:$0xff] %v4060
      %4134 = vst [vmem:[#allocation3 + $0xf0] sm:$0xff] %v4061
      %4135 = vst [vmem:[#allocation3 + $0xf8] sm:$0xff] %v4062
      %4136 = vst [vmem:[#allocation3 + $0x100] sm:$0xff] %v4063
      %4137 = vst [vmem:[#allocation3 + $0x108] sm:$0xff] %v4064
      %4138 = vst [vmem:[#allocation3 + $0x110] sm:$0xff] %v4065
      %4139 = vst [vmem:[#allocation3 + $0x118] sm:$0xff] %v4066
      %4140 = vst [vmem:[#allocation3 + $0x120] sm:$0xff] %v4067
      %4141 = vst [vmem:[#allocation3 + $0x128] sm:$0xff] %v4068
      %4142 = vst [vmem:[#allocation3 + $0x130] sm:$0xff] %v4069
      %4143 = vst [vmem:[#allocation3 + $0x138] sm:$0xff] %v4070
      %4144 = vst [vmem:[#allocation3 + $0x140] sm:$0xff] %v4071
      %4145 = vst [vmem:[#allocation3 + $0x148] sm:$0xff] %v4072
      %4146 = vst [vmem:[#allocation3 + $0x150] sm:$0xff] %v4073
      %4147 = vst [vmem:[#allocation3 + $0x158] sm:$0xff] %v4074
      %4148 = vst [vmem:[#allocation3 + $0x160] sm:$0xff] %v4075
      %4149 = vst [vmem:[#allocation3 + $0x168] sm:$0xff] %v4076
      %4150 = vst [vmem:[#allocation3 + $0x170] sm:$0xff] %v4077
      %4151 = vst [vmem:[#allocation3 + $0x178] sm:$0xff] %v4078
      %4152 = vst [vmem:[#allocation3 + $0x180] sm:$0xff] %v4079
      %4153 = vst [vmem:[#allocation3 + $0x188] sm:$0xff] %v4080
      %4154 = vst [vmem:[#allocation3 + $0x190] sm:$0xff] %v4081
      %4155 = vst [vmem:[#allocation3 + $0x198] sm:$0xff] %v4082
      %4156 = vst [vmem:[#allocation3 + $0x1a0] sm:$0xff] %v4083
      %4157 = vst [vmem:[#allocation3 + $0x1a8] sm:$0xff] %v4084
      %4158 = vst [vmem:[#allocation3 + $0x1b0] sm:$0xff] %v4085
      %4159 = vst [vmem:[#allocation3 + $0x1b8] sm:$0xff] %v4086
      %4160 = vst [vmem:[#allocation3 + $0x1c0] sm:$0xff] %v4087
      %4161 = vst [vmem:[#allocation3 + $0x1c8] sm:$0xff] %v4088
      %4162 = vst [vmem:[#allocation3 + $0x1d0] sm:$0xff] %v4089
      %4163 = vst [vmem:[#allocation3 + $0x1d8] sm:$0xff] %v4090
      %4164 = vst [vmem:[#allocation3 + $0x1e0] sm:$0xff] %v4091
      %4165 = vst [vmem:[#allocation3 + $0x1e8] sm:$0xff] %v4092
      %4166 = vst [vmem:[#allocation3 + $0x1f0] sm:$0xff] %v4093
      %4167 = vst [vmem:[#allocation3 + $0x1f8] sm:$0xff] %v4094
      %4168 = vst [vmem:[#allocation3 + $0x200] sm:$0xff] %v4095
      %4169 = vst [vmem:[#allocation3 + $0x208] sm:$0xff] %v4096
      %4170 = vst [vmem:[#allocation3 + $0x210] sm:$0xff] %v4097
      %4171 = vst [vmem:[#allocation3 + $0x218] sm:$0xff] %v4098
      %4172 = vst [vmem:[#allocation3 + $0x220] sm:$0xff] %v4099
      %4173 = vst [vmem:[#allocation3 + $0x228] sm:$0xff] %v4100
      %4174 = vst [vmem:[#allocation3 + $0x230] sm:$0xff] %v4101
      %4175 = vst [vmem:[#allocation3 + $0x238] sm:$0xff] %v4102
      %4176 = vst [vmem:[#allocation3 + $0x240] sm:$0xff] %v4103
    $region25: #{tpu_custom_call.1} parent=1 // pred_fallthru
      _
    // Predicated region
    $region26: #{tpu_custom_call.1} parent=1 // pred_check
      _
    $region27: #{tpu_custom_call.1} parent=1 // pred_check_branch
      %4178 = sbr.rel (0) target = $region29
    $region28: #{tpu_custom_call.1} parent=1 // pred_region
      %4180 = vsyncadd [#allocation4], 0
      %s4181 = sshll.u32 [#allocation3], 4
      %s4182 = int_to_ptr.vmem [resolvable:$true] %s4181
      %s4183 = sshll.u32 %s3, 4
      %s4184 = int_to_ptr.hbm [resolvable:$true] %s4183
      %4189 = dma.vmem_to_hbm [thread:$0]  %s4182, 9344, %s4184, [#allocation4], 128, 128, 8
    $region29: #{tpu_custom_call.1} parent=1 // pred_fallthru
      _
    // Predicated region
    $region30: #{tpu_custom_call.1} parent=1 // pred_check
      _
    $region31: #{tpu_custom_call.1} parent=1 // pred_check_branch
      %4191 = sbr.rel (0) target = $region33
    $region32: #{tpu_custom_call.1} parent=1 // pred_region
      %4193 = dma.done [#allocation4], 9344
    $region33: #{tpu_custom_call.1} parent=1 // pred_fallthru
      _
    %4194 = vsyncpa [#allocation4], 1

</llo_original>
